<compile_context>
chip_gen: v7x
topology: tpu7x:2x2x1
jax: 0.10.0
libtpu: 0.0.40
codegen_flags: <defaults>
</compile_context>

<pallas_src>
import functools

import jax
import jax.numpy as jnp
from jax import lax
from jax.experimental import pallas as pl
from jax.experimental.pallas import tpu as pltpu

# ---------------- config (mirrors `args` of DAGERC) ----------------
HIDDEN_DIM = 32          # args.hidden_dim
EMB_DIM = 48             # args.emb_dim
GNN_LAYERS = 2           # args.gnn_layers
MLP_LAYERS = 2           # args.mlp_layers
NUM_CLASS = 6            # num_class
# args.attn_type = 'linear', args.no_rel_attn = True, args.dropout unused.

VMEM_SPEC = pl.BlockSpec(memory_space=pltpu.MemorySpace.VMEM)


def _dagerc_fused_kernel(*refs, B, N, D, E, L, n_hidden):
    # ---- parse positional refs (inputs ... , output) ----
    it = iter(refs)
    feat_ref = next(it)            # (B*N, E)   features, rows b-major (b*N + n)
    adj_ref = next(it)             # (B, N, N)  adjacency
    fc1_wt_ref = next(it)          # (E, D)
    fc1_b_ref = next(it)           # (1, D)
    gru_wih_ref = next(it)         # (L, D, 3D) transposed torch weight_ih
    gru_whh_ref = next(it)         # (L, D, 3D) transposed torch weight_hh
    gru_bih_ref = next(it)         # (L, 1, 3D)
    gru_bhh_ref = next(it)         # (L, 1, 3D)
    att_wq_ref = next(it)          # (L, 1, D)  GatLinear weight, query half
    att_wk_ref = next(it)          # (L, 1, D)  GatLinear weight, key half
    att_b_ref = next(it)           # (L, 1, 1)
    w0_refs = [next(it) for _ in range(L + 2)]   # row-slices of first MLP weight
    b0_ref = next(it)              # (1, D)
    hid_refs = [(next(it), next(it)) for _ in range(n_hidden)]   # ((D,D),(1,D))
    wlast_ref = next(it)           # (D, C)
    blast_ref = next(it)           # (1, C)
    out_ref = next(it)             # (B*N, C)

    feat = feat_ref[...]
    adj = adj_ref[...]

    # ---- H0 = relu(fc1(features)) (single batched matmul) ----
    h_prev = jnp.maximum(
        jnp.dot(feat, fc1_wt_ref[...], preferred_element_type=jnp.float32)
        + fc1_b_ref[...], 0.0)                                   # (B*N, D)

    # ---- loop-invariant iotas / DAG mask (hoisted once for the whole kernel) ----
    # combined mask: 0 where (j < i, adj==1); -1e30 where (j < i, adj==0)
    # (PyTorch mask_logic); -inf where j >= i (key does not exist yet -> exact
    # zero softmax weight, matching the growing-H1 reference loop).
    q_iota = lax.broadcasted_iota(jnp.int32, (B, N, N), 1)       # query index i
    k_iota = lax.broadcasted_iota(jnp.int32, (B, N, N), 2)       # key index j
    mask_all = jnp.where(q_iota > k_iota, (adj - 1.0) * 1e30, -jnp.inf)  # (B,N,N)
    n_iota_bn = lax.broadcasted_iota(jnp.int32, (B, N), 1)
    n_iota_bnd = lax.broadcasted_iota(jnp.int32, (B, N, D), 1)
    n_iota_bn3d = lax.broadcasted_iota(jnp.int32, (B, N, 3 * D), 1)

    def gru(gi_i, gh, h_in):
        # PyTorch GRUCell (gate order r, z, n); gi_i = x W_ih^T + b_ih,
        # gh = h W_hh^T + b_hh (both precomputed / supplied).
        r = jax.nn.sigmoid(gi_i[:, :D] + gh[:, :D])
        z = jax.nn.sigmoid(gi_i[:, D:2 * D] + gh[:, D:2 * D])
        c = jnp.tanh(gi_i[:, 2 * D:] + r * gh[:, 2 * D:])
        return (1.0 - z) * c + z * h_in

    h_chunks = [h_prev]
    for l in range(L):
        wih_t = gru_wih_ref[l]     # (D, 3D)
        whh_t = gru_whh_ref[l]     # (D, 3D)
        bih = gru_bih_ref[l]       # (1, 3D)
        bhh = gru_bhh_ref[l]       # (1, 3D)
        wq = att_wq_ref[l]         # (1, D)
        wk = att_wk_ref[l]         # (1, D)
        ab = att_b_ref[l]          # (1, 1)

        # hoisted, recurrence-independent projections (one big matmul / reduce)
        gi = (jnp.dot(h_prev, wih_t, preferred_element_type=jnp.float32)
              + bih).reshape(B, N, 3 * D)                         # (B, N, 3D)
        aq = (jnp.sum(h_prev * wq, axis=-1, keepdims=True)
              + ab).reshape(B, N, 1)                              # (B, N, 1)
        qmask = aq + mask_all                                     # (B, N, N)

        # one-hot (iota-select) row extraction: only uses selects + sublane
        # reductions, keeps everything in registers.
        def gi_at(i):
            return jnp.sum(jnp.where(n_iota_bn3d == i, gi, 0.0), axis=1)    # (B,3D)

        def qmask_at(i):
            return jnp.sum(jnp.where(q_iota == i, qmask, 0.0), axis=1)      # (B,N)

        # ---- i == 0: GRUCell with implicit zero hidden state (gh == b_hh) ----
        h_row = gru(gi_at(0), bhh, jnp.zeros((B, D), jnp.float32))           # (B,D)
        h1 = jnp.where(n_iota_bnd == 0, h_row[:, None, :],
                       jnp.zeros((B, N, D), jnp.float32))                    # (B,N,D)
        ak = jnp.where(n_iota_bn == 0,
                       jnp.sum(h_row * wk, axis=-1, keepdims=True),
                       jnp.zeros((B, N), jnp.float32))                       # (B,N)

        # ---- serial DAG recurrence, fully unrolled (N is small & static) ----
        for i in range(1, N):
            logits = ak + qmask_at(i)                             # (B, N), keys on lanes
            m = jnp.max(logits, axis=-1, keepdims=True)
            e = jnp.exp(logits - m)                               # exact 0 for j >= i
            attn = e * pl.reciprocal(jnp.sum(e, axis=-1, keepdims=True),
                                     approx=True)                 # (B, N)
            msg = jnp.sum(attn[:, :, None] * h1, axis=1)          # (B, D) aggregated M

            gh = jnp.dot(msg, whh_t, preferred_element_type=jnp.float32) + bhh
            h_row = gru(gi_at(i), gh, msg)                        # (B, D)

            # incremental scatter of the new row into carried H1 / key logits
            h1 = jnp.where(n_iota_bnd == i, h_row[:, None, :], h1)
            ak = jnp.where(n_iota_bn == i,
                           jnp.sum(h_row * wk, axis=-1, keepdims=True), ak)

        h_prev = h1.reshape(B * N, D)
        h_chunks.append(h_prev)

    # ---- MLP head; torch.cat([H0, H1, ..., features], dim=2) is folded into
    # per-chunk matmuls against row-slices of the first MLP weight ----
    acc = b0_ref[...]
    for chunk, w_ref in zip(h_chunks + [feat], w0_refs):
        acc = acc + jnp.dot(chunk, w_ref[...], preferred_element_type=jnp.float32)
    x = jnp.maximum(acc, 0.0)
    for w_ref, b_ref in hid_refs:
        x = jnp.maximum(
            jnp.dot(x, w_ref[...], preferred_element_type=jnp.float32) + b_ref[...],
            0.0)
    out_ref[...] = (jnp.dot(x, wlast_ref[...], preferred_element_type=jnp.float32)
                    + blast_ref[...])


# ---------------- parameters (deterministic synthetic init) ----------------
def init_params(key):
    D, E = HIDDEN_DIM, EMB_DIM
    in_dim = D * (GNN_LAYERS + 1) + E
    params = {}
    n_keys = 2 + GNN_LAYERS * 6 + 2 * (MLP_LAYERS + 1)
    keys = iter(jax.random.split(key, n_keys))

    def rnd(shape, scale=0.1):
        return scale * jax.random.normal(next(keys), shape, jnp.float32)

    params["fc1_w"] = rnd((D, E))          # torch Linear weight layout (out, in)
    params["fc1_b"] = rnd((D,))
    params["gru_wih"] = [rnd((3 * D, D)) for _ in range(GNN_LAYERS)]
    params["gru_whh"] = [rnd((3 * D, D)) for _ in range(GNN_LAYERS)]
    params["gru_bih"] = [rnd((3 * D,)) for _ in range(GNN_LAYERS)]
    params["gru_bhh"] = [rnd((3 * D,)) for _ in range(GNN_LAYERS)]
    params["att_w"] = [rnd((2 * D,)) for _ in range(GNN_LAYERS)]   # GatLinear Linear(2D,1)
    params["att_b"] = [rnd((1,)) for _ in range(GNN_LAYERS)]

    mlp_w, mlp_b = [], []
    mlp_w.append(rnd((D, in_dim))); mlp_b.append(rnd((D,)))
    for _ in range(MLP_LAYERS - 1):
        mlp_w.append(rnd((D, D))); mlp_b.append(rnd((D,)))
    mlp_w.append(rnd((NUM_CLASS, D))); mlp_b.append(rnd((NUM_CLASS,)))
    params["mlp_w"], params["mlp_b"] = mlp_w, mlp_b
    return params


# ---------------- full DAGERC forward (single fused kernel) ----------------
@jax.jit
def dagerc_forward(features, adj, params):
    # features: (B, N, E) f32 ; adj: (B, N, N) f32 ; returns logits (B, N, NUM_CLASS)
    B, N, E = features.shape
    D = HIDDEN_DIM
    L = GNN_LAYERS
    C = NUM_CLASS

    feat_flat = features.reshape(B * N, E)

    fc1_wt = params["fc1_w"].T                                           # (E, D)
    fc1_b = params["fc1_b"].reshape(1, D)
    gru_wih_t = jnp.stack([w.T for w in params["gru_wih"]])              # (L, D, 3D)
    gru_whh_t = jnp.stack([w.T for w in params["gru_whh"]])              # (L, D, 3D)
    gru_bih = jnp.stack([b.reshape(1, 3 * D) for b in params["gru_bih"]])
    gru_bhh = jnp.stack([b.reshape(1, 3 * D) for b in params["gru_bhh"]])
    att_wq = jnp.stack([w[:D].reshape(1, D) for w in params["att_w"]])   # (L, 1, D)
    att_wk = jnp.stack([w[D:].reshape(1, D) for w in params["att_w"]])   # (L, 1, D)
    att_b = jnp.stack([b.reshape(1, 1) for b in params["att_b"]])        # (L, 1, 1)

    # first MLP layer weight, split by the concat chunks [H0, H1, ..., features]
    w0t = params["mlp_w"][0].T                                           # (in_dim, D)
    w0_chunks = [w0t[k * D:(k + 1) * D] for k in range(L + 1)] + [w0t[(L + 1) * D:]]
    b0 = params["mlp_b"][0].reshape(1, D)
    hidden = []
    for k in range(1, MLP_LAYERS):
        hidden += [params["mlp_w"][k].T, params["mlp_b"][k].reshape(1, D)]
    w_last = params["mlp_w"][MLP_LAYERS].T                               # (D, C)
    b_last = params["mlp_b"][MLP_LAYERS].reshape(1, C)

    args = ([feat_flat, adj, fc1_wt, fc1_b, gru_wih_t, gru_whh_t, gru_bih, gru_bhh,
             att_wq, att_wk, att_b]
            + w0_chunks + [b0] + hidden + [w_last, b_last])

    out_flat = pl.pallas_call(
        functools.partial(_dagerc_fused_kernel, B=B, N=N, D=D, E=E,
                          L=L, n_hidden=MLP_LAYERS - 1),
        out_shape=jax.ShapeDtypeStruct((B * N, C), jnp.float32),
        in_specs=[VMEM_SPEC] * len(args),
        out_specs=VMEM_SPEC,
    )(*args)
    return out_flat.reshape(B, N, C)


if __name__ == "__main__":
    key = jax.random.PRNGKey(0)
    k_feat, k_par = jax.random.split(key)

    B, N = 2, 8
    features = jax.random.normal(k_feat, (B, N, EMB_DIM), jnp.float32)

    # DAG adjacency: each utterance i attends to up to 3 preceding utterances
    idx_i = jnp.arange(N)[:, None]
    idx_j = jnp.arange(N)[None, :]
    adj_single = ((idx_j < idx_i) & (idx_j >= idx_i - 3)).astype(jnp.float32)
    adj = jnp.broadcast_to(adj_single, (B, N, N))
    # s_mask is unused because no_rel_attn=True (rel_attn branch disabled).

    params = init_params(k_par)
    logits = dagerc_forward(features, adj, params)
    logits = jax.block_until_ready(logits)

    assert logits.shape == (B, N, NUM_CLASS)
    assert bool(jnp.all(jnp.isfinite(logits)))
    print("KERNEL_OK")
</pallas_src>

<mosaic_0001>
module attributes {stable_mosaic.version = 11 : i64} {
  func.func @_dagerc_fused_kernel(%arg0: memref<16x48xf32, #tpu.memory_space<vmem>>, %arg1: memref<2x8x8xf32, #tpu.memory_space<vmem>>, %arg2: memref<48x32xf32, #tpu.memory_space<vmem>>, %arg3: memref<1x32xf32, #tpu.memory_space<vmem>>, %arg4: memref<2x32x96xf32, #tpu.memory_space<vmem>>, %arg5: memref<2x32x96xf32, #tpu.memory_space<vmem>>, %arg6: memref<2x1x96xf32, #tpu.memory_space<vmem>>, %arg7: memref<2x1x96xf32, #tpu.memory_space<vmem>>, %arg8: memref<2x1x32xf32, #tpu.memory_space<vmem>>, %arg9: memref<2x1x32xf32, #tpu.memory_space<vmem>>, %arg10: memref<2x1x1xf32, #tpu.memory_space<vmem>>, %arg11: memref<32x32xf32, #tpu.memory_space<vmem>>, %arg12: memref<32x32xf32, #tpu.memory_space<vmem>>, %arg13: memref<32x32xf32, #tpu.memory_space<vmem>>, %arg14: memref<48x32xf32, #tpu.memory_space<vmem>>, %arg15: memref<1x32xf32, #tpu.memory_space<vmem>>, %arg16: memref<32x32xf32, #tpu.memory_space<vmem>>, %arg17: memref<1x32xf32, #tpu.memory_space<vmem>>, %arg18: memref<32x6xf32, #tpu.memory_space<vmem>>, %arg19: memref<1x6xf32, #tpu.memory_space<vmem>>, %arg20: memref<16x6xf32, #tpu.memory_space<vmem>>) attributes {dimension_semantics = [], scalar_prefetch = 0 : i64, scratch_operands = 0 : i64, tpu.core_type = #tpu.core_type<tc>} {
    %c0 = arith.constant 0 : index
    %c0_0 = arith.constant 0 : index
    %0 = vector.load %arg0[%c0, %c0_0] : memref<16x48xf32, #tpu.memory_space<vmem>>, vector<16x48xf32>
    %c0_1 = arith.constant 0 : index
    %c0_2 = arith.constant 0 : index
    %c0_3 = arith.constant 0 : index
    %1 = vector.load %arg1[%c0_1, %c0_2, %c0_3] : memref<2x8x8xf32, #tpu.memory_space<vmem>>, vector<2x8x8xf32>
    %c0_4 = arith.constant 0 : index
    %c0_5 = arith.constant 0 : index
    %2 = vector.load %arg2[%c0_4, %c0_5] : memref<48x32xf32, #tpu.memory_space<vmem>>, vector<48x32xf32>
    %cst = arith.constant dense<0.000000e+00> : vector<16x32xf32>
    %3 = tpu.matmul %0, %2, %cst {dimension_numbers = #tpu.dot_dimension_numbers<[1], [0], [0], [1], [0, 0, 1, 1], [], []>} : vector<16x48xf32>, vector<48x32xf32>, vector<16x32xf32> -> vector<16x32xf32>
    %c0_6 = arith.constant 0 : index
    %c0_7 = arith.constant 0 : index
    %4 = vector.load %arg3[%c0_6, %c0_7] : memref<1x32xf32, #tpu.memory_space<vmem>>, vector<1x32xf32>
    %5 = vector.broadcast %4 : vector<1x32xf32> to vector<16x32xf32>
    %6 = arith.addf %3, %5 : vector<16x32xf32>
    %cst_8 = arith.constant 0.000000e+00 : f32
    %7 = vector.broadcast %cst_8 : f32 to vector<16x32xf32>
    %8 = arith.maximumf %6, %7 : vector<16x32xf32>
    %9 = tpu.iota {dimensions = array<i32: 1>} : vector<2x8x8xi32>
    %10 = tpu.iota {dimensions = array<i32: 2>} : vector<2x8x8xi32>
    %11 = arith.cmpi sgt, %9, %10 : vector<2x8x8xi32>
    %cst_9 = arith.constant 1.000000e+00 : f32
    %12 = vector.broadcast %cst_9 : f32 to vector<2x8x8xf32>
    %13 = arith.subf %1, %12 : vector<2x8x8xf32>
    %cst_10 = arith.constant 1.000000e+30 : f32
    %14 = vector.broadcast %cst_10 : f32 to vector<2x8x8xf32>
    %15 = arith.mulf %13, %14 : vector<2x8x8xf32>
    %cst_11 = arith.constant 0xFF800000 : f32
    %16 = vector.broadcast %cst_11 : f32 to vector<2x8x8xf32>
    %17 = arith.select %11, %15, %16 : vector<2x8x8xi1>, vector<2x8x8xf32>
    %18 = tpu.iota {dimensions = array<i32: 1>} : vector<2x8xi32>
    %19 = tpu.iota {dimensions = array<i32: 1>} : vector<2x8x32xi32>
    %20 = tpu.iota {dimensions = array<i32: 1>} : vector<2x8x96xi32>
    %c0_12 = arith.constant 0 : index
    %c0_13 = arith.constant 0 : index
    %c0_14 = arith.constant 0 : index
    %21 = vector.load %arg4[%c0_12, %c0_13, %c0_14] : memref<2x32x96xf32, #tpu.memory_space<vmem>>, vector<1x32x96xf32>
    %22 = vector.shape_cast %21 : vector<1x32x96xf32> to vector<32x96xf32>
    %c0_15 = arith.constant 0 : index
    %c0_16 = arith.constant 0 : index
    %c0_17 = arith.constant 0 : index
    %23 = vector.load %arg5[%c0_15, %c0_16, %c0_17] : memref<2x32x96xf32, #tpu.memory_space<vmem>>, vector<1x32x96xf32>
    %24 = vector.shape_cast %23 : vector<1x32x96xf32> to vector<32x96xf32>
    %c0_18 = arith.constant 0 : index
    %c0_19 = arith.constant 0 : index
    %c0_20 = arith.constant 0 : index
    %25 = vector.load %arg6[%c0_18, %c0_19, %c0_20] : memref<2x1x96xf32, #tpu.memory_space<vmem>>, vector<1x1x96xf32>
    %26 = vector.shape_cast %25 : vector<1x1x96xf32> to vector<1x96xf32>
    %c0_21 = arith.constant 0 : index
    %c0_22 = arith.constant 0 : index
    %c0_23 = arith.constant 0 : index
    %27 = vector.load %arg7[%c0_21, %c0_22, %c0_23] : memref<2x1x96xf32, #tpu.memory_space<vmem>>, vector<1x1x96xf32>
    %28 = vector.shape_cast %27 : vector<1x1x96xf32> to vector<1x96xf32>
    %c0_24 = arith.constant 0 : index
    %c0_25 = arith.constant 0 : index
    %c0_26 = arith.constant 0 : index
    %29 = vector.load %arg8[%c0_24, %c0_25, %c0_26] : memref<2x1x32xf32, #tpu.memory_space<vmem>>, vector<1x1x32xf32>
    %30 = vector.shape_cast %29 : vector<1x1x32xf32> to vector<1x32xf32>
    %c0_27 = arith.constant 0 : index
    %c0_28 = arith.constant 0 : index
    %c0_29 = arith.constant 0 : index
    %31 = vector.load %arg9[%c0_27, %c0_28, %c0_29] : memref<2x1x32xf32, #tpu.memory_space<vmem>>, vector<1x1x32xf32>
    %32 = vector.shape_cast %31 : vector<1x1x32xf32> to vector<1x32xf32>
    %c0_30 = arith.constant 0 : index
    %c0_31 = arith.constant 0 : index
    %c0_32 = arith.constant 0 : index
    %33 = vector.load %arg10[%c0_30, %c0_31, %c0_32] : memref<2x1x1xf32, #tpu.memory_space<vmem>>, vector<1x1x1xf32>
    %34 = vector.shape_cast %33 : vector<1x1x1xf32> to vector<1x1xf32>
    %cst_33 = arith.constant dense<0.000000e+00> : vector<16x96xf32>
    %35 = tpu.matmul %8, %22, %cst_33 {dimension_numbers = #tpu.dot_dimension_numbers<[1], [0], [0], [1], [0, 0, 1, 1], [], []>} : vector<16x32xf32>, vector<32x96xf32>, vector<16x96xf32> -> vector<16x96xf32>
    %36 = vector.broadcast %26 : vector<1x96xf32> to vector<16x96xf32>
    %37 = arith.addf %35, %36 : vector<16x96xf32>
    %38 = vector.shape_cast %37 : vector<16x96xf32> to vector<2x8x96xf32>
    %39 = vector.broadcast %30 : vector<1x32xf32> to vector<16x32xf32>
    %40 = arith.mulf %8, %39 : vector<16x32xf32>
    %cst_34 = arith.constant dense<0.000000e+00> : vector<16xf32>
    %41 = vector.multi_reduction <add>, %40, %cst_34 [1] : vector<16x32xf32> to vector<16xf32>
    %42 = vector.shape_cast %41 : vector<16xf32> to vector<16x1xf32>
    %43 = vector.broadcast %34 : vector<1x1xf32> to vector<16x1xf32>
    %44 = arith.addf %42, %43 : vector<16x1xf32>
    %45 = vector.shape_cast %44 : vector<16x1xf32> to vector<2x8x1xf32>
    %46 = vector.broadcast %45 : vector<2x8x1xf32> to vector<2x8x8xf32>
    %47 = arith.addf %46, %17 : vector<2x8x8xf32>
    %c0_i32 = arith.constant 0 : i32
    %48 = vector.broadcast %c0_i32 : i32 to vector<2x8x96xi32>
    %49 = arith.cmpi eq, %20, %48 : vector<2x8x96xi32>
    %cst_35 = arith.constant 0.000000e+00 : f32
    %50 = vector.broadcast %cst_35 : f32 to vector<2x8x96xf32>
    %51 = arith.select %49, %38, %50 : vector<2x8x96xi1>, vector<2x8x96xf32>
    %cst_36 = arith.constant dense<0.000000e+00> : vector<2x96xf32>
    %52 = vector.multi_reduction <add>, %51, %cst_36 [1] : vector<2x8x96xf32> to vector<2x96xf32>
    %cst_37 = arith.constant 0.000000e+00 : f32
    %53 = vector.broadcast %cst_37 : f32 to vector<2x32xf32>
    %54 = vector.extract_strided_slice %52 {offsets = [0, 0], sizes = [2, 32], strides = [1, 1]} : vector<2x96xf32> to vector<2x32xf32>
    %55 = vector.extract_strided_slice %28 {offsets = [0, 0], sizes = [1, 32], strides = [1, 1]} : vector<1x96xf32> to vector<1x32xf32>
    %56 = vector.broadcast %55 : vector<1x32xf32> to vector<2x32xf32>
    %57 = arith.addf %54, %56 : vector<2x32xf32>
    %58 = arith.negf %57 : vector<2x32xf32>
    %59 = math.exp %58 : vector<2x32xf32>
    %cst_38 = arith.constant 1.000000e+00 : f32
    %60 = vector.broadcast %cst_38 : f32 to vector<2x32xf32>
    %61 = arith.addf %60, %59 : vector<2x32xf32>
    %62 = arith.divf %60, %61 : vector<2x32xf32>
    %63 = vector.extract_strided_slice %52 {offsets = [0, 32], sizes = [2, 32], strides = [1, 1]} : vector<2x96xf32> to vector<2x32xf32>
    %64 = vector.extract_strided_slice %28 {offsets = [0, 32], sizes = [1, 32], strides = [1, 1]} : vector<1x96xf32> to vector<1x32xf32>
    %65 = vector.broadcast %64 : vector<1x32xf32> to vector<2x32xf32>
    %66 = arith.addf %63, %65 : vector<2x32xf32>
    %67 = arith.negf %66 : vector<2x32xf32>
    %68 = math.exp %67 : vector<2x32xf32>
    %cst_39 = arith.constant 1.000000e+00 : f32
    %69 = vector.broadcast %cst_39 : f32 to vector<2x32xf32>
    %70 = arith.addf %69, %68 : vector<2x32xf32>
    %71 = arith.divf %69, %70 : vector<2x32xf32>
    %72 = vector.extract_strided_slice %52 {offsets = [0, 64], sizes = [2, 32], strides = [1, 1]} : vector<2x96xf32> to vector<2x32xf32>
    %73 = vector.extract_strided_slice %28 {offsets = [0, 64], sizes = [1, 32], strides = [1, 1]} : vector<1x96xf32> to vector<1x32xf32>
    %74 = vector.broadcast %73 : vector<1x32xf32> to vector<2x32xf32>
    %75 = arith.mulf %62, %74 : vector<2x32xf32>
    %76 = arith.addf %72, %75 : vector<2x32xf32>
    %77 = math.tanh %76 : vector<2x32xf32>
    %cst_40 = arith.constant 1.000000e+00 : f32
    %78 = vector.broadcast %cst_40 : f32 to vector<2x32xf32>
    %79 = arith.subf %78, %71 : vector<2x32xf32>
    %80 = arith.mulf %79, %77 : vector<2x32xf32>
    %81 = arith.mulf %71, %53 : vector<2x32xf32>
    %82 = arith.addf %80, %81 : vector<2x32xf32>
    %c0_i32_41 = arith.constant 0 : i32
    %83 = vector.broadcast %c0_i32_41 : i32 to vector<2x8x32xi32>
    %84 = arith.cmpi eq, %19, %83 : vector<2x8x32xi32>
    %85 = vector.shape_cast %82 : vector<2x32xf32> to vector<2x1x32xf32>
    %cst_42 = arith.constant 0.000000e+00 : f32
    %86 = vector.broadcast %cst_42 : f32 to vector<2x8x32xf32>
    %87 = vector.shape_cast %85 : vector<2x1x32xf32> to vector<2x1x32xf32>
    %88 = vector.broadcast %87 : vector<2x1x32xf32> to vector<2x8x32xf32>
    %89 = arith.select %84, %88, %86 : vector<2x8x32xi1>, vector<2x8x32xf32>
    %c0_i32_43 = arith.constant 0 : i32
    %90 = vector.broadcast %c0_i32_43 : i32 to vector<2x8xi32>
    %91 = arith.cmpi eq, %18, %90 : vector<2x8xi32>
    %92 = vector.broadcast %32 : vector<1x32xf32> to vector<2x32xf32>
    %93 = arith.mulf %82, %92 : vector<2x32xf32>
    %cst_44 = arith.constant dense<0.000000e+00> : vector<2xf32>
    %94 = vector.multi_reduction <add>, %93, %cst_44 [1] : vector<2x32xf32> to vector<2xf32>
    %95 = vector.shape_cast %94 : vector<2xf32> to vector<2x1xf32>
    %cst_45 = arith.constant 0.000000e+00 : f32
    %96 = vector.broadcast %cst_45 : f32 to vector<2x8xf32>
    %97 = vector.shape_cast %95 : vector<2x1xf32> to vector<2x1xf32>
    %98 = vector.broadcast %97 : vector<2x1xf32> to vector<2x8xf32>
    %99 = arith.select %91, %98, %96 : vector<2x8xi1>, vector<2x8xf32>
    %c1_i32 = arith.constant 1 : i32
    %100 = vector.broadcast %c1_i32 : i32 to vector<2x8x8xi32>
    %101 = arith.cmpi eq, %9, %100 : vector<2x8x8xi32>
    %cst_46 = arith.constant 0.000000e+00 : f32
    %102 = vector.broadcast %cst_46 : f32 to vector<2x8x8xf32>
    %103 = arith.select %101, %47, %102 : vector<2x8x8xi1>, vector<2x8x8xf32>
    %cst_47 = arith.constant dense<0.000000e+00> : vector<2x8xf32>
    %104 = vector.multi_reduction <add>, %103, %cst_47 [1] : vector<2x8x8xf32> to vector<2x8xf32>
    %105 = arith.addf %99, %104 : vector<2x8xf32>
    %cst_48 = arith.constant dense<0xFF800000> : vector<2xf32>
    %106 = vector.multi_reduction <maximumf>, %105, %cst_48 [1] : vector<2x8xf32> to vector<2xf32>
    %107 = vector.shape_cast %106 : vector<2xf32> to vector<2x1xf32>
    %108 = vector.broadcast %107 : vector<2x1xf32> to vector<2x8xf32>
    %109 = arith.subf %105, %108 : vector<2x8xf32>
    %110 = math.exp %109 : vector<2x8xf32>
    %cst_49 = arith.constant dense<0.000000e+00> : vector<2xf32>
    %111 = vector.multi_reduction <add>, %110, %cst_49 [1] : vector<2x8xf32> to vector<2xf32>
    %112 = vector.shape_cast %111 : vector<2xf32> to vector<2x1xf32>
    %113 = tpu.reciprocal %112 {approx = true} : vector<2x1xf32> -> vector<2x1xf32>
    %114 = vector.broadcast %113 : vector<2x1xf32> to vector<2x8xf32>
    %115 = arith.mulf %110, %114 : vector<2x8xf32>
    %116 = vector.shape_cast %115 : vector<2x8xf32> to vector<2x8x1xf32>
    %117 = vector.broadcast %116 : vector<2x8x1xf32> to vector<2x8x32xf32>
    %118 = arith.mulf %117, %89 : vector<2x8x32xf32>
    %cst_50 = arith.constant dense<0.000000e+00> : vector<2x32xf32>
    %119 = vector.multi_reduction <add>, %118, %cst_50 [1] : vector<2x8x32xf32> to vector<2x32xf32>
    %cst_51 = arith.constant dense<0.000000e+00> : vector<2x96xf32>
    %120 = tpu.matmul %119, %24, %cst_51 {dimension_numbers = #tpu.dot_dimension_numbers<[1], [0], [0], [1], [0, 0, 1, 1], [], []>} : vector<2x32xf32>, vector<32x96xf32>, vector<2x96xf32> -> vector<2x96xf32>
    %121 = vector.broadcast %28 : vector<1x96xf32> to vector<2x96xf32>
    %122 = arith.addf %120, %121 : vector<2x96xf32>
    %c1_i32_52 = arith.constant 1 : i32
    %123 = vector.broadcast %c1_i32_52 : i32 to vector<2x8x96xi32>
    %124 = arith.cmpi eq, %20, %123 : vector<2x8x96xi32>
    %cst_53 = arith.constant 0.000000e+00 : f32
    %125 = vector.broadcast %cst_53 : f32 to vector<2x8x96xf32>
    %126 = arith.select %124, %38, %125 : vector<2x8x96xi1>, vector<2x8x96xf32>
    %cst_54 = arith.constant dense<0.000000e+00> : vector<2x96xf32>
    %127 = vector.multi_reduction <add>, %126, %cst_54 [1] : vector<2x8x96xf32> to vector<2x96xf32>
    %128 = vector.extract_strided_slice %127 {offsets = [0, 0], sizes = [2, 32], strides = [1, 1]} : vector<2x96xf32> to vector<2x32xf32>
    %129 = vector.extract_strided_slice %122 {offsets = [0, 0], sizes = [2, 32], strides = [1, 1]} : vector<2x96xf32> to vector<2x32xf32>
    %130 = arith.addf %128, %129 : vector<2x32xf32>
    %131 = arith.negf %130 : vector<2x32xf32>
    %132 = math.exp %131 : vector<2x32xf32>
    %cst_55 = arith.constant 1.000000e+00 : f32
    %133 = vector.broadcast %cst_55 : f32 to vector<2x32xf32>
    %134 = arith.addf %133, %132 : vector<2x32xf32>
    %135 = arith.divf %133, %134 : vector<2x32xf32>
    %136 = vector.extract_strided_slice %127 {offsets = [0, 32], sizes = [2, 32], strides = [1, 1]} : vector<2x96xf32> to vector<2x32xf32>
    %137 = vector.extract_strided_slice %122 {offsets = [0, 32], sizes = [2, 32], strides = [1, 1]} : vector<2x96xf32> to vector<2x32xf32>
    %138 = arith.addf %136, %137 : vector<2x32xf32>
    %139 = arith.negf %138 : vector<2x32xf32>
    %140 = math.exp %139 : vector<2x32xf32>
    %cst_56 = arith.constant 1.000000e+00 : f32
    %141 = vector.broadcast %cst_56 : f32 to vector<2x32xf32>
    %142 = arith.addf %141, %140 : vector<2x32xf32>
    %143 = arith.divf %141, %142 : vector<2x32xf32>
    %144 = vector.extract_strided_slice %127 {offsets = [0, 64], sizes = [2, 32], strides = [1, 1]} : vector<2x96xf32> to vector<2x32xf32>
    %145 = vector.extract_strided_slice %122 {offsets = [0, 64], sizes = [2, 32], strides = [1, 1]} : vector<2x96xf32> to vector<2x32xf32>
    %146 = arith.mulf %135, %145 : vector<2x32xf32>
    %147 = arith.addf %144, %146 : vector<2x32xf32>
    %148 = math.tanh %147 : vector<2x32xf32>
    %cst_57 = arith.constant 1.000000e+00 : f32
    %149 = vector.broadcast %cst_57 : f32 to vector<2x32xf32>
    %150 = arith.subf %149, %143 : vector<2x32xf32>
    %151 = arith.mulf %150, %148 : vector<2x32xf32>
    %152 = arith.mulf %143, %119 : vector<2x32xf32>
    %153 = arith.addf %151, %152 : vector<2x32xf32>
    %c1_i32_58 = arith.constant 1 : i32
    %154 = vector.broadcast %c1_i32_58 : i32 to vector<2x8x32xi32>
    %155 = arith.cmpi eq, %19, %154 : vector<2x8x32xi32>
    %156 = vector.shape_cast %153 : vector<2x32xf32> to vector<2x1x32xf32>
    %157 = vector.shape_cast %156 : vector<2x1x32xf32> to vector<2x1x32xf32>
    %158 = vector.broadcast %157 : vector<2x1x32xf32> to vector<2x8x32xf32>
    %159 = arith.select %155, %158, %89 : vector<2x8x32xi1>, vector<2x8x32xf32>
    %c1_i32_59 = arith.constant 1 : i32
    %160 = vector.broadcast %c1_i32_59 : i32 to vector<2x8xi32>
    %161 = arith.cmpi eq, %18, %160 : vector<2x8xi32>
    %162 = vector.broadcast %32 : vector<1x32xf32> to vector<2x32xf32>
    %163 = arith.mulf %153, %162 : vector<2x32xf32>
    %cst_60 = arith.constant dense<0.000000e+00> : vector<2xf32>
    %164 = vector.multi_reduction <add>, %163, %cst_60 [1] : vector<2x32xf32> to vector<2xf32>
    %165 = vector.shape_cast %164 : vector<2xf32> to vector<2x1xf32>
    %166 = vector.shape_cast %165 : vector<2x1xf32> to vector<2x1xf32>
    %167 = vector.broadcast %166 : vector<2x1xf32> to vector<2x8xf32>
    %168 = arith.select %161, %167, %99 : vector<2x8xi1>, vector<2x8xf32>
    %c2_i32 = arith.constant 2 : i32
    %169 = vector.broadcast %c2_i32 : i32 to vector<2x8x8xi32>
    %170 = arith.cmpi eq, %9, %169 : vector<2x8x8xi32>
    %cst_61 = arith.constant 0.000000e+00 : f32
    %171 = vector.broadcast %cst_61 : f32 to vector<2x8x8xf32>
    %172 = arith.select %170, %47, %171 : vector<2x8x8xi1>, vector<2x8x8xf32>
    %cst_62 = arith.constant dense<0.000000e+00> : vector<2x8xf32>
    %173 = vector.multi_reduction <add>, %172, %cst_62 [1] : vector<2x8x8xf32> to vector<2x8xf32>
    %174 = arith.addf %168, %173 : vector<2x8xf32>
    %cst_63 = arith.constant dense<0xFF800000> : vector<2xf32>
    %175 = vector.multi_reduction <maximumf>, %174, %cst_63 [1] : vector<2x8xf32> to vector<2xf32>
    %176 = vector.shape_cast %175 : vector<2xf32> to vector<2x1xf32>
    %177 = vector.broadcast %176 : vector<2x1xf32> to vector<2x8xf32>
    %178 = arith.subf %174, %177 : vector<2x8xf32>
    %179 = math.exp %178 : vector<2x8xf32>
    %cst_64 = arith.constant dense<0.000000e+00> : vector<2xf32>
    %180 = vector.multi_reduction <add>, %179, %cst_64 [1] : vector<2x8xf32> to vector<2xf32>
    %181 = vector.shape_cast %180 : vector<2xf32> to vector<2x1xf32>
    %182 = tpu.reciprocal %181 {approx = true} : vector<2x1xf32> -> vector<2x1xf32>
    %183 = vector.broadcast %182 : vector<2x1xf32> to vector<2x8xf32>
    %184 = arith.mulf %179, %183 : vector<2x8xf32>
    %185 = vector.shape_cast %184 : vector<2x8xf32> to vector<2x8x1xf32>
    %186 = vector.broadcast %185 : vector<2x8x1xf32> to vector<2x8x32xf32>
    %187 = arith.mulf %186, %159 : vector<2x8x32xf32>
    %cst_65 = arith.constant dense<0.000000e+00> : vector<2x32xf32>
    %188 = vector.multi_reduction <add>, %187, %cst_65 [1] : vector<2x8x32xf32> to vector<2x32xf32>
    %cst_66 = arith.constant dense<0.000000e+00> : vector<2x96xf32>
    %189 = tpu.matmul %188, %24, %cst_66 {dimension_numbers = #tpu.dot_dimension_numbers<[1], [0], [0], [1], [0, 0, 1, 1], [], []>} : vector<2x32xf32>, vector<32x96xf32>, vector<2x96xf32> -> vector<2x96xf32>
    %190 = vector.broadcast %28 : vector<1x96xf32> to vector<2x96xf32>
    %191 = arith.addf %189, %190 : vector<2x96xf32>
    %c2_i32_67 = arith.constant 2 : i32
    %192 = vector.broadcast %c2_i32_67 : i32 to vector<2x8x96xi32>
    %193 = arith.cmpi eq, %20, %192 : vector<2x8x96xi32>
    %cst_68 = arith.constant 0.000000e+00 : f32
    %194 = vector.broadcast %cst_68 : f32 to vector<2x8x96xf32>
    %195 = arith.select %193, %38, %194 : vector<2x8x96xi1>, vector<2x8x96xf32>
    %cst_69 = arith.constant dense<0.000000e+00> : vector<2x96xf32>
    %196 = vector.multi_reduction <add>, %195, %cst_69 [1] : vector<2x8x96xf32> to vector<2x96xf32>
    %197 = vector.extract_strided_slice %196 {offsets = [0, 0], sizes = [2, 32], strides = [1, 1]} : vector<2x96xf32> to vector<2x32xf32>
    %198 = vector.extract_strided_slice %191 {offsets = [0, 0], sizes = [2, 32], strides = [1, 1]} : vector<2x96xf32> to vector<2x32xf32>
    %199 = arith.addf %197, %198 : vector<2x32xf32>
    %200 = arith.negf %199 : vector<2x32xf32>
    %201 = math.exp %200 : vector<2x32xf32>
    %cst_70 = arith.constant 1.000000e+00 : f32
    %202 = vector.broadcast %cst_70 : f32 to vector<2x32xf32>
    %203 = arith.addf %202, %201 : vector<2x32xf32>
    %204 = arith.divf %202, %203 : vector<2x32xf32>
    %205 = vector.extract_strided_slice %196 {offsets = [0, 32], sizes = [2, 32], strides = [1, 1]} : vector<2x96xf32> to vector<2x32xf32>
    %206 = vector.extract_strided_slice %191 {offsets = [0, 32], sizes = [2, 32], strides = [1, 1]} : vector<2x96xf32> to vector<2x32xf32>
    %207 = arith.addf %205, %206 : vector<2x32xf32>
    %208 = arith.negf %207 : vector<2x32xf32>
    %209 = math.exp %208 : vector<2x32xf32>
    %cst_71 = arith.constant 1.000000e+00 : f32
    %210 = vector.broadcast %cst_71 : f32 to vector<2x32xf32>
    %211 = arith.addf %210, %209 : vector<2x32xf32>
    %212 = arith.divf %210, %211 : vector<2x32xf32>
    %213 = vector.extract_strided_slice %196 {offsets = [0, 64], sizes = [2, 32], strides = [1, 1]} : vector<2x96xf32> to vector<2x32xf32>
    %214 = vector.extract_strided_slice %191 {offsets = [0, 64], sizes = [2, 32], strides = [1, 1]} : vector<2x96xf32> to vector<2x32xf32>
    %215 = arith.mulf %204, %214 : vector<2x32xf32>
    %216 = arith.addf %213, %215 : vector<2x32xf32>
    %217 = math.tanh %216 : vector<2x32xf32>
    %cst_72 = arith.constant 1.000000e+00 : f32
    %218 = vector.broadcast %cst_72 : f32 to vector<2x32xf32>
    %219 = arith.subf %218, %212 : vector<2x32xf32>
    %220 = arith.mulf %219, %217 : vector<2x32xf32>
    %221 = arith.mulf %212, %188 : vector<2x32xf32>
    %222 = arith.addf %220, %221 : vector<2x32xf32>
    %c2_i32_73 = arith.constant 2 : i32
    %223 = vector.broadcast %c2_i32_73 : i32 to vector<2x8x32xi32>
    %224 = arith.cmpi eq, %19, %223 : vector<2x8x32xi32>
    %225 = vector.shape_cast %222 : vector<2x32xf32> to vector<2x1x32xf32>
    %226 = vector.shape_cast %225 : vector<2x1x32xf32> to vector<2x1x32xf32>
    %227 = vector.broadcast %226 : vector<2x1x32xf32> to vector<2x8x32xf32>
    %228 = arith.select %224, %227, %159 : vector<2x8x32xi1>, vector<2x8x32xf32>
    %c2_i32_74 = arith.constant 2 : i32
    %229 = vector.broadcast %c2_i32_74 : i32 to vector<2x8xi32>
    %230 = arith.cmpi eq, %18, %229 : vector<2x8xi32>
    %231 = vector.broadcast %32 : vector<1x32xf32> to vector<2x32xf32>
    %232 = arith.mulf %222, %231 : vector<2x32xf32>
    %cst_75 = arith.constant dense<0.000000e+00> : vector<2xf32>
    %233 = vector.multi_reduction <add>, %232, %cst_75 [1] : vector<2x32xf32> to vector<2xf32>
    %234 = vector.shape_cast %233 : vector<2xf32> to vector<2x1xf32>
    %235 = vector.shape_cast %234 : vector<2x1xf32> to vector<2x1xf32>
    %236 = vector.broadcast %235 : vector<2x1xf32> to vector<2x8xf32>
    %237 = arith.select %230, %236, %168 : vector<2x8xi1>, vector<2x8xf32>
    %c3_i32 = arith.constant 3 : i32
    %238 = vector.broadcast %c3_i32 : i32 to vector<2x8x8xi32>
    %239 = arith.cmpi eq, %9, %238 : vector<2x8x8xi32>
    %cst_76 = arith.constant 0.000000e+00 : f32
    %240 = vector.broadcast %cst_76 : f32 to vector<2x8x8xf32>
    %241 = arith.select %239, %47, %240 : vector<2x8x8xi1>, vector<2x8x8xf32>
    %cst_77 = arith.constant dense<0.000000e+00> : vector<2x8xf32>
    %242 = vector.multi_reduction <add>, %241, %cst_77 [1] : vector<2x8x8xf32> to vector<2x8xf32>
    %243 = arith.addf %237, %242 : vector<2x8xf32>
    %cst_78 = arith.constant dense<0xFF800000> : vector<2xf32>
    %244 = vector.multi_reduction <maximumf>, %243, %cst_78 [1] : vector<2x8xf32> to vector<2xf32>
    %245 = vector.shape_cast %244 : vector<2xf32> to vector<2x1xf32>
    %246 = vector.broadcast %245 : vector<2x1xf32> to vector<2x8xf32>
    %247 = arith.subf %243, %246 : vector<2x8xf32>
    %248 = math.exp %247 : vector<2x8xf32>
    %cst_79 = arith.constant dense<0.000000e+00> : vector<2xf32>
    %249 = vector.multi_reduction <add>, %248, %cst_79 [1] : vector<2x8xf32> to vector<2xf32>
    %250 = vector.shape_cast %249 : vector<2xf32> to vector<2x1xf32>
    %251 = tpu.reciprocal %250 {approx = true} : vector<2x1xf32> -> vector<2x1xf32>
    %252 = vector.broadcast %251 : vector<2x1xf32> to vector<2x8xf32>
    %253 = arith.mulf %248, %252 : vector<2x8xf32>
    %254 = vector.shape_cast %253 : vector<2x8xf32> to vector<2x8x1xf32>
    %255 = vector.broadcast %254 : vector<2x8x1xf32> to vector<2x8x32xf32>
    %256 = arith.mulf %255, %228 : vector<2x8x32xf32>
    %cst_80 = arith.constant dense<0.000000e+00> : vector<2x32xf32>
    %257 = vector.multi_reduction <add>, %256, %cst_80 [1] : vector<2x8x32xf32> to vector<2x32xf32>
    %cst_81 = arith.constant dense<0.000000e+00> : vector<2x96xf32>
    %258 = tpu.matmul %257, %24, %cst_81 {dimension_numbers = #tpu.dot_dimension_numbers<[1], [0], [0], [1], [0, 0, 1, 1], [], []>} : vector<2x32xf32>, vector<32x96xf32>, vector<2x96xf32> -> vector<2x96xf32>
    %259 = vector.broadcast %28 : vector<1x96xf32> to vector<2x96xf32>
    %260 = arith.addf %258, %259 : vector<2x96xf32>
    %c3_i32_82 = arith.constant 3 : i32
    %261 = vector.broadcast %c3_i32_82 : i32 to vector<2x8x96xi32>
    %262 = arith.cmpi eq, %20, %261 : vector<2x8x96xi32>
    %cst_83 = arith.constant 0.000000e+00 : f32
    %263 = vector.broadcast %cst_83 : f32 to vector<2x8x96xf32>
    %264 = arith.select %262, %38, %263 : vector<2x8x96xi1>, vector<2x8x96xf32>
    %cst_84 = arith.constant dense<0.000000e+00> : vector<2x96xf32>
    %265 = vector.multi_reduction <add>, %264, %cst_84 [1] : vector<2x8x96xf32> to vector<2x96xf32>
    %266 = vector.extract_strided_slice %265 {offsets = [0, 0], sizes = [2, 32], strides = [1, 1]} : vector<2x96xf32> to vector<2x32xf32>
    %267 = vector.extract_strided_slice %260 {offsets = [0, 0], sizes = [2, 32], strides = [1, 1]} : vector<2x96xf32> to vector<2x32xf32>
    %268 = arith.addf %266, %267 : vector<2x32xf32>
    %269 = arith.negf %268 : vector<2x32xf32>
    %270 = math.exp %269 : vector<2x32xf32>
    %cst_85 = arith.constant 1.000000e+00 : f32
    %271 = vector.broadcast %cst_85 : f32 to vector<2x32xf32>
    %272 = arith.addf %271, %270 : vector<2x32xf32>
    %273 = arith.divf %271, %272 : vector<2x32xf32>
    %274 = vector.extract_strided_slice %265 {offsets = [0, 32], sizes = [2, 32], strides = [1, 1]} : vector<2x96xf32> to vector<2x32xf32>
    %275 = vector.extract_strided_slice %260 {offsets = [0, 32], sizes = [2, 32], strides = [1, 1]} : vector<2x96xf32> to vector<2x32xf32>
    %276 = arith.addf %274, %275 : vector<2x32xf32>
    %277 = arith.negf %276 : vector<2x32xf32>
    %278 = math.exp %277 : vector<2x32xf32>
    %cst_86 = arith.constant 1.000000e+00 : f32
    %279 = vector.broadcast %cst_86 : f32 to vector<2x32xf32>
    %280 = arith.addf %279, %278 : vector<2x32xf32>
    %281 = arith.divf %279, %280 : vector<2x32xf32>
    %282 = vector.extract_strided_slice %265 {offsets = [0, 64], sizes = [2, 32], strides = [1, 1]} : vector<2x96xf32> to vector<2x32xf32>
    %283 = vector.extract_strided_slice %260 {offsets = [0, 64], sizes = [2, 32], strides = [1, 1]} : vector<2x96xf32> to vector<2x32xf32>
    %284 = arith.mulf %273, %283 : vector<2x32xf32>
    %285 = arith.addf %282, %284 : vector<2x32xf32>
    %286 = math.tanh %285 : vector<2x32xf32>
    %cst_87 = arith.constant 1.000000e+00 : f32
    %287 = vector.broadcast %cst_87 : f32 to vector<2x32xf32>
    %288 = arith.subf %287, %281 : vector<2x32xf32>
    %289 = arith.mulf %288, %286 : vector<2x32xf32>
    %290 = arith.mulf %281, %257 : vector<2x32xf32>
    %291 = arith.addf %289, %290 : vector<2x32xf32>
    %c3_i32_88 = arith.constant 3 : i32
    %292 = vector.broadcast %c3_i32_88 : i32 to vector<2x8x32xi32>
    %293 = arith.cmpi eq, %19, %292 : vector<2x8x32xi32>
    %294 = vector.shape_cast %291 : vector<2x32xf32> to vector<2x1x32xf32>
    %295 = vector.shape_cast %294 : vector<2x1x32xf32> to vector<2x1x32xf32>
    %296 = vector.broadcast %295 : vector<2x1x32xf32> to vector<2x8x32xf32>
    %297 = arith.select %293, %296, %228 : vector<2x8x32xi1>, vector<2x8x32xf32>
    %c3_i32_89 = arith.constant 3 : i32
    %298 = vector.broadcast %c3_i32_89 : i32 to vector<2x8xi32>
    %299 = arith.cmpi eq, %18, %298 : vector<2x8xi32>
    %300 = vector.broadcast %32 : vector<1x32xf32> to vector<2x32xf32>
    %301 = arith.mulf %291, %300 : vector<2x32xf32>
    %cst_90 = arith.constant dense<0.000000e+00> : vector<2xf32>
    %302 = vector.multi_reduction <add>, %301, %cst_90 [1] : vector<2x32xf32> to vector<2xf32>
    %303 = vector.shape_cast %302 : vector<2xf32> to vector<2x1xf32>
    %304 = vector.shape_cast %303 : vector<2x1xf32> to vector<2x1xf32>
    %305 = vector.broadcast %304 : vector<2x1xf32> to vector<2x8xf32>
    %306 = arith.select %299, %305, %237 : vector<2x8xi1>, vector<2x8xf32>
    %c4_i32 = arith.constant 4 : i32
    %307 = vector.broadcast %c4_i32 : i32 to vector<2x8x8xi32>
    %308 = arith.cmpi eq, %9, %307 : vector<2x8x8xi32>
    %cst_91 = arith.constant 0.000000e+00 : f32
    %309 = vector.broadcast %cst_91 : f32 to vector<2x8x8xf32>
    %310 = arith.select %308, %47, %309 : vector<2x8x8xi1>, vector<2x8x8xf32>
    %cst_92 = arith.constant dense<0.000000e+00> : vector<2x8xf32>
    %311 = vector.multi_reduction <add>, %310, %cst_92 [1] : vector<2x8x8xf32> to vector<2x8xf32>
    %312 = arith.addf %306, %311 : vector<2x8xf32>
    %cst_93 = arith.constant dense<0xFF800000> : vector<2xf32>
    %313 = vector.multi_reduction <maximumf>, %312, %cst_93 [1] : vector<2x8xf32> to vector<2xf32>
    %314 = vector.shape_cast %313 : vector<2xf32> to vector<2x1xf32>
    %315 = vector.broadcast %314 : vector<2x1xf32> to vector<2x8xf32>
    %316 = arith.subf %312, %315 : vector<2x8xf32>
    %317 = math.exp %316 : vector<2x8xf32>
    %cst_94 = arith.constant dense<0.000000e+00> : vector<2xf32>
    %318 = vector.multi_reduction <add>, %317, %cst_94 [1] : vector<2x8xf32> to vector<2xf32>
    %319 = vector.shape_cast %318 : vector<2xf32> to vector<2x1xf32>
    %320 = tpu.reciprocal %319 {approx = true} : vector<2x1xf32> -> vector<2x1xf32>
    %321 = vector.broadcast %320 : vector<2x1xf32> to vector<2x8xf32>
    %322 = arith.mulf %317, %321 : vector<2x8xf32>
    %323 = vector.shape_cast %322 : vector<2x8xf32> to vector<2x8x1xf32>
    %324 = vector.broadcast %323 : vector<2x8x1xf32> to vector<2x8x32xf32>
    %325 = arith.mulf %324, %297 : vector<2x8x32xf32>
    %cst_95 = arith.constant dense<0.000000e+00> : vector<2x32xf32>
    %326 = vector.multi_reduction <add>, %325, %cst_95 [1] : vector<2x8x32xf32> to vector<2x32xf32>
    %cst_96 = arith.constant dense<0.000000e+00> : vector<2x96xf32>
    %327 = tpu.matmul %326, %24, %cst_96 {dimension_numbers = #tpu.dot_dimension_numbers<[1], [0], [0], [1], [0, 0, 1, 1], [], []>} : vector<2x32xf32>, vector<32x96xf32>, vector<2x96xf32> -> vector<2x96xf32>
    %328 = vector.broadcast %28 : vector<1x96xf32> to vector<2x96xf32>
    %329 = arith.addf %327, %328 : vector<2x96xf32>
    %c4_i32_97 = arith.constant 4 : i32
    %330 = vector.broadcast %c4_i32_97 : i32 to vector<2x8x96xi32>
    %331 = arith.cmpi eq, %20, %330 : vector<2x8x96xi32>
    %cst_98 = arith.constant 0.000000e+00 : f32
    %332 = vector.broadcast %cst_98 : f32 to vector<2x8x96xf32>
    %333 = arith.select %331, %38, %332 : vector<2x8x96xi1>, vector<2x8x96xf32>
    %cst_99 = arith.constant dense<0.000000e+00> : vector<2x96xf32>
    %334 = vector.multi_reduction <add>, %333, %cst_99 [1] : vector<2x8x96xf32> to vector<2x96xf32>
    %335 = vector.extract_strided_slice %334 {offsets = [0, 0], sizes = [2, 32], strides = [1, 1]} : vector<2x96xf32> to vector<2x32xf32>
    %336 = vector.extract_strided_slice %329 {offsets = [0, 0], sizes = [2, 32], strides = [1, 1]} : vector<2x96xf32> to vector<2x32xf32>
    %337 = arith.addf %335, %336 : vector<2x32xf32>
    %338 = arith.negf %337 : vector<2x32xf32>
    %339 = math.exp %338 : vector<2x32xf32>
    %cst_100 = arith.constant 1.000000e+00 : f32
    %340 = vector.broadcast %cst_100 : f32 to vector<2x32xf32>
    %341 = arith.addf %340, %339 : vector<2x32xf32>
    %342 = arith.divf %340, %341 : vector<2x32xf32>
    %343 = vector.extract_strided_slice %334 {offsets = [0, 32], sizes = [2, 32], strides = [1, 1]} : vector<2x96xf32> to vector<2x32xf32>
    %344 = vector.extract_strided_slice %329 {offsets = [0, 32], sizes = [2, 32], strides = [1, 1]} : vector<2x96xf32> to vector<2x32xf32>
    %345 = arith.addf %343, %344 : vector<2x32xf32>
    %346 = arith.negf %345 : vector<2x32xf32>
    %347 = math.exp %346 : vector<2x32xf32>
    %cst_101 = arith.constant 1.000000e+00 : f32
    %348 = vector.broadcast %cst_101 : f32 to vector<2x32xf32>
    %349 = arith.addf %348, %347 : vector<2x32xf32>
    %350 = arith.divf %348, %349 : vector<2x32xf32>
    %351 = vector.extract_strided_slice %334 {offsets = [0, 64], sizes = [2, 32], strides = [1, 1]} : vector<2x96xf32> to vector<2x32xf32>
    %352 = vector.extract_strided_slice %329 {offsets = [0, 64], sizes = [2, 32], strides = [1, 1]} : vector<2x96xf32> to vector<2x32xf32>
    %353 = arith.mulf %342, %352 : vector<2x32xf32>
    %354 = arith.addf %351, %353 : vector<2x32xf32>
    %355 = math.tanh %354 : vector<2x32xf32>
    %cst_102 = arith.constant 1.000000e+00 : f32
    %356 = vector.broadcast %cst_102 : f32 to vector<2x32xf32>
    %357 = arith.subf %356, %350 : vector<2x32xf32>
    %358 = arith.mulf %357, %355 : vector<2x32xf32>
    %359 = arith.mulf %350, %326 : vector<2x32xf32>
    %360 = arith.addf %358, %359 : vector<2x32xf32>
    %c4_i32_103 = arith.constant 4 : i32
    %361 = vector.broadcast %c4_i32_103 : i32 to vector<2x8x32xi32>
    %362 = arith.cmpi eq, %19, %361 : vector<2x8x32xi32>
    %363 = vector.shape_cast %360 : vector<2x32xf32> to vector<2x1x32xf32>
    %364 = vector.shape_cast %363 : vector<2x1x32xf32> to vector<2x1x32xf32>
    %365 = vector.broadcast %364 : vector<2x1x32xf32> to vector<2x8x32xf32>
    %366 = arith.select %362, %365, %297 : vector<2x8x32xi1>, vector<2x8x32xf32>
    %c4_i32_104 = arith.constant 4 : i32
    %367 = vector.broadcast %c4_i32_104 : i32 to vector<2x8xi32>
    %368 = arith.cmpi eq, %18, %367 : vector<2x8xi32>
    %369 = vector.broadcast %32 : vector<1x32xf32> to vector<2x32xf32>
    %370 = arith.mulf %360, %369 : vector<2x32xf32>
    %cst_105 = arith.constant dense<0.000000e+00> : vector<2xf32>
    %371 = vector.multi_reduction <add>, %370, %cst_105 [1] : vector<2x32xf32> to vector<2xf32>
    %372 = vector.shape_cast %371 : vector<2xf32> to vector<2x1xf32>
    %373 = vector.shape_cast %372 : vector<2x1xf32> to vector<2x1xf32>
    %374 = vector.broadcast %373 : vector<2x1xf32> to vector<2x8xf32>
    %375 = arith.select %368, %374, %306 : vector<2x8xi1>, vector<2x8xf32>
    %c5_i32 = arith.constant 5 : i32
    %376 = vector.broadcast %c5_i32 : i32 to vector<2x8x8xi32>
    %377 = arith.cmpi eq, %9, %376 : vector<2x8x8xi32>
    %cst_106 = arith.constant 0.000000e+00 : f32
    %378 = vector.broadcast %cst_106 : f32 to vector<2x8x8xf32>
    %379 = arith.select %377, %47, %378 : vector<2x8x8xi1>, vector<2x8x8xf32>
    %cst_107 = arith.constant dense<0.000000e+00> : vector<2x8xf32>
    %380 = vector.multi_reduction <add>, %379, %cst_107 [1] : vector<2x8x8xf32> to vector<2x8xf32>
    %381 = arith.addf %375, %380 : vector<2x8xf32>
    %cst_108 = arith.constant dense<0xFF800000> : vector<2xf32>
    %382 = vector.multi_reduction <maximumf>, %381, %cst_108 [1] : vector<2x8xf32> to vector<2xf32>
    %383 = vector.shape_cast %382 : vector<2xf32> to vector<2x1xf32>
    %384 = vector.broadcast %383 : vector<2x1xf32> to vector<2x8xf32>
    %385 = arith.subf %381, %384 : vector<2x8xf32>
    %386 = math.exp %385 : vector<2x8xf32>
    %cst_109 = arith.constant dense<0.000000e+00> : vector<2xf32>
    %387 = vector.multi_reduction <add>, %386, %cst_109 [1] : vector<2x8xf32> to vector<2xf32>
    %388 = vector.shape_cast %387 : vector<2xf32> to vector<2x1xf32>
    %389 = tpu.reciprocal %388 {approx = true} : vector<2x1xf32> -> vector<2x1xf32>
    %390 = vector.broadcast %389 : vector<2x1xf32> to vector<2x8xf32>
    %391 = arith.mulf %386, %390 : vector<2x8xf32>
    %392 = vector.shape_cast %391 : vector<2x8xf32> to vector<2x8x1xf32>
    %393 = vector.broadcast %392 : vector<2x8x1xf32> to vector<2x8x32xf32>
    %394 = arith.mulf %393, %366 : vector<2x8x32xf32>
    %cst_110 = arith.constant dense<0.000000e+00> : vector<2x32xf32>
    %395 = vector.multi_reduction <add>, %394, %cst_110 [1] : vector<2x8x32xf32> to vector<2x32xf32>
    %cst_111 = arith.constant dense<0.000000e+00> : vector<2x96xf32>
    %396 = tpu.matmul %395, %24, %cst_111 {dimension_numbers = #tpu.dot_dimension_numbers<[1], [0], [0], [1], [0, 0, 1, 1], [], []>} : vector<2x32xf32>, vector<32x96xf32>, vector<2x96xf32> -> vector<2x96xf32>
    %397 = vector.broadcast %28 : vector<1x96xf32> to vector<2x96xf32>
    %398 = arith.addf %396, %397 : vector<2x96xf32>
    %c5_i32_112 = arith.constant 5 : i32
    %399 = vector.broadcast %c5_i32_112 : i32 to vector<2x8x96xi32>
    %400 = arith.cmpi eq, %20, %399 : vector<2x8x96xi32>
    %cst_113 = arith.constant 0.000000e+00 : f32
    %401 = vector.broadcast %cst_113 : f32 to vector<2x8x96xf32>
    %402 = arith.select %400, %38, %401 : vector<2x8x96xi1>, vector<2x8x96xf32>
    %cst_114 = arith.constant dense<0.000000e+00> : vector<2x96xf32>
    %403 = vector.multi_reduction <add>, %402, %cst_114 [1] : vector<2x8x96xf32> to vector<2x96xf32>
    %404 = vector.extract_strided_slice %403 {offsets = [0, 0], sizes = [2, 32], strides = [1, 1]} : vector<2x96xf32> to vector<2x32xf32>
    %405 = vector.extract_strided_slice %398 {offsets = [0, 0], sizes = [2, 32], strides = [1, 1]} : vector<2x96xf32> to vector<2x32xf32>
    %406 = arith.addf %404, %405 : vector<2x32xf32>
    %407 = arith.negf %406 : vector<2x32xf32>
    %408 = math.exp %407 : vector<2x32xf32>
    %cst_115 = arith.constant 1.000000e+00 : f32
    %409 = vector.broadcast %cst_115 : f32 to vector<2x32xf32>
    %410 = arith.addf %409, %408 : vector<2x32xf32>
    %411 = arith.divf %409, %410 : vector<2x32xf32>
    %412 = vector.extract_strided_slice %403 {offsets = [0, 32], sizes = [2, 32], strides = [1, 1]} : vector<2x96xf32> to vector<2x32xf32>
    %413 = vector.extract_strided_slice %398 {offsets = [0, 32], sizes = [2, 32], strides = [1, 1]} : vector<2x96xf32> to vector<2x32xf32>
    %414 = arith.addf %412, %413 : vector<2x32xf32>
    %415 = arith.negf %414 : vector<2x32xf32>
    %416 = math.exp %415 : vector<2x32xf32>
    %cst_116 = arith.constant 1.000000e+00 : f32
    %417 = vector.broadcast %cst_116 : f32 to vector<2x32xf32>
    %418 = arith.addf %417, %416 : vector<2x32xf32>
    %419 = arith.divf %417, %418 : vector<2x32xf32>
    %420 = vector.extract_strided_slice %403 {offsets = [0, 64], sizes = [2, 32], strides = [1, 1]} : vector<2x96xf32> to vector<2x32xf32>
    %421 = vector.extract_strided_slice %398 {offsets = [0, 64], sizes = [2, 32], strides = [1, 1]} : vector<2x96xf32> to vector<2x32xf32>
    %422 = arith.mulf %411, %421 : vector<2x32xf32>
    %423 = arith.addf %420, %422 : vector<2x32xf32>
    %424 = math.tanh %423 : vector<2x32xf32>
    %cst_117 = arith.constant 1.000000e+00 : f32
    %425 = vector.broadcast %cst_117 : f32 to vector<2x32xf32>
    %426 = arith.subf %425, %419 : vector<2x32xf32>
    %427 = arith.mulf %426, %424 : vector<2x32xf32>
    %428 = arith.mulf %419, %395 : vector<2x32xf32>
    %429 = arith.addf %427, %428 : vector<2x32xf32>
    %c5_i32_118 = arith.constant 5 : i32
    %430 = vector.broadcast %c5_i32_118 : i32 to vector<2x8x32xi32>
    %431 = arith.cmpi eq, %19, %430 : vector<2x8x32xi32>
    %432 = vector.shape_cast %429 : vector<2x32xf32> to vector<2x1x32xf32>
    %433 = vector.shape_cast %432 : vector<2x1x32xf32> to vector<2x1x32xf32>
    %434 = vector.broadcast %433 : vector<2x1x32xf32> to vector<2x8x32xf32>
    %435 = arith.select %431, %434, %366 : vector<2x8x32xi1>, vector<2x8x32xf32>
    %c5_i32_119 = arith.constant 5 : i32
    %436 = vector.broadcast %c5_i32_119 : i32 to vector<2x8xi32>
    %437 = arith.cmpi eq, %18, %436 : vector<2x8xi32>
    %438 = vector.broadcast %32 : vector<1x32xf32> to vector<2x32xf32>
    %439 = arith.mulf %429, %438 : vector<2x32xf32>
    %cst_120 = arith.constant dense<0.000000e+00> : vector<2xf32>
    %440 = vector.multi_reduction <add>, %439, %cst_120 [1] : vector<2x32xf32> to vector<2xf32>
    %441 = vector.shape_cast %440 : vector<2xf32> to vector<2x1xf32>
    %442 = vector.shape_cast %441 : vector<2x1xf32> to vector<2x1xf32>
    %443 = vector.broadcast %442 : vector<2x1xf32> to vector<2x8xf32>
    %444 = arith.select %437, %443, %375 : vector<2x8xi1>, vector<2x8xf32>
    %c6_i32 = arith.constant 6 : i32
    %445 = vector.broadcast %c6_i32 : i32 to vector<2x8x8xi32>
    %446 = arith.cmpi eq, %9, %445 : vector<2x8x8xi32>
    %cst_121 = arith.constant 0.000000e+00 : f32
    %447 = vector.broadcast %cst_121 : f32 to vector<2x8x8xf32>
    %448 = arith.select %446, %47, %447 : vector<2x8x8xi1>, vector<2x8x8xf32>
    %cst_122 = arith.constant dense<0.000000e+00> : vector<2x8xf32>
    %449 = vector.multi_reduction <add>, %448, %cst_122 [1] : vector<2x8x8xf32> to vector<2x8xf32>
    %450 = arith.addf %444, %449 : vector<2x8xf32>
    %cst_123 = arith.constant dense<0xFF800000> : vector<2xf32>
    %451 = vector.multi_reduction <maximumf>, %450, %cst_123 [1] : vector<2x8xf32> to vector<2xf32>
    %452 = vector.shape_cast %451 : vector<2xf32> to vector<2x1xf32>
    %453 = vector.broadcast %452 : vector<2x1xf32> to vector<2x8xf32>
    %454 = arith.subf %450, %453 : vector<2x8xf32>
    %455 = math.exp %454 : vector<2x8xf32>
    %cst_124 = arith.constant dense<0.000000e+00> : vector<2xf32>
    %456 = vector.multi_reduction <add>, %455, %cst_124 [1] : vector<2x8xf32> to vector<2xf32>
    %457 = vector.shape_cast %456 : vector<2xf32> to vector<2x1xf32>
    %458 = tpu.reciprocal %457 {approx = true} : vector<2x1xf32> -> vector<2x1xf32>
    %459 = vector.broadcast %458 : vector<2x1xf32> to vector<2x8xf32>
    %460 = arith.mulf %455, %459 : vector<2x8xf32>
    %461 = vector.shape_cast %460 : vector<2x8xf32> to vector<2x8x1xf32>
    %462 = vector.broadcast %461 : vector<2x8x1xf32> to vector<2x8x32xf32>
    %463 = arith.mulf %462, %435 : vector<2x8x32xf32>
    %cst_125 = arith.constant dense<0.000000e+00> : vector<2x32xf32>
    %464 = vector.multi_reduction <add>, %463, %cst_125 [1] : vector<2x8x32xf32> to vector<2x32xf32>
    %cst_126 = arith.constant dense<0.000000e+00> : vector<2x96xf32>
    %465 = tpu.matmul %464, %24, %cst_126 {dimension_numbers = #tpu.dot_dimension_numbers<[1], [0], [0], [1], [0, 0, 1, 1], [], []>} : vector<2x32xf32>, vector<32x96xf32>, vector<2x96xf32> -> vector<2x96xf32>
    %466 = vector.broadcast %28 : vector<1x96xf32> to vector<2x96xf32>
    %467 = arith.addf %465, %466 : vector<2x96xf32>
    %c6_i32_127 = arith.constant 6 : i32
    %468 = vector.broadcast %c6_i32_127 : i32 to vector<2x8x96xi32>
    %469 = arith.cmpi eq, %20, %468 : vector<2x8x96xi32>
    %cst_128 = arith.constant 0.000000e+00 : f32
    %470 = vector.broadcast %cst_128 : f32 to vector<2x8x96xf32>
    %471 = arith.select %469, %38, %470 : vector<2x8x96xi1>, vector<2x8x96xf32>
    %cst_129 = arith.constant dense<0.000000e+00> : vector<2x96xf32>
    %472 = vector.multi_reduction <add>, %471, %cst_129 [1] : vector<2x8x96xf32> to vector<2x96xf32>
    %473 = vector.extract_strided_slice %472 {offsets = [0, 0], sizes = [2, 32], strides = [1, 1]} : vector<2x96xf32> to vector<2x32xf32>
    %474 = vector.extract_strided_slice %467 {offsets = [0, 0], sizes = [2, 32], strides = [1, 1]} : vector<2x96xf32> to vector<2x32xf32>
    %475 = arith.addf %473, %474 : vector<2x32xf32>
    %476 = arith.negf %475 : vector<2x32xf32>
    %477 = math.exp %476 : vector<2x32xf32>
    %cst_130 = arith.constant 1.000000e+00 : f32
    %478 = vector.broadcast %cst_130 : f32 to vector<2x32xf32>
    %479 = arith.addf %478, %477 : vector<2x32xf32>
    %480 = arith.divf %478, %479 : vector<2x32xf32>
    %481 = vector.extract_strided_slice %472 {offsets = [0, 32], sizes = [2, 32], strides = [1, 1]} : vector<2x96xf32> to vector<2x32xf32>
    %482 = vector.extract_strided_slice %467 {offsets = [0, 32], sizes = [2, 32], strides = [1, 1]} : vector<2x96xf32> to vector<2x32xf32>
    %483 = arith.addf %481, %482 : vector<2x32xf32>
    %484 = arith.negf %483 : vector<2x32xf32>
    %485 = math.exp %484 : vector<2x32xf32>
    %cst_131 = arith.constant 1.000000e+00 : f32
    %486 = vector.broadcast %cst_131 : f32 to vector<2x32xf32>
    %487 = arith.addf %486, %485 : vector<2x32xf32>
    %488 = arith.divf %486, %487 : vector<2x32xf32>
    %489 = vector.extract_strided_slice %472 {offsets = [0, 64], sizes = [2, 32], strides = [1, 1]} : vector<2x96xf32> to vector<2x32xf32>
    %490 = vector.extract_strided_slice %467 {offsets = [0, 64], sizes = [2, 32], strides = [1, 1]} : vector<2x96xf32> to vector<2x32xf32>
    %491 = arith.mulf %480, %490 : vector<2x32xf32>
    %492 = arith.addf %489, %491 : vector<2x32xf32>
    %493 = math.tanh %492 : vector<2x32xf32>
    %cst_132 = arith.constant 1.000000e+00 : f32
    %494 = vector.broadcast %cst_132 : f32 to vector<2x32xf32>
    %495 = arith.subf %494, %488 : vector<2x32xf32>
    %496 = arith.mulf %495, %493 : vector<2x32xf32>
    %497 = arith.mulf %488, %464 : vector<2x32xf32>
    %498 = arith.addf %496, %497 : vector<2x32xf32>
    %c6_i32_133 = arith.constant 6 : i32
    %499 = vector.broadcast %c6_i32_133 : i32 to vector<2x8x32xi32>
    %500 = arith.cmpi eq, %19, %499 : vector<2x8x32xi32>
    %501 = vector.shape_cast %498 : vector<2x32xf32> to vector<2x1x32xf32>
    %502 = vector.shape_cast %501 : vector<2x1x32xf32> to vector<2x1x32xf32>
    %503 = vector.broadcast %502 : vector<2x1x32xf32> to vector<2x8x32xf32>
    %504 = arith.select %500, %503, %435 : vector<2x8x32xi1>, vector<2x8x32xf32>
    %c6_i32_134 = arith.constant 6 : i32
    %505 = vector.broadcast %c6_i32_134 : i32 to vector<2x8xi32>
    %506 = arith.cmpi eq, %18, %505 : vector<2x8xi32>
    %507 = vector.broadcast %32 : vector<1x32xf32> to vector<2x32xf32>
    %508 = arith.mulf %498, %507 : vector<2x32xf32>
    %cst_135 = arith.constant dense<0.000000e+00> : vector<2xf32>
    %509 = vector.multi_reduction <add>, %508, %cst_135 [1] : vector<2x32xf32> to vector<2xf32>
    %510 = vector.shape_cast %509 : vector<2xf32> to vector<2x1xf32>
    %511 = vector.shape_cast %510 : vector<2x1xf32> to vector<2x1xf32>
    %512 = vector.broadcast %511 : vector<2x1xf32> to vector<2x8xf32>
    %513 = arith.select %506, %512, %444 : vector<2x8xi1>, vector<2x8xf32>
    %c7_i32 = arith.constant 7 : i32
    %514 = vector.broadcast %c7_i32 : i32 to vector<2x8x8xi32>
    %515 = arith.cmpi eq, %9, %514 : vector<2x8x8xi32>
    %cst_136 = arith.constant 0.000000e+00 : f32
    %516 = vector.broadcast %cst_136 : f32 to vector<2x8x8xf32>
    %517 = arith.select %515, %47, %516 : vector<2x8x8xi1>, vector<2x8x8xf32>
    %cst_137 = arith.constant dense<0.000000e+00> : vector<2x8xf32>
    %518 = vector.multi_reduction <add>, %517, %cst_137 [1] : vector<2x8x8xf32> to vector<2x8xf32>
    %519 = arith.addf %513, %518 : vector<2x8xf32>
    %cst_138 = arith.constant dense<0xFF800000> : vector<2xf32>
    %520 = vector.multi_reduction <maximumf>, %519, %cst_138 [1] : vector<2x8xf32> to vector<2xf32>
    %521 = vector.shape_cast %520 : vector<2xf32> to vector<2x1xf32>
    %522 = vector.broadcast %521 : vector<2x1xf32> to vector<2x8xf32>
    %523 = arith.subf %519, %522 : vector<2x8xf32>
    %524 = math.exp %523 : vector<2x8xf32>
    %cst_139 = arith.constant dense<0.000000e+00> : vector<2xf32>
    %525 = vector.multi_reduction <add>, %524, %cst_139 [1] : vector<2x8xf32> to vector<2xf32>
    %526 = vector.shape_cast %525 : vector<2xf32> to vector<2x1xf32>
    %527 = tpu.reciprocal %526 {approx = true} : vector<2x1xf32> -> vector<2x1xf32>
    %528 = vector.broadcast %527 : vector<2x1xf32> to vector<2x8xf32>
    %529 = arith.mulf %524, %528 : vector<2x8xf32>
    %530 = vector.shape_cast %529 : vector<2x8xf32> to vector<2x8x1xf32>
    %531 = vector.broadcast %530 : vector<2x8x1xf32> to vector<2x8x32xf32>
    %532 = arith.mulf %531, %504 : vector<2x8x32xf32>
    %cst_140 = arith.constant dense<0.000000e+00> : vector<2x32xf32>
    %533 = vector.multi_reduction <add>, %532, %cst_140 [1] : vector<2x8x32xf32> to vector<2x32xf32>
    %cst_141 = arith.constant dense<0.000000e+00> : vector<2x96xf32>
    %534 = tpu.matmul %533, %24, %cst_141 {dimension_numbers = #tpu.dot_dimension_numbers<[1], [0], [0], [1], [0, 0, 1, 1], [], []>} : vector<2x32xf32>, vector<32x96xf32>, vector<2x96xf32> -> vector<2x96xf32>
    %535 = vector.broadcast %28 : vector<1x96xf32> to vector<2x96xf32>
    %536 = arith.addf %534, %535 : vector<2x96xf32>
    %c7_i32_142 = arith.constant 7 : i32
    %537 = vector.broadcast %c7_i32_142 : i32 to vector<2x8x96xi32>
    %538 = arith.cmpi eq, %20, %537 : vector<2x8x96xi32>
    %cst_143 = arith.constant 0.000000e+00 : f32
    %539 = vector.broadcast %cst_143 : f32 to vector<2x8x96xf32>
    %540 = arith.select %538, %38, %539 : vector<2x8x96xi1>, vector<2x8x96xf32>
    %cst_144 = arith.constant dense<0.000000e+00> : vector<2x96xf32>
    %541 = vector.multi_reduction <add>, %540, %cst_144 [1] : vector<2x8x96xf32> to vector<2x96xf32>
    %542 = vector.extract_strided_slice %541 {offsets = [0, 0], sizes = [2, 32], strides = [1, 1]} : vector<2x96xf32> to vector<2x32xf32>
    %543 = vector.extract_strided_slice %536 {offsets = [0, 0], sizes = [2, 32], strides = [1, 1]} : vector<2x96xf32> to vector<2x32xf32>
    %544 = arith.addf %542, %543 : vector<2x32xf32>
    %545 = arith.negf %544 : vector<2x32xf32>
    %546 = math.exp %545 : vector<2x32xf32>
    %cst_145 = arith.constant 1.000000e+00 : f32
    %547 = vector.broadcast %cst_145 : f32 to vector<2x32xf32>
    %548 = arith.addf %547, %546 : vector<2x32xf32>
    %549 = arith.divf %547, %548 : vector<2x32xf32>
    %550 = vector.extract_strided_slice %541 {offsets = [0, 32], sizes = [2, 32], strides = [1, 1]} : vector<2x96xf32> to vector<2x32xf32>
    %551 = vector.extract_strided_slice %536 {offsets = [0, 32], sizes = [2, 32], strides = [1, 1]} : vector<2x96xf32> to vector<2x32xf32>
    %552 = arith.addf %550, %551 : vector<2x32xf32>
    %553 = arith.negf %552 : vector<2x32xf32>
    %554 = math.exp %553 : vector<2x32xf32>
    %cst_146 = arith.constant 1.000000e+00 : f32
    %555 = vector.broadcast %cst_146 : f32 to vector<2x32xf32>
    %556 = arith.addf %555, %554 : vector<2x32xf32>
    %557 = arith.divf %555, %556 : vector<2x32xf32>
    %558 = vector.extract_strided_slice %541 {offsets = [0, 64], sizes = [2, 32], strides = [1, 1]} : vector<2x96xf32> to vector<2x32xf32>
    %559 = vector.extract_strided_slice %536 {offsets = [0, 64], sizes = [2, 32], strides = [1, 1]} : vector<2x96xf32> to vector<2x32xf32>
    %560 = arith.mulf %549, %559 : vector<2x32xf32>
    %561 = arith.addf %558, %560 : vector<2x32xf32>
    %562 = math.tanh %561 : vector<2x32xf32>
    %cst_147 = arith.constant 1.000000e+00 : f32
    %563 = vector.broadcast %cst_147 : f32 to vector<2x32xf32>
    %564 = arith.subf %563, %557 : vector<2x32xf32>
    %565 = arith.mulf %564, %562 : vector<2x32xf32>
    %566 = arith.mulf %557, %533 : vector<2x32xf32>
    %567 = arith.addf %565, %566 : vector<2x32xf32>
    %c7_i32_148 = arith.constant 7 : i32
    %568 = vector.broadcast %c7_i32_148 : i32 to vector<2x8x32xi32>
    %569 = arith.cmpi eq, %19, %568 : vector<2x8x32xi32>
    %570 = vector.shape_cast %567 : vector<2x32xf32> to vector<2x1x32xf32>
    %571 = vector.shape_cast %570 : vector<2x1x32xf32> to vector<2x1x32xf32>
    %572 = vector.broadcast %571 : vector<2x1x32xf32> to vector<2x8x32xf32>
    %573 = arith.select %569, %572, %504 : vector<2x8x32xi1>, vector<2x8x32xf32>
    %574 = vector.shape_cast %573 : vector<2x8x32xf32> to vector<16x32xf32>
    %c1 = arith.constant 1 : index
    %c0_149 = arith.constant 0 : index
    %c0_150 = arith.constant 0 : index
    %575 = vector.load %arg4[%c1, %c0_149, %c0_150] : memref<2x32x96xf32, #tpu.memory_space<vmem>>, vector<1x32x96xf32>
    %576 = vector.shape_cast %575 : vector<1x32x96xf32> to vector<32x96xf32>
    %c1_151 = arith.constant 1 : index
    %c0_152 = arith.constant 0 : index
    %c0_153 = arith.constant 0 : index
    %577 = vector.load %arg5[%c1_151, %c0_152, %c0_153] : memref<2x32x96xf32, #tpu.memory_space<vmem>>, vector<1x32x96xf32>
    %578 = vector.shape_cast %577 : vector<1x32x96xf32> to vector<32x96xf32>
    %c1_154 = arith.constant 1 : index
    %c0_155 = arith.constant 0 : index
    %c0_156 = arith.constant 0 : index
    %579 = vector.load %arg6[%c1_154, %c0_155, %c0_156] : memref<2x1x96xf32, #tpu.memory_space<vmem>>, vector<1x1x96xf32>
    %580 = vector.shape_cast %579 : vector<1x1x96xf32> to vector<1x96xf32>
    %c1_157 = arith.constant 1 : index
    %c0_158 = arith.constant 0 : index
    %c0_159 = arith.constant 0 : index
    %581 = vector.load %arg7[%c1_157, %c0_158, %c0_159] : memref<2x1x96xf32, #tpu.memory_space<vmem>>, vector<1x1x96xf32>
    %582 = vector.shape_cast %581 : vector<1x1x96xf32> to vector<1x96xf32>
    %c1_160 = arith.constant 1 : index
    %c0_161 = arith.constant 0 : index
    %c0_162 = arith.constant 0 : index
    %583 = vector.load %arg8[%c1_160, %c0_161, %c0_162] : memref<2x1x32xf32, #tpu.memory_space<vmem>>, vector<1x1x32xf32>
    %584 = vector.shape_cast %583 : vector<1x1x32xf32> to vector<1x32xf32>
    %c1_163 = arith.constant 1 : index
    %c0_164 = arith.constant 0 : index
    %c0_165 = arith.constant 0 : index
    %585 = vector.load %arg9[%c1_163, %c0_164, %c0_165] : memref<2x1x32xf32, #tpu.memory_space<vmem>>, vector<1x1x32xf32>
    %586 = vector.shape_cast %585 : vector<1x1x32xf32> to vector<1x32xf32>
    %c1_166 = arith.constant 1 : index
    %c0_167 = arith.constant 0 : index
    %c0_168 = arith.constant 0 : index
    %587 = vector.load %arg10[%c1_166, %c0_167, %c0_168] : memref<2x1x1xf32, #tpu.memory_space<vmem>>, vector<1x1x1xf32>
    %588 = vector.shape_cast %587 : vector<1x1x1xf32> to vector<1x1xf32>
    %cst_169 = arith.constant dense<0.000000e+00> : vector<16x96xf32>
    %589 = tpu.matmul %574, %576, %cst_169 {dimension_numbers = #tpu.dot_dimension_numbers<[1], [0], [0], [1], [0, 0, 1, 1], [], []>} : vector<16x32xf32>, vector<32x96xf32>, vector<16x96xf32> -> vector<16x96xf32>
    %590 = vector.broadcast %580 : vector<1x96xf32> to vector<16x96xf32>
    %591 = arith.addf %589, %590 : vector<16x96xf32>
    %592 = vector.shape_cast %591 : vector<16x96xf32> to vector<2x8x96xf32>
    %593 = vector.broadcast %584 : vector<1x32xf32> to vector<16x32xf32>
    %594 = arith.mulf %574, %593 : vector<16x32xf32>
    %cst_170 = arith.constant dense<0.000000e+00> : vector<16xf32>
    %595 = vector.multi_reduction <add>, %594, %cst_170 [1] : vector<16x32xf32> to vector<16xf32>
    %596 = vector.shape_cast %595 : vector<16xf32> to vector<16x1xf32>
    %597 = vector.broadcast %588 : vector<1x1xf32> to vector<16x1xf32>
    %598 = arith.addf %596, %597 : vector<16x1xf32>
    %599 = vector.shape_cast %598 : vector<16x1xf32> to vector<2x8x1xf32>
    %600 = vector.broadcast %599 : vector<2x8x1xf32> to vector<2x8x8xf32>
    %601 = arith.addf %600, %17 : vector<2x8x8xf32>
    %c0_i32_171 = arith.constant 0 : i32
    %602 = vector.broadcast %c0_i32_171 : i32 to vector<2x8x96xi32>
    %603 = arith.cmpi eq, %20, %602 : vector<2x8x96xi32>
    %cst_172 = arith.constant 0.000000e+00 : f32
    %604 = vector.broadcast %cst_172 : f32 to vector<2x8x96xf32>
    %605 = arith.select %603, %592, %604 : vector<2x8x96xi1>, vector<2x8x96xf32>
    %cst_173 = arith.constant dense<0.000000e+00> : vector<2x96xf32>
    %606 = vector.multi_reduction <add>, %605, %cst_173 [1] : vector<2x8x96xf32> to vector<2x96xf32>
    %cst_174 = arith.constant 0.000000e+00 : f32
    %607 = vector.broadcast %cst_174 : f32 to vector<2x32xf32>
    %608 = vector.extract_strided_slice %606 {offsets = [0, 0], sizes = [2, 32], strides = [1, 1]} : vector<2x96xf32> to vector<2x32xf32>
    %609 = vector.extract_strided_slice %582 {offsets = [0, 0], sizes = [1, 32], strides = [1, 1]} : vector<1x96xf32> to vector<1x32xf32>
    %610 = vector.broadcast %609 : vector<1x32xf32> to vector<2x32xf32>
    %611 = arith.addf %608, %610 : vector<2x32xf32>
    %612 = arith.negf %611 : vector<2x32xf32>
    %613 = math.exp %612 : vector<2x32xf32>
    %cst_175 = arith.constant 1.000000e+00 : f32
    %614 = vector.broadcast %cst_175 : f32 to vector<2x32xf32>
    %615 = arith.addf %614, %613 : vector<2x32xf32>
    %616 = arith.divf %614, %615 : vector<2x32xf32>
    %617 = vector.extract_strided_slice %606 {offsets = [0, 32], sizes = [2, 32], strides = [1, 1]} : vector<2x96xf32> to vector<2x32xf32>
    %618 = vector.extract_strided_slice %582 {offsets = [0, 32], sizes = [1, 32], strides = [1, 1]} : vector<1x96xf32> to vector<1x32xf32>
    %619 = vector.broadcast %618 : vector<1x32xf32> to vector<2x32xf32>
    %620 = arith.addf %617, %619 : vector<2x32xf32>
    %621 = arith.negf %620 : vector<2x32xf32>
    %622 = math.exp %621 : vector<2x32xf32>
    %cst_176 = arith.constant 1.000000e+00 : f32
    %623 = vector.broadcast %cst_176 : f32 to vector<2x32xf32>
    %624 = arith.addf %623, %622 : vector<2x32xf32>
    %625 = arith.divf %623, %624 : vector<2x32xf32>
    %626 = vector.extract_strided_slice %606 {offsets = [0, 64], sizes = [2, 32], strides = [1, 1]} : vector<2x96xf32> to vector<2x32xf32>
    %627 = vector.extract_strided_slice %582 {offsets = [0, 64], sizes = [1, 32], strides = [1, 1]} : vector<1x96xf32> to vector<1x32xf32>
    %628 = vector.broadcast %627 : vector<1x32xf32> to vector<2x32xf32>
    %629 = arith.mulf %616, %628 : vector<2x32xf32>
    %630 = arith.addf %626, %629 : vector<2x32xf32>
    %631 = math.tanh %630 : vector<2x32xf32>
    %cst_177 = arith.constant 1.000000e+00 : f32
    %632 = vector.broadcast %cst_177 : f32 to vector<2x32xf32>
    %633 = arith.subf %632, %625 : vector<2x32xf32>
    %634 = arith.mulf %633, %631 : vector<2x32xf32>
    %635 = arith.mulf %625, %607 : vector<2x32xf32>
    %636 = arith.addf %634, %635 : vector<2x32xf32>
    %c0_i32_178 = arith.constant 0 : i32
    %637 = vector.broadcast %c0_i32_178 : i32 to vector<2x8x32xi32>
    %638 = arith.cmpi eq, %19, %637 : vector<2x8x32xi32>
    %639 = vector.shape_cast %636 : vector<2x32xf32> to vector<2x1x32xf32>
    %cst_179 = arith.constant 0.000000e+00 : f32
    %640 = vector.broadcast %cst_179 : f32 to vector<2x8x32xf32>
    %641 = vector.shape_cast %639 : vector<2x1x32xf32> to vector<2x1x32xf32>
    %642 = vector.broadcast %641 : vector<2x1x32xf32> to vector<2x8x32xf32>
    %643 = arith.select %638, %642, %640 : vector<2x8x32xi1>, vector<2x8x32xf32>
    %c0_i32_180 = arith.constant 0 : i32
    %644 = vector.broadcast %c0_i32_180 : i32 to vector<2x8xi32>
    %645 = arith.cmpi eq, %18, %644 : vector<2x8xi32>
    %646 = vector.broadcast %586 : vector<1x32xf32> to vector<2x32xf32>
    %647 = arith.mulf %636, %646 : vector<2x32xf32>
    %cst_181 = arith.constant dense<0.000000e+00> : vector<2xf32>
    %648 = vector.multi_reduction <add>, %647, %cst_181 [1] : vector<2x32xf32> to vector<2xf32>
    %649 = vector.shape_cast %648 : vector<2xf32> to vector<2x1xf32>
    %cst_182 = arith.constant 0.000000e+00 : f32
    %650 = vector.broadcast %cst_182 : f32 to vector<2x8xf32>
    %651 = vector.shape_cast %649 : vector<2x1xf32> to vector<2x1xf32>
    %652 = vector.broadcast %651 : vector<2x1xf32> to vector<2x8xf32>
    %653 = arith.select %645, %652, %650 : vector<2x8xi1>, vector<2x8xf32>
    %c1_i32_183 = arith.constant 1 : i32
    %654 = vector.broadcast %c1_i32_183 : i32 to vector<2x8x8xi32>
    %655 = arith.cmpi eq, %9, %654 : vector<2x8x8xi32>
    %cst_184 = arith.constant 0.000000e+00 : f32
    %656 = vector.broadcast %cst_184 : f32 to vector<2x8x8xf32>
    %657 = arith.select %655, %601, %656 : vector<2x8x8xi1>, vector<2x8x8xf32>
    %cst_185 = arith.constant dense<0.000000e+00> : vector<2x8xf32>
    %658 = vector.multi_reduction <add>, %657, %cst_185 [1] : vector<2x8x8xf32> to vector<2x8xf32>
    %659 = arith.addf %653, %658 : vector<2x8xf32>
    %cst_186 = arith.constant dense<0xFF800000> : vector<2xf32>
    %660 = vector.multi_reduction <maximumf>, %659, %cst_186 [1] : vector<2x8xf32> to vector<2xf32>
    %661 = vector.shape_cast %660 : vector<2xf32> to vector<2x1xf32>
    %662 = vector.broadcast %661 : vector<2x1xf32> to vector<2x8xf32>
    %663 = arith.subf %659, %662 : vector<2x8xf32>
    %664 = math.exp %663 : vector<2x8xf32>
    %cst_187 = arith.constant dense<0.000000e+00> : vector<2xf32>
    %665 = vector.multi_reduction <add>, %664, %cst_187 [1] : vector<2x8xf32> to vector<2xf32>
    %666 = vector.shape_cast %665 : vector<2xf32> to vector<2x1xf32>
    %667 = tpu.reciprocal %666 {approx = true} : vector<2x1xf32> -> vector<2x1xf32>
    %668 = vector.broadcast %667 : vector<2x1xf32> to vector<2x8xf32>
    %669 = arith.mulf %664, %668 : vector<2x8xf32>
    %670 = vector.shape_cast %669 : vector<2x8xf32> to vector<2x8x1xf32>
    %671 = vector.broadcast %670 : vector<2x8x1xf32> to vector<2x8x32xf32>
    %672 = arith.mulf %671, %643 : vector<2x8x32xf32>
    %cst_188 = arith.constant dense<0.000000e+00> : vector<2x32xf32>
    %673 = vector.multi_reduction <add>, %672, %cst_188 [1] : vector<2x8x32xf32> to vector<2x32xf32>
    %cst_189 = arith.constant dense<0.000000e+00> : vector<2x96xf32>
    %674 = tpu.matmul %673, %578, %cst_189 {dimension_numbers = #tpu.dot_dimension_numbers<[1], [0], [0], [1], [0, 0, 1, 1], [], []>} : vector<2x32xf32>, vector<32x96xf32>, vector<2x96xf32> -> vector<2x96xf32>
    %675 = vector.broadcast %582 : vector<1x96xf32> to vector<2x96xf32>
    %676 = arith.addf %674, %675 : vector<2x96xf32>
    %c1_i32_190 = arith.constant 1 : i32
    %677 = vector.broadcast %c1_i32_190 : i32 to vector<2x8x96xi32>
    %678 = arith.cmpi eq, %20, %677 : vector<2x8x96xi32>
    %cst_191 = arith.constant 0.000000e+00 : f32
    %679 = vector.broadcast %cst_191 : f32 to vector<2x8x96xf32>
    %680 = arith.select %678, %592, %679 : vector<2x8x96xi1>, vector<2x8x96xf32>
    %cst_192 = arith.constant dense<0.000000e+00> : vector<2x96xf32>
    %681 = vector.multi_reduction <add>, %680, %cst_192 [1] : vector<2x8x96xf32> to vector<2x96xf32>
    %682 = vector.extract_strided_slice %681 {offsets = [0, 0], sizes = [2, 32], strides = [1, 1]} : vector<2x96xf32> to vector<2x32xf32>
    %683 = vector.extract_strided_slice %676 {offsets = [0, 0], sizes = [2, 32], strides = [1, 1]} : vector<2x96xf32> to vector<2x32xf32>
    %684 = arith.addf %682, %683 : vector<2x32xf32>
    %685 = arith.negf %684 : vector<2x32xf32>
    %686 = math.exp %685 : vector<2x32xf32>
    %cst_193 = arith.constant 1.000000e+00 : f32
    %687 = vector.broadcast %cst_193 : f32 to vector<2x32xf32>
    %688 = arith.addf %687, %686 : vector<2x32xf32>
    %689 = arith.divf %687, %688 : vector<2x32xf32>
    %690 = vector.extract_strided_slice %681 {offsets = [0, 32], sizes = [2, 32], strides = [1, 1]} : vector<2x96xf32> to vector<2x32xf32>
    %691 = vector.extract_strided_slice %676 {offsets = [0, 32], sizes = [2, 32], strides = [1, 1]} : vector<2x96xf32> to vector<2x32xf32>
    %692 = arith.addf %690, %691 : vector<2x32xf32>
    %693 = arith.negf %692 : vector<2x32xf32>
    %694 = math.exp %693 : vector<2x32xf32>
    %cst_194 = arith.constant 1.000000e+00 : f32
    %695 = vector.broadcast %cst_194 : f32 to vector<2x32xf32>
    %696 = arith.addf %695, %694 : vector<2x32xf32>
    %697 = arith.divf %695, %696 : vector<2x32xf32>
    %698 = vector.extract_strided_slice %681 {offsets = [0, 64], sizes = [2, 32], strides = [1, 1]} : vector<2x96xf32> to vector<2x32xf32>
    %699 = vector.extract_strided_slice %676 {offsets = [0, 64], sizes = [2, 32], strides = [1, 1]} : vector<2x96xf32> to vector<2x32xf32>
    %700 = arith.mulf %689, %699 : vector<2x32xf32>
    %701 = arith.addf %698, %700 : vector<2x32xf32>
    %702 = math.tanh %701 : vector<2x32xf32>
    %cst_195 = arith.constant 1.000000e+00 : f32
    %703 = vector.broadcast %cst_195 : f32 to vector<2x32xf32>
    %704 = arith.subf %703, %697 : vector<2x32xf32>
    %705 = arith.mulf %704, %702 : vector<2x32xf32>
    %706 = arith.mulf %697, %673 : vector<2x32xf32>
    %707 = arith.addf %705, %706 : vector<2x32xf32>
    %c1_i32_196 = arith.constant 1 : i32
    %708 = vector.broadcast %c1_i32_196 : i32 to vector<2x8x32xi32>
    %709 = arith.cmpi eq, %19, %708 : vector<2x8x32xi32>
    %710 = vector.shape_cast %707 : vector<2x32xf32> to vector<2x1x32xf32>
    %711 = vector.shape_cast %710 : vector<2x1x32xf32> to vector<2x1x32xf32>
    %712 = vector.broadcast %711 : vector<2x1x32xf32> to vector<2x8x32xf32>
    %713 = arith.select %709, %712, %643 : vector<2x8x32xi1>, vector<2x8x32xf32>
    %c1_i32_197 = arith.constant 1 : i32
    %714 = vector.broadcast %c1_i32_197 : i32 to vector<2x8xi32>
    %715 = arith.cmpi eq, %18, %714 : vector<2x8xi32>
    %716 = vector.broadcast %586 : vector<1x32xf32> to vector<2x32xf32>
    %717 = arith.mulf %707, %716 : vector<2x32xf32>
    %cst_198 = arith.constant dense<0.000000e+00> : vector<2xf32>
    %718 = vector.multi_reduction <add>, %717, %cst_198 [1] : vector<2x32xf32> to vector<2xf32>
    %719 = vector.shape_cast %718 : vector<2xf32> to vector<2x1xf32>
    %720 = vector.shape_cast %719 : vector<2x1xf32> to vector<2x1xf32>
    %721 = vector.broadcast %720 : vector<2x1xf32> to vector<2x8xf32>
    %722 = arith.select %715, %721, %653 : vector<2x8xi1>, vector<2x8xf32>
    %c2_i32_199 = arith.constant 2 : i32
    %723 = vector.broadcast %c2_i32_199 : i32 to vector<2x8x8xi32>
    %724 = arith.cmpi eq, %9, %723 : vector<2x8x8xi32>
    %cst_200 = arith.constant 0.000000e+00 : f32
    %725 = vector.broadcast %cst_200 : f32 to vector<2x8x8xf32>
    %726 = arith.select %724, %601, %725 : vector<2x8x8xi1>, vector<2x8x8xf32>
    %cst_201 = arith.constant dense<0.000000e+00> : vector<2x8xf32>
    %727 = vector.multi_reduction <add>, %726, %cst_201 [1] : vector<2x8x8xf32> to vector<2x8xf32>
    %728 = arith.addf %722, %727 : vector<2x8xf32>
    %cst_202 = arith.constant dense<0xFF800000> : vector<2xf32>
    %729 = vector.multi_reduction <maximumf>, %728, %cst_202 [1] : vector<2x8xf32> to vector<2xf32>
    %730 = vector.shape_cast %729 : vector<2xf32> to vector<2x1xf32>
    %731 = vector.broadcast %730 : vector<2x1xf32> to vector<2x8xf32>
    %732 = arith.subf %728, %731 : vector<2x8xf32>
    %733 = math.exp %732 : vector<2x8xf32>
    %cst_203 = arith.constant dense<0.000000e+00> : vector<2xf32>
    %734 = vector.multi_reduction <add>, %733, %cst_203 [1] : vector<2x8xf32> to vector<2xf32>
    %735 = vector.shape_cast %734 : vector<2xf32> to vector<2x1xf32>
    %736 = tpu.reciprocal %735 {approx = true} : vector<2x1xf32> -> vector<2x1xf32>
    %737 = vector.broadcast %736 : vector<2x1xf32> to vector<2x8xf32>
    %738 = arith.mulf %733, %737 : vector<2x8xf32>
    %739 = vector.shape_cast %738 : vector<2x8xf32> to vector<2x8x1xf32>
    %740 = vector.broadcast %739 : vector<2x8x1xf32> to vector<2x8x32xf32>
    %741 = arith.mulf %740, %713 : vector<2x8x32xf32>
    %cst_204 = arith.constant dense<0.000000e+00> : vector<2x32xf32>
    %742 = vector.multi_reduction <add>, %741, %cst_204 [1] : vector<2x8x32xf32> to vector<2x32xf32>
    %cst_205 = arith.constant dense<0.000000e+00> : vector<2x96xf32>
    %743 = tpu.matmul %742, %578, %cst_205 {dimension_numbers = #tpu.dot_dimension_numbers<[1], [0], [0], [1], [0, 0, 1, 1], [], []>} : vector<2x32xf32>, vector<32x96xf32>, vector<2x96xf32> -> vector<2x96xf32>
    %744 = vector.broadcast %582 : vector<1x96xf32> to vector<2x96xf32>
    %745 = arith.addf %743, %744 : vector<2x96xf32>
    %c2_i32_206 = arith.constant 2 : i32
    %746 = vector.broadcast %c2_i32_206 : i32 to vector<2x8x96xi32>
    %747 = arith.cmpi eq, %20, %746 : vector<2x8x96xi32>
    %cst_207 = arith.constant 0.000000e+00 : f32
    %748 = vector.broadcast %cst_207 : f32 to vector<2x8x96xf32>
    %749 = arith.select %747, %592, %748 : vector<2x8x96xi1>, vector<2x8x96xf32>
    %cst_208 = arith.constant dense<0.000000e+00> : vector<2x96xf32>
    %750 = vector.multi_reduction <add>, %749, %cst_208 [1] : vector<2x8x96xf32> to vector<2x96xf32>
    %751 = vector.extract_strided_slice %750 {offsets = [0, 0], sizes = [2, 32], strides = [1, 1]} : vector<2x96xf32> to vector<2x32xf32>
    %752 = vector.extract_strided_slice %745 {offsets = [0, 0], sizes = [2, 32], strides = [1, 1]} : vector<2x96xf32> to vector<2x32xf32>
    %753 = arith.addf %751, %752 : vector<2x32xf32>
    %754 = arith.negf %753 : vector<2x32xf32>
    %755 = math.exp %754 : vector<2x32xf32>
    %cst_209 = arith.constant 1.000000e+00 : f32
    %756 = vector.broadcast %cst_209 : f32 to vector<2x32xf32>
    %757 = arith.addf %756, %755 : vector<2x32xf32>
    %758 = arith.divf %756, %757 : vector<2x32xf32>
    %759 = vector.extract_strided_slice %750 {offsets = [0, 32], sizes = [2, 32], strides = [1, 1]} : vector<2x96xf32> to vector<2x32xf32>
    %760 = vector.extract_strided_slice %745 {offsets = [0, 32], sizes = [2, 32], strides = [1, 1]} : vector<2x96xf32> to vector<2x32xf32>
    %761 = arith.addf %759, %760 : vector<2x32xf32>
    %762 = arith.negf %761 : vector<2x32xf32>
    %763 = math.exp %762 : vector<2x32xf32>
    %cst_210 = arith.constant 1.000000e+00 : f32
    %764 = vector.broadcast %cst_210 : f32 to vector<2x32xf32>
    %765 = arith.addf %764, %763 : vector<2x32xf32>
    %766 = arith.divf %764, %765 : vector<2x32xf32>
    %767 = vector.extract_strided_slice %750 {offsets = [0, 64], sizes = [2, 32], strides = [1, 1]} : vector<2x96xf32> to vector<2x32xf32>
    %768 = vector.extract_strided_slice %745 {offsets = [0, 64], sizes = [2, 32], strides = [1, 1]} : vector<2x96xf32> to vector<2x32xf32>
    %769 = arith.mulf %758, %768 : vector<2x32xf32>
    %770 = arith.addf %767, %769 : vector<2x32xf32>
    %771 = math.tanh %770 : vector<2x32xf32>
    %cst_211 = arith.constant 1.000000e+00 : f32
    %772 = vector.broadcast %cst_211 : f32 to vector<2x32xf32>
    %773 = arith.subf %772, %766 : vector<2x32xf32>
    %774 = arith.mulf %773, %771 : vector<2x32xf32>
    %775 = arith.mulf %766, %742 : vector<2x32xf32>
    %776 = arith.addf %774, %775 : vector<2x32xf32>
    %c2_i32_212 = arith.constant 2 : i32
    %777 = vector.broadcast %c2_i32_212 : i32 to vector<2x8x32xi32>
    %778 = arith.cmpi eq, %19, %777 : vector<2x8x32xi32>
    %779 = vector.shape_cast %776 : vector<2x32xf32> to vector<2x1x32xf32>
    %780 = vector.shape_cast %779 : vector<2x1x32xf32> to vector<2x1x32xf32>
    %781 = vector.broadcast %780 : vector<2x1x32xf32> to vector<2x8x32xf32>
    %782 = arith.select %778, %781, %713 : vector<2x8x32xi1>, vector<2x8x32xf32>
    %c2_i32_213 = arith.constant 2 : i32
    %783 = vector.broadcast %c2_i32_213 : i32 to vector<2x8xi32>
    %784 = arith.cmpi eq, %18, %783 : vector<2x8xi32>
    %785 = vector.broadcast %586 : vector<1x32xf32> to vector<2x32xf32>
    %786 = arith.mulf %776, %785 : vector<2x32xf32>
    %cst_214 = arith.constant dense<0.000000e+00> : vector<2xf32>
    %787 = vector.multi_reduction <add>, %786, %cst_214 [1] : vector<2x32xf32> to vector<2xf32>
    %788 = vector.shape_cast %787 : vector<2xf32> to vector<2x1xf32>
    %789 = vector.shape_cast %788 : vector<2x1xf32> to vector<2x1xf32>
    %790 = vector.broadcast %789 : vector<2x1xf32> to vector<2x8xf32>
    %791 = arith.select %784, %790, %722 : vector<2x8xi1>, vector<2x8xf32>
    %c3_i32_215 = arith.constant 3 : i32
    %792 = vector.broadcast %c3_i32_215 : i32 to vector<2x8x8xi32>
    %793 = arith.cmpi eq, %9, %792 : vector<2x8x8xi32>
    %cst_216 = arith.constant 0.000000e+00 : f32
    %794 = vector.broadcast %cst_216 : f32 to vector<2x8x8xf32>
    %795 = arith.select %793, %601, %794 : vector<2x8x8xi1>, vector<2x8x8xf32>
    %cst_217 = arith.constant dense<0.000000e+00> : vector<2x8xf32>
    %796 = vector.multi_reduction <add>, %795, %cst_217 [1] : vector<2x8x8xf32> to vector<2x8xf32>
    %797 = arith.addf %791, %796 : vector<2x8xf32>
    %cst_218 = arith.constant dense<0xFF800000> : vector<2xf32>
    %798 = vector.multi_reduction <maximumf>, %797, %cst_218 [1] : vector<2x8xf32> to vector<2xf32>
    %799 = vector.shape_cast %798 : vector<2xf32> to vector<2x1xf32>
    %800 = vector.broadcast %799 : vector<2x1xf32> to vector<2x8xf32>
    %801 = arith.subf %797, %800 : vector<2x8xf32>
    %802 = math.exp %801 : vector<2x8xf32>
    %cst_219 = arith.constant dense<0.000000e+00> : vector<2xf32>
    %803 = vector.multi_reduction <add>, %802, %cst_219 [1] : vector<2x8xf32> to vector<2xf32>
    %804 = vector.shape_cast %803 : vector<2xf32> to vector<2x1xf32>
    %805 = tpu.reciprocal %804 {approx = true} : vector<2x1xf32> -> vector<2x1xf32>
    %806 = vector.broadcast %805 : vector<2x1xf32> to vector<2x8xf32>
    %807 = arith.mulf %802, %806 : vector<2x8xf32>
    %808 = vector.shape_cast %807 : vector<2x8xf32> to vector<2x8x1xf32>
    %809 = vector.broadcast %808 : vector<2x8x1xf32> to vector<2x8x32xf32>
    %810 = arith.mulf %809, %782 : vector<2x8x32xf32>
    %cst_220 = arith.constant dense<0.000000e+00> : vector<2x32xf32>
    %811 = vector.multi_reduction <add>, %810, %cst_220 [1] : vector<2x8x32xf32> to vector<2x32xf32>
    %cst_221 = arith.constant dense<0.000000e+00> : vector<2x96xf32>
    %812 = tpu.matmul %811, %578, %cst_221 {dimension_numbers = #tpu.dot_dimension_numbers<[1], [0], [0], [1], [0, 0, 1, 1], [], []>} : vector<2x32xf32>, vector<32x96xf32>, vector<2x96xf32> -> vector<2x96xf32>
    %813 = vector.broadcast %582 : vector<1x96xf32> to vector<2x96xf32>
    %814 = arith.addf %812, %813 : vector<2x96xf32>
    %c3_i32_222 = arith.constant 3 : i32
    %815 = vector.broadcast %c3_i32_222 : i32 to vector<2x8x96xi32>
    %816 = arith.cmpi eq, %20, %815 : vector<2x8x96xi32>
    %cst_223 = arith.constant 0.000000e+00 : f32
    %817 = vector.broadcast %cst_223 : f32 to vector<2x8x96xf32>
    %818 = arith.select %816, %592, %817 : vector<2x8x96xi1>, vector<2x8x96xf32>
    %cst_224 = arith.constant dense<0.000000e+00> : vector<2x96xf32>
    %819 = vector.multi_reduction <add>, %818, %cst_224 [1] : vector<2x8x96xf32> to vector<2x96xf32>
    %820 = vector.extract_strided_slice %819 {offsets = [0, 0], sizes = [2, 32], strides = [1, 1]} : vector<2x96xf32> to vector<2x32xf32>
    %821 = vector.extract_strided_slice %814 {offsets = [0, 0], sizes = [2, 32], strides = [1, 1]} : vector<2x96xf32> to vector<2x32xf32>
    %822 = arith.addf %820, %821 : vector<2x32xf32>
    %823 = arith.negf %822 : vector<2x32xf32>
    %824 = math.exp %823 : vector<2x32xf32>
    %cst_225 = arith.constant 1.000000e+00 : f32
    %825 = vector.broadcast %cst_225 : f32 to vector<2x32xf32>
    %826 = arith.addf %825, %824 : vector<2x32xf32>
    %827 = arith.divf %825, %826 : vector<2x32xf32>
    %828 = vector.extract_strided_slice %819 {offsets = [0, 32], sizes = [2, 32], strides = [1, 1]} : vector<2x96xf32> to vector<2x32xf32>
    %829 = vector.extract_strided_slice %814 {offsets = [0, 32], sizes = [2, 32], strides = [1, 1]} : vector<2x96xf32> to vector<2x32xf32>
    %830 = arith.addf %828, %829 : vector<2x32xf32>
    %831 = arith.negf %830 : vector<2x32xf32>
    %832 = math.exp %831 : vector<2x32xf32>
    %cst_226 = arith.constant 1.000000e+00 : f32
    %833 = vector.broadcast %cst_226 : f32 to vector<2x32xf32>
    %834 = arith.addf %833, %832 : vector<2x32xf32>
    %835 = arith.divf %833, %834 : vector<2x32xf32>
    %836 = vector.extract_strided_slice %819 {offsets = [0, 64], sizes = [2, 32], strides = [1, 1]} : vector<2x96xf32> to vector<2x32xf32>
    %837 = vector.extract_strided_slice %814 {offsets = [0, 64], sizes = [2, 32], strides = [1, 1]} : vector<2x96xf32> to vector<2x32xf32>
    %838 = arith.mulf %827, %837 : vector<2x32xf32>
    %839 = arith.addf %836, %838 : vector<2x32xf32>
    %840 = math.tanh %839 : vector<2x32xf32>
    %cst_227 = arith.constant 1.000000e+00 : f32
    %841 = vector.broadcast %cst_227 : f32 to vector<2x32xf32>
    %842 = arith.subf %841, %835 : vector<2x32xf32>
    %843 = arith.mulf %842, %840 : vector<2x32xf32>
    %844 = arith.mulf %835, %811 : vector<2x32xf32>
    %845 = arith.addf %843, %844 : vector<2x32xf32>
    %c3_i32_228 = arith.constant 3 : i32
    %846 = vector.broadcast %c3_i32_228 : i32 to vector<2x8x32xi32>
    %847 = arith.cmpi eq, %19, %846 : vector<2x8x32xi32>
    %848 = vector.shape_cast %845 : vector<2x32xf32> to vector<2x1x32xf32>
    %849 = vector.shape_cast %848 : vector<2x1x32xf32> to vector<2x1x32xf32>
    %850 = vector.broadcast %849 : vector<2x1x32xf32> to vector<2x8x32xf32>
    %851 = arith.select %847, %850, %782 : vector<2x8x32xi1>, vector<2x8x32xf32>
    %c3_i32_229 = arith.constant 3 : i32
    %852 = vector.broadcast %c3_i32_229 : i32 to vector<2x8xi32>
    %853 = arith.cmpi eq, %18, %852 : vector<2x8xi32>
    %854 = vector.broadcast %586 : vector<1x32xf32> to vector<2x32xf32>
    %855 = arith.mulf %845, %854 : vector<2x32xf32>
    %cst_230 = arith.constant dense<0.000000e+00> : vector<2xf32>
    %856 = vector.multi_reduction <add>, %855, %cst_230 [1] : vector<2x32xf32> to vector<2xf32>
    %857 = vector.shape_cast %856 : vector<2xf32> to vector<2x1xf32>
    %858 = vector.shape_cast %857 : vector<2x1xf32> to vector<2x1xf32>
    %859 = vector.broadcast %858 : vector<2x1xf32> to vector<2x8xf32>
    %860 = arith.select %853, %859, %791 : vector<2x8xi1>, vector<2x8xf32>
    %c4_i32_231 = arith.constant 4 : i32
    %861 = vector.broadcast %c4_i32_231 : i32 to vector<2x8x8xi32>
    %862 = arith.cmpi eq, %9, %861 : vector<2x8x8xi32>
    %cst_232 = arith.constant 0.000000e+00 : f32
    %863 = vector.broadcast %cst_232 : f32 to vector<2x8x8xf32>
    %864 = arith.select %862, %601, %863 : vector<2x8x8xi1>, vector<2x8x8xf32>
    %cst_233 = arith.constant dense<0.000000e+00> : vector<2x8xf32>
    %865 = vector.multi_reduction <add>, %864, %cst_233 [1] : vector<2x8x8xf32> to vector<2x8xf32>
    %866 = arith.addf %860, %865 : vector<2x8xf32>
    %cst_234 = arith.constant dense<0xFF800000> : vector<2xf32>
    %867 = vector.multi_reduction <maximumf>, %866, %cst_234 [1] : vector<2x8xf32> to vector<2xf32>
    %868 = vector.shape_cast %867 : vector<2xf32> to vector<2x1xf32>
    %869 = vector.broadcast %868 : vector<2x1xf32> to vector<2x8xf32>
    %870 = arith.subf %866, %869 : vector<2x8xf32>
    %871 = math.exp %870 : vector<2x8xf32>
    %cst_235 = arith.constant dense<0.000000e+00> : vector<2xf32>
    %872 = vector.multi_reduction <add>, %871, %cst_235 [1] : vector<2x8xf32> to vector<2xf32>
    %873 = vector.shape_cast %872 : vector<2xf32> to vector<2x1xf32>
    %874 = tpu.reciprocal %873 {approx = true} : vector<2x1xf32> -> vector<2x1xf32>
    %875 = vector.broadcast %874 : vector<2x1xf32> to vector<2x8xf32>
    %876 = arith.mulf %871, %875 : vector<2x8xf32>
    %877 = vector.shape_cast %876 : vector<2x8xf32> to vector<2x8x1xf32>
    %878 = vector.broadcast %877 : vector<2x8x1xf32> to vector<2x8x32xf32>
    %879 = arith.mulf %878, %851 : vector<2x8x32xf32>
    %cst_236 = arith.constant dense<0.000000e+00> : vector<2x32xf32>
    %880 = vector.multi_reduction <add>, %879, %cst_236 [1] : vector<2x8x32xf32> to vector<2x32xf32>
    %cst_237 = arith.constant dense<0.000000e+00> : vector<2x96xf32>
    %881 = tpu.matmul %880, %578, %cst_237 {dimension_numbers = #tpu.dot_dimension_numbers<[1], [0], [0], [1], [0, 0, 1, 1], [], []>} : vector<2x32xf32>, vector<32x96xf32>, vector<2x96xf32> -> vector<2x96xf32>
    %882 = vector.broadcast %582 : vector<1x96xf32> to vector<2x96xf32>
    %883 = arith.addf %881, %882 : vector<2x96xf32>
    %c4_i32_238 = arith.constant 4 : i32
    %884 = vector.broadcast %c4_i32_238 : i32 to vector<2x8x96xi32>
    %885 = arith.cmpi eq, %20, %884 : vector<2x8x96xi32>
    %cst_239 = arith.constant 0.000000e+00 : f32
    %886 = vector.broadcast %cst_239 : f32 to vector<2x8x96xf32>
    %887 = arith.select %885, %592, %886 : vector<2x8x96xi1>, vector<2x8x96xf32>
    %cst_240 = arith.constant dense<0.000000e+00> : vector<2x96xf32>
    %888 = vector.multi_reduction <add>, %887, %cst_240 [1] : vector<2x8x96xf32> to vector<2x96xf32>
    %889 = vector.extract_strided_slice %888 {offsets = [0, 0], sizes = [2, 32], strides = [1, 1]} : vector<2x96xf32> to vector<2x32xf32>
    %890 = vector.extract_strided_slice %883 {offsets = [0, 0], sizes = [2, 32], strides = [1, 1]} : vector<2x96xf32> to vector<2x32xf32>
    %891 = arith.addf %889, %890 : vector<2x32xf32>
    %892 = arith.negf %891 : vector<2x32xf32>
    %893 = math.exp %892 : vector<2x32xf32>
    %cst_241 = arith.constant 1.000000e+00 : f32
    %894 = vector.broadcast %cst_241 : f32 to vector<2x32xf32>
    %895 = arith.addf %894, %893 : vector<2x32xf32>
    %896 = arith.divf %894, %895 : vector<2x32xf32>
    %897 = vector.extract_strided_slice %888 {offsets = [0, 32], sizes = [2, 32], strides = [1, 1]} : vector<2x96xf32> to vector<2x32xf32>
    %898 = vector.extract_strided_slice %883 {offsets = [0, 32], sizes = [2, 32], strides = [1, 1]} : vector<2x96xf32> to vector<2x32xf32>
    %899 = arith.addf %897, %898 : vector<2x32xf32>
    %900 = arith.negf %899 : vector<2x32xf32>
    %901 = math.exp %900 : vector<2x32xf32>
    %cst_242 = arith.constant 1.000000e+00 : f32
    %902 = vector.broadcast %cst_242 : f32 to vector<2x32xf32>
    %903 = arith.addf %902, %901 : vector<2x32xf32>
    %904 = arith.divf %902, %903 : vector<2x32xf32>
    %905 = vector.extract_strided_slice %888 {offsets = [0, 64], sizes = [2, 32], strides = [1, 1]} : vector<2x96xf32> to vector<2x32xf32>
    %906 = vector.extract_strided_slice %883 {offsets = [0, 64], sizes = [2, 32], strides = [1, 1]} : vector<2x96xf32> to vector<2x32xf32>
    %907 = arith.mulf %896, %906 : vector<2x32xf32>
    %908 = arith.addf %905, %907 : vector<2x32xf32>
    %909 = math.tanh %908 : vector<2x32xf32>
    %cst_243 = arith.constant 1.000000e+00 : f32
    %910 = vector.broadcast %cst_243 : f32 to vector<2x32xf32>
    %911 = arith.subf %910, %904 : vector<2x32xf32>
    %912 = arith.mulf %911, %909 : vector<2x32xf32>
    %913 = arith.mulf %904, %880 : vector<2x32xf32>
    %914 = arith.addf %912, %913 : vector<2x32xf32>
    %c4_i32_244 = arith.constant 4 : i32
    %915 = vector.broadcast %c4_i32_244 : i32 to vector<2x8x32xi32>
    %916 = arith.cmpi eq, %19, %915 : vector<2x8x32xi32>
    %917 = vector.shape_cast %914 : vector<2x32xf32> to vector<2x1x32xf32>
    %918 = vector.shape_cast %917 : vector<2x1x32xf32> to vector<2x1x32xf32>
    %919 = vector.broadcast %918 : vector<2x1x32xf32> to vector<2x8x32xf32>
    %920 = arith.select %916, %919, %851 : vector<2x8x32xi1>, vector<2x8x32xf32>
    %c4_i32_245 = arith.constant 4 : i32
    %921 = vector.broadcast %c4_i32_245 : i32 to vector<2x8xi32>
    %922 = arith.cmpi eq, %18, %921 : vector<2x8xi32>
    %923 = vector.broadcast %586 : vector<1x32xf32> to vector<2x32xf32>
    %924 = arith.mulf %914, %923 : vector<2x32xf32>
    %cst_246 = arith.constant dense<0.000000e+00> : vector<2xf32>
    %925 = vector.multi_reduction <add>, %924, %cst_246 [1] : vector<2x32xf32> to vector<2xf32>
    %926 = vector.shape_cast %925 : vector<2xf32> to vector<2x1xf32>
    %927 = vector.shape_cast %926 : vector<2x1xf32> to vector<2x1xf32>
    %928 = vector.broadcast %927 : vector<2x1xf32> to vector<2x8xf32>
    %929 = arith.select %922, %928, %860 : vector<2x8xi1>, vector<2x8xf32>
    %c5_i32_247 = arith.constant 5 : i32
    %930 = vector.broadcast %c5_i32_247 : i32 to vector<2x8x8xi32>
    %931 = arith.cmpi eq, %9, %930 : vector<2x8x8xi32>
    %cst_248 = arith.constant 0.000000e+00 : f32
    %932 = vector.broadcast %cst_248 : f32 to vector<2x8x8xf32>
    %933 = arith.select %931, %601, %932 : vector<2x8x8xi1>, vector<2x8x8xf32>
    %cst_249 = arith.constant dense<0.000000e+00> : vector<2x8xf32>
    %934 = vector.multi_reduction <add>, %933, %cst_249 [1] : vector<2x8x8xf32> to vector<2x8xf32>
    %935 = arith.addf %929, %934 : vector<2x8xf32>
    %cst_250 = arith.constant dense<0xFF800000> : vector<2xf32>
    %936 = vector.multi_reduction <maximumf>, %935, %cst_250 [1] : vector<2x8xf32> to vector<2xf32>
    %937 = vector.shape_cast %936 : vector<2xf32> to vector<2x1xf32>
    %938 = vector.broadcast %937 : vector<2x1xf32> to vector<2x8xf32>
    %939 = arith.subf %935, %938 : vector<2x8xf32>
    %940 = math.exp %939 : vector<2x8xf32>
    %cst_251 = arith.constant dense<0.000000e+00> : vector<2xf32>
    %941 = vector.multi_reduction <add>, %940, %cst_251 [1] : vector<2x8xf32> to vector<2xf32>
    %942 = vector.shape_cast %941 : vector<2xf32> to vector<2x1xf32>
    %943 = tpu.reciprocal %942 {approx = true} : vector<2x1xf32> -> vector<2x1xf32>
    %944 = vector.broadcast %943 : vector<2x1xf32> to vector<2x8xf32>
    %945 = arith.mulf %940, %944 : vector<2x8xf32>
    %946 = vector.shape_cast %945 : vector<2x8xf32> to vector<2x8x1xf32>
    %947 = vector.broadcast %946 : vector<2x8x1xf32> to vector<2x8x32xf32>
    %948 = arith.mulf %947, %920 : vector<2x8x32xf32>
    %cst_252 = arith.constant dense<0.000000e+00> : vector<2x32xf32>
    %949 = vector.multi_reduction <add>, %948, %cst_252 [1] : vector<2x8x32xf32> to vector<2x32xf32>
    %cst_253 = arith.constant dense<0.000000e+00> : vector<2x96xf32>
    %950 = tpu.matmul %949, %578, %cst_253 {dimension_numbers = #tpu.dot_dimension_numbers<[1], [0], [0], [1], [0, 0, 1, 1], [], []>} : vector<2x32xf32>, vector<32x96xf32>, vector<2x96xf32> -> vector<2x96xf32>
    %951 = vector.broadcast %582 : vector<1x96xf32> to vector<2x96xf32>
    %952 = arith.addf %950, %951 : vector<2x96xf32>
    %c5_i32_254 = arith.constant 5 : i32
    %953 = vector.broadcast %c5_i32_254 : i32 to vector<2x8x96xi32>
    %954 = arith.cmpi eq, %20, %953 : vector<2x8x96xi32>
    %cst_255 = arith.constant 0.000000e+00 : f32
    %955 = vector.broadcast %cst_255 : f32 to vector<2x8x96xf32>
    %956 = arith.select %954, %592, %955 : vector<2x8x96xi1>, vector<2x8x96xf32>
    %cst_256 = arith.constant dense<0.000000e+00> : vector<2x96xf32>
    %957 = vector.multi_reduction <add>, %956, %cst_256 [1] : vector<2x8x96xf32> to vector<2x96xf32>
    %958 = vector.extract_strided_slice %957 {offsets = [0, 0], sizes = [2, 32], strides = [1, 1]} : vector<2x96xf32> to vector<2x32xf32>
    %959 = vector.extract_strided_slice %952 {offsets = [0, 0], sizes = [2, 32], strides = [1, 1]} : vector<2x96xf32> to vector<2x32xf32>
    %960 = arith.addf %958, %959 : vector<2x32xf32>
    %961 = arith.negf %960 : vector<2x32xf32>
    %962 = math.exp %961 : vector<2x32xf32>
    %cst_257 = arith.constant 1.000000e+00 : f32
    %963 = vector.broadcast %cst_257 : f32 to vector<2x32xf32>
    %964 = arith.addf %963, %962 : vector<2x32xf32>
    %965 = arith.divf %963, %964 : vector<2x32xf32>
    %966 = vector.extract_strided_slice %957 {offsets = [0, 32], sizes = [2, 32], strides = [1, 1]} : vector<2x96xf32> to vector<2x32xf32>
    %967 = vector.extract_strided_slice %952 {offsets = [0, 32], sizes = [2, 32], strides = [1, 1]} : vector<2x96xf32> to vector<2x32xf32>
    %968 = arith.addf %966, %967 : vector<2x32xf32>
    %969 = arith.negf %968 : vector<2x32xf32>
    %970 = math.exp %969 : vector<2x32xf32>
    %cst_258 = arith.constant 1.000000e+00 : f32
    %971 = vector.broadcast %cst_258 : f32 to vector<2x32xf32>
    %972 = arith.addf %971, %970 : vector<2x32xf32>
    %973 = arith.divf %971, %972 : vector<2x32xf32>
    %974 = vector.extract_strided_slice %957 {offsets = [0, 64], sizes = [2, 32], strides = [1, 1]} : vector<2x96xf32> to vector<2x32xf32>
    %975 = vector.extract_strided_slice %952 {offsets = [0, 64], sizes = [2, 32], strides = [1, 1]} : vector<2x96xf32> to vector<2x32xf32>
    %976 = arith.mulf %965, %975 : vector<2x32xf32>
    %977 = arith.addf %974, %976 : vector<2x32xf32>
    %978 = math.tanh %977 : vector<2x32xf32>
    %cst_259 = arith.constant 1.000000e+00 : f32
    %979 = vector.broadcast %cst_259 : f32 to vector<2x32xf32>
    %980 = arith.subf %979, %973 : vector<2x32xf32>
    %981 = arith.mulf %980, %978 : vector<2x32xf32>
    %982 = arith.mulf %973, %949 : vector<2x32xf32>
    %983 = arith.addf %981, %982 : vector<2x32xf32>
    %c5_i32_260 = arith.constant 5 : i32
    %984 = vector.broadcast %c5_i32_260 : i32 to vector<2x8x32xi32>
    %985 = arith.cmpi eq, %19, %984 : vector<2x8x32xi32>
    %986 = vector.shape_cast %983 : vector<2x32xf32> to vector<2x1x32xf32>
    %987 = vector.shape_cast %986 : vector<2x1x32xf32> to vector<2x1x32xf32>
    %988 = vector.broadcast %987 : vector<2x1x32xf32> to vector<2x8x32xf32>
    %989 = arith.select %985, %988, %920 : vector<2x8x32xi1>, vector<2x8x32xf32>
    %c5_i32_261 = arith.constant 5 : i32
    %990 = vector.broadcast %c5_i32_261 : i32 to vector<2x8xi32>
    %991 = arith.cmpi eq, %18, %990 : vector<2x8xi32>
    %992 = vector.broadcast %586 : vector<1x32xf32> to vector<2x32xf32>
    %993 = arith.mulf %983, %992 : vector<2x32xf32>
    %cst_262 = arith.constant dense<0.000000e+00> : vector<2xf32>
    %994 = vector.multi_reduction <add>, %993, %cst_262 [1] : vector<2x32xf32> to vector<2xf32>
    %995 = vector.shape_cast %994 : vector<2xf32> to vector<2x1xf32>
    %996 = vector.shape_cast %995 : vector<2x1xf32> to vector<2x1xf32>
    %997 = vector.broadcast %996 : vector<2x1xf32> to vector<2x8xf32>
    %998 = arith.select %991, %997, %929 : vector<2x8xi1>, vector<2x8xf32>
    %c6_i32_263 = arith.constant 6 : i32
    %999 = vector.broadcast %c6_i32_263 : i32 to vector<2x8x8xi32>
    %1000 = arith.cmpi eq, %9, %999 : vector<2x8x8xi32>
    %cst_264 = arith.constant 0.000000e+00 : f32
    %1001 = vector.broadcast %cst_264 : f32 to vector<2x8x8xf32>
    %1002 = arith.select %1000, %601, %1001 : vector<2x8x8xi1>, vector<2x8x8xf32>
    %cst_265 = arith.constant dense<0.000000e+00> : vector<2x8xf32>
    %1003 = vector.multi_reduction <add>, %1002, %cst_265 [1] : vector<2x8x8xf32> to vector<2x8xf32>
    %1004 = arith.addf %998, %1003 : vector<2x8xf32>
    %cst_266 = arith.constant dense<0xFF800000> : vector<2xf32>
    %1005 = vector.multi_reduction <maximumf>, %1004, %cst_266 [1] : vector<2x8xf32> to vector<2xf32>
    %1006 = vector.shape_cast %1005 : vector<2xf32> to vector<2x1xf32>
    %1007 = vector.broadcast %1006 : vector<2x1xf32> to vector<2x8xf32>
    %1008 = arith.subf %1004, %1007 : vector<2x8xf32>
    %1009 = math.exp %1008 : vector<2x8xf32>
    %cst_267 = arith.constant dense<0.000000e+00> : vector<2xf32>
    %1010 = vector.multi_reduction <add>, %1009, %cst_267 [1] : vector<2x8xf32> to vector<2xf32>
    %1011 = vector.shape_cast %1010 : vector<2xf32> to vector<2x1xf32>
    %1012 = tpu.reciprocal %1011 {approx = true} : vector<2x1xf32> -> vector<2x1xf32>
    %1013 = vector.broadcast %1012 : vector<2x1xf32> to vector<2x8xf32>
    %1014 = arith.mulf %1009, %1013 : vector<2x8xf32>
    %1015 = vector.shape_cast %1014 : vector<2x8xf32> to vector<2x8x1xf32>
    %1016 = vector.broadcast %1015 : vector<2x8x1xf32> to vector<2x8x32xf32>
    %1017 = arith.mulf %1016, %989 : vector<2x8x32xf32>
    %cst_268 = arith.constant dense<0.000000e+00> : vector<2x32xf32>
    %1018 = vector.multi_reduction <add>, %1017, %cst_268 [1] : vector<2x8x32xf32> to vector<2x32xf32>
    %cst_269 = arith.constant dense<0.000000e+00> : vector<2x96xf32>
    %1019 = tpu.matmul %1018, %578, %cst_269 {dimension_numbers = #tpu.dot_dimension_numbers<[1], [0], [0], [1], [0, 0, 1, 1], [], []>} : vector<2x32xf32>, vector<32x96xf32>, vector<2x96xf32> -> vector<2x96xf32>
    %1020 = vector.broadcast %582 : vector<1x96xf32> to vector<2x96xf32>
    %1021 = arith.addf %1019, %1020 : vector<2x96xf32>
    %c6_i32_270 = arith.constant 6 : i32
    %1022 = vector.broadcast %c6_i32_270 : i32 to vector<2x8x96xi32>
    %1023 = arith.cmpi eq, %20, %1022 : vector<2x8x96xi32>
    %cst_271 = arith.constant 0.000000e+00 : f32
    %1024 = vector.broadcast %cst_271 : f32 to vector<2x8x96xf32>
    %1025 = arith.select %1023, %592, %1024 : vector<2x8x96xi1>, vector<2x8x96xf32>
    %cst_272 = arith.constant dense<0.000000e+00> : vector<2x96xf32>
    %1026 = vector.multi_reduction <add>, %1025, %cst_272 [1] : vector<2x8x96xf32> to vector<2x96xf32>
    %1027 = vector.extract_strided_slice %1026 {offsets = [0, 0], sizes = [2, 32], strides = [1, 1]} : vector<2x96xf32> to vector<2x32xf32>
    %1028 = vector.extract_strided_slice %1021 {offsets = [0, 0], sizes = [2, 32], strides = [1, 1]} : vector<2x96xf32> to vector<2x32xf32>
    %1029 = arith.addf %1027, %1028 : vector<2x32xf32>
    %1030 = arith.negf %1029 : vector<2x32xf32>
    %1031 = math.exp %1030 : vector<2x32xf32>
    %cst_273 = arith.constant 1.000000e+00 : f32
    %1032 = vector.broadcast %cst_273 : f32 to vector<2x32xf32>
    %1033 = arith.addf %1032, %1031 : vector<2x32xf32>
    %1034 = arith.divf %1032, %1033 : vector<2x32xf32>
    %1035 = vector.extract_strided_slice %1026 {offsets = [0, 32], sizes = [2, 32], strides = [1, 1]} : vector<2x96xf32> to vector<2x32xf32>
    %1036 = vector.extract_strided_slice %1021 {offsets = [0, 32], sizes = [2, 32], strides = [1, 1]} : vector<2x96xf32> to vector<2x32xf32>
    %1037 = arith.addf %1035, %1036 : vector<2x32xf32>
    %1038 = arith.negf %1037 : vector<2x32xf32>
    %1039 = math.exp %1038 : vector<2x32xf32>
    %cst_274 = arith.constant 1.000000e+00 : f32
    %1040 = vector.broadcast %cst_274 : f32 to vector<2x32xf32>
    %1041 = arith.addf %1040, %1039 : vector<2x32xf32>
    %1042 = arith.divf %1040, %1041 : vector<2x32xf32>
    %1043 = vector.extract_strided_slice %1026 {offsets = [0, 64], sizes = [2, 32], strides = [1, 1]} : vector<2x96xf32> to vector<2x32xf32>
    %1044 = vector.extract_strided_slice %1021 {offsets = [0, 64], sizes = [2, 32], strides = [1, 1]} : vector<2x96xf32> to vector<2x32xf32>
    %1045 = arith.mulf %1034, %1044 : vector<2x32xf32>
    %1046 = arith.addf %1043, %1045 : vector<2x32xf32>
    %1047 = math.tanh %1046 : vector<2x32xf32>
    %cst_275 = arith.constant 1.000000e+00 : f32
    %1048 = vector.broadcast %cst_275 : f32 to vector<2x32xf32>
    %1049 = arith.subf %1048, %1042 : vector<2x32xf32>
    %1050 = arith.mulf %1049, %1047 : vector<2x32xf32>
    %1051 = arith.mulf %1042, %1018 : vector<2x32xf32>
    %1052 = arith.addf %1050, %1051 : vector<2x32xf32>
    %c6_i32_276 = arith.constant 6 : i32
    %1053 = vector.broadcast %c6_i32_276 : i32 to vector<2x8x32xi32>
    %1054 = arith.cmpi eq, %19, %1053 : vector<2x8x32xi32>
    %1055 = vector.shape_cast %1052 : vector<2x32xf32> to vector<2x1x32xf32>
    %1056 = vector.shape_cast %1055 : vector<2x1x32xf32> to vector<2x1x32xf32>
    %1057 = vector.broadcast %1056 : vector<2x1x32xf32> to vector<2x8x32xf32>
    %1058 = arith.select %1054, %1057, %989 : vector<2x8x32xi1>, vector<2x8x32xf32>
    %c6_i32_277 = arith.constant 6 : i32
    %1059 = vector.broadcast %c6_i32_277 : i32 to vector<2x8xi32>
    %1060 = arith.cmpi eq, %18, %1059 : vector<2x8xi32>
    %1061 = vector.broadcast %586 : vector<1x32xf32> to vector<2x32xf32>
    %1062 = arith.mulf %1052, %1061 : vector<2x32xf32>
    %cst_278 = arith.constant dense<0.000000e+00> : vector<2xf32>
    %1063 = vector.multi_reduction <add>, %1062, %cst_278 [1] : vector<2x32xf32> to vector<2xf32>
    %1064 = vector.shape_cast %1063 : vector<2xf32> to vector<2x1xf32>
    %1065 = vector.shape_cast %1064 : vector<2x1xf32> to vector<2x1xf32>
    %1066 = vector.broadcast %1065 : vector<2x1xf32> to vector<2x8xf32>
    %1067 = arith.select %1060, %1066, %998 : vector<2x8xi1>, vector<2x8xf32>
    %c7_i32_279 = arith.constant 7 : i32
    %1068 = vector.broadcast %c7_i32_279 : i32 to vector<2x8x8xi32>
    %1069 = arith.cmpi eq, %9, %1068 : vector<2x8x8xi32>
    %cst_280 = arith.constant 0.000000e+00 : f32
    %1070 = vector.broadcast %cst_280 : f32 to vector<2x8x8xf32>
    %1071 = arith.select %1069, %601, %1070 : vector<2x8x8xi1>, vector<2x8x8xf32>
    %cst_281 = arith.constant dense<0.000000e+00> : vector<2x8xf32>
    %1072 = vector.multi_reduction <add>, %1071, %cst_281 [1] : vector<2x8x8xf32> to vector<2x8xf32>
    %1073 = arith.addf %1067, %1072 : vector<2x8xf32>
    %cst_282 = arith.constant dense<0xFF800000> : vector<2xf32>
    %1074 = vector.multi_reduction <maximumf>, %1073, %cst_282 [1] : vector<2x8xf32> to vector<2xf32>
    %1075 = vector.shape_cast %1074 : vector<2xf32> to vector<2x1xf32>
    %1076 = vector.broadcast %1075 : vector<2x1xf32> to vector<2x8xf32>
    %1077 = arith.subf %1073, %1076 : vector<2x8xf32>
    %1078 = math.exp %1077 : vector<2x8xf32>
    %cst_283 = arith.constant dense<0.000000e+00> : vector<2xf32>
    %1079 = vector.multi_reduction <add>, %1078, %cst_283 [1] : vector<2x8xf32> to vector<2xf32>
    %1080 = vector.shape_cast %1079 : vector<2xf32> to vector<2x1xf32>
    %1081 = tpu.reciprocal %1080 {approx = true} : vector<2x1xf32> -> vector<2x1xf32>
    %1082 = vector.broadcast %1081 : vector<2x1xf32> to vector<2x8xf32>
    %1083 = arith.mulf %1078, %1082 : vector<2x8xf32>
    %1084 = vector.shape_cast %1083 : vector<2x8xf32> to vector<2x8x1xf32>
    %1085 = vector.broadcast %1084 : vector<2x8x1xf32> to vector<2x8x32xf32>
    %1086 = arith.mulf %1085, %1058 : vector<2x8x32xf32>
    %cst_284 = arith.constant dense<0.000000e+00> : vector<2x32xf32>
    %1087 = vector.multi_reduction <add>, %1086, %cst_284 [1] : vector<2x8x32xf32> to vector<2x32xf32>
    %cst_285 = arith.constant dense<0.000000e+00> : vector<2x96xf32>
    %1088 = tpu.matmul %1087, %578, %cst_285 {dimension_numbers = #tpu.dot_dimension_numbers<[1], [0], [0], [1], [0, 0, 1, 1], [], []>} : vector<2x32xf32>, vector<32x96xf32>, vector<2x96xf32> -> vector<2x96xf32>
    %1089 = vector.broadcast %582 : vector<1x96xf32> to vector<2x96xf32>
    %1090 = arith.addf %1088, %1089 : vector<2x96xf32>
    %c7_i32_286 = arith.constant 7 : i32
    %1091 = vector.broadcast %c7_i32_286 : i32 to vector<2x8x96xi32>
    %1092 = arith.cmpi eq, %20, %1091 : vector<2x8x96xi32>
    %cst_287 = arith.constant 0.000000e+00 : f32
    %1093 = vector.broadcast %cst_287 : f32 to vector<2x8x96xf32>
    %1094 = arith.select %1092, %592, %1093 : vector<2x8x96xi1>, vector<2x8x96xf32>
    %cst_288 = arith.constant dense<0.000000e+00> : vector<2x96xf32>
    %1095 = vector.multi_reduction <add>, %1094, %cst_288 [1] : vector<2x8x96xf32> to vector<2x96xf32>
    %1096 = vector.extract_strided_slice %1095 {offsets = [0, 0], sizes = [2, 32], strides = [1, 1]} : vector<2x96xf32> to vector<2x32xf32>
    %1097 = vector.extract_strided_slice %1090 {offsets = [0, 0], sizes = [2, 32], strides = [1, 1]} : vector<2x96xf32> to vector<2x32xf32>
    %1098 = arith.addf %1096, %1097 : vector<2x32xf32>
    %1099 = arith.negf %1098 : vector<2x32xf32>
    %1100 = math.exp %1099 : vector<2x32xf32>
    %cst_289 = arith.constant 1.000000e+00 : f32
    %1101 = vector.broadcast %cst_289 : f32 to vector<2x32xf32>
    %1102 = arith.addf %1101, %1100 : vector<2x32xf32>
    %1103 = arith.divf %1101, %1102 : vector<2x32xf32>
    %1104 = vector.extract_strided_slice %1095 {offsets = [0, 32], sizes = [2, 32], strides = [1, 1]} : vector<2x96xf32> to vector<2x32xf32>
    %1105 = vector.extract_strided_slice %1090 {offsets = [0, 32], sizes = [2, 32], strides = [1, 1]} : vector<2x96xf32> to vector<2x32xf32>
    %1106 = arith.addf %1104, %1105 : vector<2x32xf32>
    %1107 = arith.negf %1106 : vector<2x32xf32>
    %1108 = math.exp %1107 : vector<2x32xf32>
    %cst_290 = arith.constant 1.000000e+00 : f32
    %1109 = vector.broadcast %cst_290 : f32 to vector<2x32xf32>
    %1110 = arith.addf %1109, %1108 : vector<2x32xf32>
    %1111 = arith.divf %1109, %1110 : vector<2x32xf32>
    %1112 = vector.extract_strided_slice %1095 {offsets = [0, 64], sizes = [2, 32], strides = [1, 1]} : vector<2x96xf32> to vector<2x32xf32>
    %1113 = vector.extract_strided_slice %1090 {offsets = [0, 64], sizes = [2, 32], strides = [1, 1]} : vector<2x96xf32> to vector<2x32xf32>
    %1114 = arith.mulf %1103, %1113 : vector<2x32xf32>
    %1115 = arith.addf %1112, %1114 : vector<2x32xf32>
    %1116 = math.tanh %1115 : vector<2x32xf32>
    %cst_291 = arith.constant 1.000000e+00 : f32
    %1117 = vector.broadcast %cst_291 : f32 to vector<2x32xf32>
    %1118 = arith.subf %1117, %1111 : vector<2x32xf32>
    %1119 = arith.mulf %1118, %1116 : vector<2x32xf32>
    %1120 = arith.mulf %1111, %1087 : vector<2x32xf32>
    %1121 = arith.addf %1119, %1120 : vector<2x32xf32>
    %c7_i32_292 = arith.constant 7 : i32
    %1122 = vector.broadcast %c7_i32_292 : i32 to vector<2x8x32xi32>
    %1123 = arith.cmpi eq, %19, %1122 : vector<2x8x32xi32>
    %1124 = vector.shape_cast %1121 : vector<2x32xf32> to vector<2x1x32xf32>
    %1125 = vector.shape_cast %1124 : vector<2x1x32xf32> to vector<2x1x32xf32>
    %1126 = vector.broadcast %1125 : vector<2x1x32xf32> to vector<2x8x32xf32>
    %1127 = arith.select %1123, %1126, %1058 : vector<2x8x32xi1>, vector<2x8x32xf32>
    %1128 = vector.shape_cast %1127 : vector<2x8x32xf32> to vector<16x32xf32>
    %c0_293 = arith.constant 0 : index
    %c0_294 = arith.constant 0 : index
    %1129 = vector.load %arg15[%c0_293, %c0_294] : memref<1x32xf32, #tpu.memory_space<vmem>>, vector<1x32xf32>
    %c0_295 = arith.constant 0 : index
    %c0_296 = arith.constant 0 : index
    %1130 = vector.load %arg11[%c0_295, %c0_296] : memref<32x32xf32, #tpu.memory_space<vmem>>, vector<32x32xf32>
    %cst_297 = arith.constant dense<0.000000e+00> : vector<16x32xf32>
    %1131 = tpu.matmul %8, %1130, %cst_297 {dimension_numbers = #tpu.dot_dimension_numbers<[1], [0], [0], [1], [0, 0, 1, 1], [], []>} : vector<16x32xf32>, vector<32x32xf32>, vector<16x32xf32> -> vector<16x32xf32>
    %1132 = vector.broadcast %1129 : vector<1x32xf32> to vector<16x32xf32>
    %1133 = arith.addf %1132, %1131 : vector<16x32xf32>
    %c0_298 = arith.constant 0 : index
    %c0_299 = arith.constant 0 : index
    %1134 = vector.load %arg12[%c0_298, %c0_299] : memref<32x32xf32, #tpu.memory_space<vmem>>, vector<32x32xf32>
    %cst_300 = arith.constant dense<0.000000e+00> : vector<16x32xf32>
    %1135 = tpu.matmul %574, %1134, %cst_300 {dimension_numbers = #tpu.dot_dimension_numbers<[1], [0], [0], [1], [0, 0, 1, 1], [], []>} : vector<16x32xf32>, vector<32x32xf32>, vector<16x32xf32> -> vector<16x32xf32>
    %1136 = arith.addf %1133, %1135 : vector<16x32xf32>
    %c0_301 = arith.constant 0 : index
    %c0_302 = arith.constant 0 : index
    %1137 = vector.load %arg13[%c0_301, %c0_302] : memref<32x32xf32, #tpu.memory_space<vmem>>, vector<32x32xf32>
    %cst_303 = arith.constant dense<0.000000e+00> : vector<16x32xf32>
    %1138 = tpu.matmul %1128, %1137, %cst_303 {dimension_numbers = #tpu.dot_dimension_numbers<[1], [0], [0], [1], [0, 0, 1, 1], [], []>} : vector<16x32xf32>, vector<32x32xf32>, vector<16x32xf32> -> vector<16x32xf32>
    %1139 = arith.addf %1136, %1138 : vector<16x32xf32>
    %c0_304 = arith.constant 0 : index
    %c0_305 = arith.constant 0 : index
    %1140 = vector.load %arg14[%c0_304, %c0_305] : memref<48x32xf32, #tpu.memory_space<vmem>>, vector<48x32xf32>
    %cst_306 = arith.constant dense<0.000000e+00> : vector<16x32xf32>
    %1141 = tpu.matmul %0, %1140, %cst_306 {dimension_numbers = #tpu.dot_dimension_numbers<[1], [0], [0], [1], [0, 0, 1, 1], [], []>} : vector<16x48xf32>, vector<48x32xf32>, vector<16x32xf32> -> vector<16x32xf32>
    %1142 = arith.addf %1139, %1141 : vector<16x32xf32>
    %cst_307 = arith.constant 0.000000e+00 : f32
    %1143 = vector.broadcast %cst_307 : f32 to vector<16x32xf32>
    %1144 = arith.maximumf %1142, %1143 : vector<16x32xf32>
    %c0_308 = arith.constant 0 : index
    %c0_309 = arith.constant 0 : index
    %1145 = vector.load %arg16[%c0_308, %c0_309] : memref<32x32xf32, #tpu.memory_space<vmem>>, vector<32x32xf32>
    %cst_310 = arith.constant dense<0.000000e+00> : vector<16x32xf32>
    %1146 = tpu.matmul %1144, %1145, %cst_310 {dimension_numbers = #tpu.dot_dimension_numbers<[1], [0], [0], [1], [0, 0, 1, 1], [], []>} : vector<16x32xf32>, vector<32x32xf32>, vector<16x32xf32> -> vector<16x32xf32>
    %c0_311 = arith.constant 0 : index
    %c0_312 = arith.constant 0 : index
    %1147 = vector.load %arg17[%c0_311, %c0_312] : memref<1x32xf32, #tpu.memory_space<vmem>>, vector<1x32xf32>
    %1148 = vector.broadcast %1147 : vector<1x32xf32> to vector<16x32xf32>
    %1149 = arith.addf %1146, %1148 : vector<16x32xf32>
    %cst_313 = arith.constant 0.000000e+00 : f32
    %1150 = vector.broadcast %cst_313 : f32 to vector<16x32xf32>
    %1151 = arith.maximumf %1149, %1150 : vector<16x32xf32>
    %c0_314 = arith.constant 0 : index
    %c0_315 = arith.constant 0 : index
    %1152 = vector.load %arg18[%c0_314, %c0_315] : memref<32x6xf32, #tpu.memory_space<vmem>>, vector<32x6xf32>
    %cst_316 = arith.constant dense<0.000000e+00> : vector<16x6xf32>
    %1153 = tpu.matmul %1151, %1152, %cst_316 {dimension_numbers = #tpu.dot_dimension_numbers<[1], [0], [0], [1], [0, 0, 1, 1], [], []>} : vector<16x32xf32>, vector<32x6xf32>, vector<16x6xf32> -> vector<16x6xf32>
    %c0_317 = arith.constant 0 : index
    %c0_318 = arith.constant 0 : index
    %1154 = vector.load %arg19[%c0_317, %c0_318] : memref<1x6xf32, #tpu.memory_space<vmem>>, vector<1x6xf32>
    %1155 = vector.broadcast %1154 : vector<1x6xf32> to vector<16x6xf32>
    %1156 = arith.addf %1153, %1155 : vector<16x6xf32>
    %c0_319 = arith.constant 0 : index
    %c0_320 = arith.constant 0 : index
    %1157 = vector.load %arg20[%c0_319, %c0_320] : memref<16x6xf32, #tpu.memory_space<vmem>>, vector<16x6xf32>
    tpu.vector_store %arg20[%c0_319, %c0_320], %1156 {strides = array<i32>} : memref<16x6xf32, #tpu.memory_space<vmem>>, vector<16x6xf32>,
    return
  }
}

</mosaic_0001>

<llo_original>
// kernel: dagerc_forward.1
$region0: #{dagerc_forward.1}
  #allocation0 [shape = 'u32[]', space=smem, size = 0x4, offset = 0x4, fixed_abs, tag = 'smem constant byte address 0x4 - core index']
  #allocation1 [shape = 'u32[144,128]{1,0:T(1,128)}', space=vmem, size = 0x12000, scoped, tag = 'internal scratch']
  %s0 = inlined_call_operand.vmem [shape: f32[16,48], index: 0, kind: input, shape index: {}]
  %s1 = inlined_call_operand.vmem [shape: f32[2,8,8], index: 1, kind: input, shape index: {}]
  %s2 = inlined_call_operand.vmem [shape: f32[48,32], index: 2, kind: input, shape index: {}]
  %s3 = inlined_call_operand.vmem [shape: f32[1,32], index: 3, kind: input, shape index: {}]
  %s4 = inlined_call_operand.vmem [shape: f32[2,32,96], index: 4, kind: input, shape index: {}]
  %s5 = inlined_call_operand.vmem [shape: f32[2,32,96], index: 5, kind: input, shape index: {}]
  %s6 = inlined_call_operand.vmem [shape: f32[2,1,96], index: 6, kind: input, shape index: {}]
  %s7 = inlined_call_operand.vmem [shape: f32[2,1,96], index: 7, kind: input, shape index: {}]
  %s8 = inlined_call_operand.vmem [shape: f32[2,1,32], index: 8, kind: input, shape index: {}]
  %s9 = inlined_call_operand.vmem [shape: f32[2,1,32], index: 9, kind: input, shape index: {}]
  %s10 = inlined_call_operand.vmem [shape: f32[2,1,1], index: 10, kind: input, shape index: {}]
  %s11 = inlined_call_operand.vmem [shape: f32[32,32], index: 11, kind: input, shape index: {}]
  %s12 = inlined_call_operand.vmem [shape: f32[32,32], index: 12, kind: input, shape index: {}]
  %s13 = inlined_call_operand.vmem [shape: f32[32,32], index: 13, kind: input, shape index: {}]
  %s14 = inlined_call_operand.vmem [shape: f32[48,32], index: 14, kind: input, shape index: {}]
  %s15 = inlined_call_operand.vmem [shape: f32[1,32], index: 15, kind: input, shape index: {}]
  %s16 = inlined_call_operand.vmem [shape: f32[32,32], index: 16, kind: input, shape index: {}]
  %s17 = inlined_call_operand.vmem [shape: f32[1,32], index: 17, kind: input, shape index: {}]
  %s18 = inlined_call_operand.vmem [shape: f32[32,6], index: 18, kind: input, shape index: {}]
  %s19 = inlined_call_operand.vmem [shape: f32[1,6], index: 19, kind: input, shape index: {}]
  %s20 = inlined_call_operand.vmem [shape: f32[16,6], index: 20, kind: output, shape index: {}]
  %s21 = sld [smem:[#allocation0]]
  $region90: #{dagerc_forward.1} parent=0
    _
  %s23 = ssub.s32 1, %s21
  %s24 = scalar_select 0, %s23, %s21
  // Predicated region
  $region2: #{dagerc_forward.1} parent=0 // pred_check
    _
  $region3: #{dagerc_forward.1} parent=0 // pred_check_branch
    %26 = sbr.rel (0) target = $region5
  $region4: #{dagerc_forward.1} parent=0 // pred_region
    _
  $region5: #{dagerc_forward.1} parent=0 // pred_fallthru
    _
  // Predicated region
  $region6: #{dagerc_forward.1} parent=0 // pred_check
    _
  $region7: #{dagerc_forward.1} parent=0 // pred_check_branch
    %28 = sbr.rel (0) target = $region9
  $region8: #{dagerc_forward.1} parent=0 // pred_region
    _
  $region9: #{dagerc_forward.1} parent=0 // pred_fallthru
    _
  // Predicated region
  $region10: #{dagerc_forward.1} parent=0 // pred_check
    _
  $region11: #{dagerc_forward.1} parent=0 // pred_check_branch
    %30 = sbr.rel (0) target = $region13
  $region12: #{dagerc_forward.1} parent=0 // pred_region
    _
  $region13: #{dagerc_forward.1} parent=0 // pred_fallthru
    _
  // Predicated region
  $region14: #{dagerc_forward.1} parent=0 // pred_check
    _
  $region15: #{dagerc_forward.1} parent=0 // pred_check_branch
    %32 = sbr.rel (0) target = $region17
  $region16: #{dagerc_forward.1} parent=0 // pred_region
    _
  $region17: #{dagerc_forward.1} parent=0 // pred_fallthru
    _
  // Predicated region
  $region18: #{dagerc_forward.1} parent=0 // pred_check
    _
  $region19: #{dagerc_forward.1} parent=0 // pred_check_branch
    %34 = sbr.rel (0) target = $region21
  $region20: #{dagerc_forward.1} parent=0 // pred_region
    _
  $region21: #{dagerc_forward.1} parent=0 // pred_fallthru
    _
  // Predicated region
  $region22: #{dagerc_forward.1} parent=0 // pred_check
    _
  $region23: #{dagerc_forward.1} parent=0 // pred_check_branch
    %36 = sbr.rel (0) target = $region25
  $region24: #{dagerc_forward.1} parent=0 // pred_region
    _
  $region25: #{dagerc_forward.1} parent=0 // pred_fallthru
    _
  // Predicated region
  $region26: #{dagerc_forward.1} parent=0 // pred_check
    _
  $region27: #{dagerc_forward.1} parent=0 // pred_check_branch
    %38 = sbr.rel (0) target = $region29
  $region28: #{dagerc_forward.1} parent=0 // pred_region
    _
  $region29: #{dagerc_forward.1} parent=0 // pred_fallthru
    _
  // Predicated region
  $region30: #{dagerc_forward.1} parent=0 // pred_check
    _
  $region31: #{dagerc_forward.1} parent=0 // pred_check_branch
    %40 = sbr.rel (0) target = $region33
  $region32: #{dagerc_forward.1} parent=0 // pred_region
    _
  $region33: #{dagerc_forward.1} parent=0 // pred_fallthru
    _
  // Predicated region
  $region34: #{dagerc_forward.1} parent=0 // pred_check
    _
  $region35: #{dagerc_forward.1} parent=0 // pred_check_branch
    %42 = sbr.rel (0) target = $region37
  $region36: #{dagerc_forward.1} parent=0 // pred_region
    _
  $region37: #{dagerc_forward.1} parent=0 // pred_fallthru
    _
  // Predicated region
  $region38: #{dagerc_forward.1} parent=0 // pred_check
    _
  $region39: #{dagerc_forward.1} parent=0 // pred_check_branch
    %44 = sbr.rel (0) target = $region41
  $region40: #{dagerc_forward.1} parent=0 // pred_region
    _
  $region41: #{dagerc_forward.1} parent=0 // pred_fallthru
    _
  // Predicated region
  $region42: #{dagerc_forward.1} parent=0 // pred_check
    _
  $region43: #{dagerc_forward.1} parent=0 // pred_check_branch
    %46 = sbr.rel (0) target = $region45
  $region44: #{dagerc_forward.1} parent=0 // pred_region
    _
  $region45: #{dagerc_forward.1} parent=0 // pred_fallthru
    _
  // Predicated region
  $region46: #{dagerc_forward.1} parent=0 // pred_check
    _
  $region47: #{dagerc_forward.1} parent=0 // pred_check_branch
    %48 = sbr.rel (0) target = $region49
  $region48: #{dagerc_forward.1} parent=0 // pred_region
    _
  $region49: #{dagerc_forward.1} parent=0 // pred_fallthru
    _
  // Predicated region
  $region50: #{dagerc_forward.1} parent=0 // pred_check
    _
  $region51: #{dagerc_forward.1} parent=0 // pred_check_branch
    %50 = sbr.rel (0) target = $region53
  $region52: #{dagerc_forward.1} parent=0 // pred_region
    _
  $region53: #{dagerc_forward.1} parent=0 // pred_fallthru
    _
  // Predicated region
  $region54: #{dagerc_forward.1} parent=0 // pred_check
    _
  $region55: #{dagerc_forward.1} parent=0 // pred_check_branch
    %52 = sbr.rel (0) target = $region57
  $region56: #{dagerc_forward.1} parent=0 // pred_region
    _
  $region57: #{dagerc_forward.1} parent=0 // pred_fallthru
    _
  // Predicated region
  $region58: #{dagerc_forward.1} parent=0 // pred_check
    _
  $region59: #{dagerc_forward.1} parent=0 // pred_check_branch
    %54 = sbr.rel (0) target = $region61
  $region60: #{dagerc_forward.1} parent=0 // pred_region
    _
  $region61: #{dagerc_forward.1} parent=0 // pred_fallthru
    _
  // Predicated region
  $region62: #{dagerc_forward.1} parent=0 // pred_check
    _
  $region63: #{dagerc_forward.1} parent=0 // pred_check_branch
    %56 = sbr.rel (0) target = $region65
  $region64: #{dagerc_forward.1} parent=0 // pred_region
    _
  $region65: #{dagerc_forward.1} parent=0 // pred_fallthru
    _
  // Predicated region
  $region66: #{dagerc_forward.1} parent=0 // pred_check
    _
  $region67: #{dagerc_forward.1} parent=0 // pred_check_branch
    %58 = sbr.rel (0) target = $region69
  $region68: #{dagerc_forward.1} parent=0 // pred_region
    _
  $region69: #{dagerc_forward.1} parent=0 // pred_fallthru
    _
  // Predicated region
  $region70: #{dagerc_forward.1} parent=0 // pred_check
    _
  $region71: #{dagerc_forward.1} parent=0 // pred_check_branch
    %60 = sbr.rel (0) target = $region73
  $region72: #{dagerc_forward.1} parent=0 // pred_region
    _
  $region73: #{dagerc_forward.1} parent=0 // pred_fallthru
    _
  // Predicated region
  $region74: #{dagerc_forward.1} parent=0 // pred_check
    _
  $region75: #{dagerc_forward.1} parent=0 // pred_check_branch
    %62 = sbr.rel (0) target = $region77
  $region76: #{dagerc_forward.1} parent=0 // pred_region
    _
  $region77: #{dagerc_forward.1} parent=0 // pred_fallthru
    _
  // Predicated region
  $region78: #{dagerc_forward.1} parent=0 // pred_check
    _
  $region79: #{dagerc_forward.1} parent=0 // pred_check_branch
    %64 = sbr.rel (0) target = $region81
  $region80: #{dagerc_forward.1} parent=0 // pred_region
    _
  $region81: #{dagerc_forward.1} parent=0 // pred_fallthru
    _
  %v65 = vld [vmem:[%s0] sm:$0xff]
  %v66 = vld [vmem:[%s0 + $0x8] sm:$0xff]
  %v67 = vld [vmem:[%s1] sm:$0xff]
  %v68 = vld [vmem:[%s1 + $0x8] sm:$0xff]
  %v69 = vld [vmem:[%s2] sm:$0xff]
  %v70 = vld [vmem:[%s2 + $0x8] sm:$0xff]
  %v71 = vld [vmem:[%s2 + $0x10] sm:$0xff]
  %v72 = vld [vmem:[%s2 + $0x18] sm:$0xff]
  %v73 = vld [vmem:[%s2 + $0x20] sm:$0xff]
  %v74 = vld [vmem:[%s2 + $0x28] sm:$0xff]
  %v75 = vld [vmem:[%s3] sm:$0x1]
  %v77 = vlaneseq
  %v78 = vshrl.u32 %v77, 7
  %v79 = vsub.s32 0, %v78
  %v80 = vrot.slane %v75, %v79
  %vm82 = vcmask 392192
  %v84 = vsel %vm82, %v65, 0
  %v87 = vsel %vm82, %v66, 0
  %89 = vmatprep.subr.mxu0 0.0
  %90 = vmatpush1.msra.mxu0 %v69
  %91 = vmatprep.subr.mxu0 0.0
  %92 = vmatpush1.msra.mxu0 %v70
  %93 = vmatprep.subr.mxu0 0.0
  %94 = vmatpush1.msra.mxu0 %v71
  %95 = vmatprep.subr.mxu0 0.0
  %96 = vmatpush1.msra.mxu0 %v72
  %97 = vmatprep.subr.mxu0 0.0
  %98 = vmatpush1.msra.mxu0 %v73
  %99 = vmatprep.subr.mxu0 0.0
  %100 = vmatpush1.msra.mxu0 %v74
  %101 = vmatprep.subr.mxu0 0.0
  %102 = vmatpush1.msra.mxu0 0.0
  %103 = vmatprep.subr.mxu0 0.0
  %104 = vmatpush1.msra.mxu0 0.0
  %105 = vmatprep.subr.mxu0 0.0
  %106 = vmatpush1.msra.mxu0 0.0
  %107 = vmatprep.subr.mxu0 0.0
  %108 = vmatpush1.msra.mxu0 0.0
  %109 = vmatprep.subr.mxu0 0.0
  %110 = vmatpush1.msra.mxu0 0.0
  %111 = vmatprep.subr.mxu0 0.0
  %112 = vmatpush1.msra.mxu0 0.0
  %113 = vmatprep.subr.mxu0 0.0
  %114 = vmatpush1.msra.mxu0 0.0
  %115 = vmatprep.subr.mxu0 0.0
  %116 = vmatpush1.msra.mxu0 0.0
  %117 = vmatprep.subr.mxu0 0.0
  %118 = vmatpush1.msra.mxu0 0.0
  %119 = vmatprep.subr.mxu0 0.0
  %120 = vmatpush1.msra.mxu0 0.0
  %121 = vmatprep.subr.mxu0 0.0
  %122 = vmatpush1.msra.mxu0 0.0
  %123 = vmatprep.subr.mxu0 0.0
  %124 = vmatpush1.msra.mxu0 0.0
  %125 = vmatprep.subr.mxu0 0.0
  %126 = vmatpush1.msra.mxu0 0.0
  %127 = vmatprep.subr.mxu0 0.0
  %128 = vmatpush1.msra.mxu0 0.0
  %129 = vmatprep.subr.mxu0 0.0
  %130 = vmatpush1.msra.mxu0 0.0
  %131 = vmatprep.subr.mxu0 0.0
  %132 = vmatpush1.msra.mxu0 0.0
  %133 = vmatprep.subr.mxu0 0.0
  %134 = vmatpush1.msra.mxu0 0.0
  %135 = vmatprep.subr.mxu0 0.0
  %136 = vmatpush1.msra.mxu0 0.0
  %137 = vmatprep.subr.mxu0 0.0
  %138 = vmatpush1.msra.mxu0 0.0
  %139 = vmatprep.subr.mxu0 0.0
  %140 = vmatpush1.msra.mxu0 0.0
  %141 = vmatprep.subr.mxu0 0.0
  %142 = vmatpush1.msra.mxu0 0.0
  %143 = vmatprep.subr.mxu0 0.0
  %144 = vmatpush1.msra.mxu0 0.0
  %145 = vmatprep.subr.mxu0 0.0
  %146 = vmatpush1.msra.mxu0 0.0
  %147 = vmatprep.subr.mxu0 0.0
  %148 = vmatpush1.msra.mxu0 0.0
  %149 = vmatprep.subr.mxu0 0.0
  %150 = vmatpush1.msra.mxu0 0.0
  %151 = vmatprep.subr.mxu0 0.0
  %152 = vmatpush1.msra.mxu0 0.0
  %153 = vmatprep.mubr.f32.mxu0 0.0
  %154 = vmatmul.mubr.f32.gmra.mrb[0].mxu0 %v84
  %v155 = vpop.f32.mrb[0].mxu0
  %v156 = vadd.f32 %v80, %v155
  %v157 = vpop.f32.mrb[0].mxu0
  %158 = vmatprep.mubr.f32.mxu0 0.0
  %159 = vmatmul.mubr.f32.gmra.mrb[0].mxu0 %v87
  %v160 = vpop.f32.mrb[0].mxu0
  %v161 = vadd.f32 %v80, %v160
  %v162 = vpop.f32.mrb[0].mxu0
  %163 = vdwg.mxu0
  %v164 = vmax.f32 %v156, 0.0
  %v165 = vmax.f32 %v161, 0.0
  %v166 = vlaneseq
  %v167 = vshrl.u32 %v166, 7
  %v168 = vlaneseq
  %v169 = vand.u32 %v168, 127
  %vm170 = vcmp.gt.s32.totalorder %v167, %v169
  %v171 = vsub.f32 %v67, 1.0
  %v172 = vsub.f32 %v68, 1.0
  %v173 = vmul.f32 %v171, 1e+30
  %v174 = vmul.f32 %v172, 1e+30
  %v175 = vsel %vm170, %v173, -inf
  %v176 = vsel %vm170, %v174, -inf
  %v177 = vld [vmem:[%s4] sm:$0xff]
  %v178 = vld [vmem:[%s4 + $0x8] sm:$0xff]
  %v179 = vld [vmem:[%s4 + $0x10] sm:$0xff]
  %v180 = vld [vmem:[%s4 + $0x18] sm:$0xff]
  %v181 = vld [vmem:[%s5] sm:$0xff]
  %v182 = vld [vmem:[%s5 + $0x8] sm:$0xff]
  %v183 = vld [vmem:[%s5 + $0x10] sm:$0xff]
  %v184 = vld [vmem:[%s5 + $0x18] sm:$0xff]
  %v185 = vld [vmem:[%s6] sm:$0x1]
  %v186 = vld [vmem:[%s7] sm:$0x1]
  %v187 = vld [vmem:[%s8] sm:$0x1]
  %v188 = vld [vmem:[%s9] sm:$0x1]
  %v189 = vld [vmem:[%s10] sm:$0x1]
  %v191 = vlaneseq
  %v192 = vshrl.u32 %v191, 7
  %v193 = vsub.s32 0, %v192
  %v194 = vrot.slane %v185, %v193
  %vm196 = vcmask 261120
  %v198 = vsel %vm196, %v164, 0
  %v201 = vsel %vm196, %v165, 0
  %203 = vmatprep.subr.mxu0 0.0
  %204 = vmatpush1.msra.mxu0 %v177
  %205 = vmatprep.subr.mxu0 0.0
  %206 = vmatpush1.msra.mxu0 %v178
  %207 = vmatprep.subr.mxu0 0.0
  %208 = vmatpush1.msra.mxu0 %v179
  %209 = vmatprep.subr.mxu0 0.0
  %210 = vmatpush1.msra.mxu0 %v180
  %211 = vmatprep.subr.mxu0 0.0
  %212 = vmatpush1.msra.mxu0 0.0
  %213 = vmatprep.subr.mxu0 0.0
  %214 = vmatpush1.msra.mxu0 0.0
  %215 = vmatprep.subr.mxu0 0.0
  %216 = vmatpush1.msra.mxu0 0.0
  %217 = vmatprep.subr.mxu0 0.0
  %218 = vmatpush1.msra.mxu0 0.0
  %219 = vmatprep.subr.mxu0 0.0
  %220 = vmatpush1.msra.mxu0 0.0
  %221 = vmatprep.subr.mxu0 0.0
  %222 = vmatpush1.msra.mxu0 0.0
  %223 = vmatprep.subr.mxu0 0.0
  %224 = vmatpush1.msra.mxu0 0.0
  %225 = vmatprep.subr.mxu0 0.0
  %226 = vmatpush1.msra.mxu0 0.0
  %227 = vmatprep.subr.mxu0 0.0
  %228 = vmatpush1.msra.mxu0 0.0
  %229 = vmatprep.subr.mxu0 0.0
  %230 = vmatpush1.msra.mxu0 0.0
  %231 = vmatprep.subr.mxu0 0.0
  %232 = vmatpush1.msra.mxu0 0.0
  %233 = vmatprep.subr.mxu0 0.0
  %234 = vmatpush1.msra.mxu0 0.0
  %235 = vmatprep.subr.mxu0 0.0
  %236 = vmatpush1.msra.mxu0 0.0
  %237 = vmatprep.subr.mxu0 0.0
  %238 = vmatpush1.msra.mxu0 0.0
  %239 = vmatprep.subr.mxu0 0.0
  %240 = vmatpush1.msra.mxu0 0.0
  %241 = vmatprep.subr.mxu0 0.0
  %242 = vmatpush1.msra.mxu0 0.0
  %243 = vmatprep.subr.mxu0 0.0
  %244 = vmatpush1.msra.mxu0 0.0
  %245 = vmatprep.subr.mxu0 0.0
  %246 = vmatpush1.msra.mxu0 0.0
  %247 = vmatprep.subr.mxu0 0.0
  %248 = vmatpush1.msra.mxu0 0.0
  %249 = vmatprep.subr.mxu0 0.0
  %250 = vmatpush1.msra.mxu0 0.0
  %251 = vmatprep.subr.mxu0 0.0
  %252 = vmatpush1.msra.mxu0 0.0
  %253 = vmatprep.subr.mxu0 0.0
  %254 = vmatpush1.msra.mxu0 0.0
  %255 = vmatprep.subr.mxu0 0.0
  %256 = vmatpush1.msra.mxu0 0.0
  %257 = vmatprep.subr.mxu0 0.0
  %258 = vmatpush1.msra.mxu0 0.0
  %259 = vmatprep.subr.mxu0 0.0
  %260 = vmatpush1.msra.mxu0 0.0
  %261 = vmatprep.subr.mxu0 0.0
  %262 = vmatpush1.msra.mxu0 0.0
  %263 = vmatprep.subr.mxu0 0.0
  %264 = vmatpush1.msra.mxu0 0.0
  %265 = vmatprep.subr.mxu0 0.0
  %266 = vmatpush1.msra.mxu0 0.0
  %267 = vmatprep.mubr.f32.mxu0 0.0
  %268 = vmatmul.mubr.f32.gmra.mrb[0].mxu0 %v198
  %v269 = vpop.f32.mrb[0].mxu0
  %v270 = vadd.f32 %v194, %v269
  %v271 = vpop.f32.mrb[0].mxu0
  %272 = vmatprep.mubr.f32.mxu0 0.0
  %273 = vmatmul.mubr.f32.gmra.mrb[0].mxu0 %v201
  %v274 = vpop.f32.mrb[0].mxu0
  %v275 = vadd.f32 %v194, %v274
  %v276 = vpop.f32.mrb[0].mxu0
  %277 = vdwg.mxu0
  %v279 = vlaneseq
  %v280 = vshrl.u32 %v279, 7
  %v281 = vsub.s32 0, %v280
  %v282 = vrot.slane %v187, %v281
  %v284 = vmul.f32 %v164, %v282
  %v285 = vmul.f32 %v165, %v282
  %v286 = vsel %vm196, %v284, 0.0
  %287 = vadd.xlane.f32.xlu0 %v286
  %v288 = vpop.xlane.xlu0 %287
  %v289 = vsel %vm196, %v285, 0.0
  %290 = vadd.xlane.f32.xlu0 %v289
  %v291 = vpop.xlane.xlu0 %290
  %v293 = vlaneseq
  %v294 = vshrl.u32 %v293, 7
  %v295 = vsub.s32 0, %v294
  %v296 = vrot.slane %v189, %v295
  %v298 = vadd.f32 %v288, %v296
  %v299 = vadd.f32 %v291, %v296
  %301 = vset.pattern.permute.xlu0 0
  %302 = vperm.xlu0 %301, %v298
  %v303 = vpop.permute.xlu0 %302
  %306 = vset.pattern.permute.xlu0 0
  %307 = vperm.xlu0 %306, %v299
  %v308 = vpop.permute.xlu0 %307
  %v310 = vadd.f32 %v303, %v175
  %v311 = vadd.f32 %v308, %v176
  %vm312 = vcmp.eq.s32.totalorder %v167, 0
  %v313 = vsel %vm312, %v270, 0.0
  %v314 = vsel %vm312, %v275, 0.0
  %vm315 = vcmask 785408
  %v316 = vsel %vm315, %v313, 0.0
  %v317 = vrot.slane %v316, 4
  %v318 = vadd.f32 %v316, %v317
  %v319 = vrot.slane %v318, 2
  %v320 = vadd.f32 %v318, %v319
  %v321 = vrot.slane %v320, 1
  %v322 = vadd.f32 %v320, %v321
  %v323 = vsel %vm315, %v314, 0.0
  %v324 = vrot.slane %v323, 4
  %v325 = vadd.f32 %v323, %v324
  %v326 = vrot.slane %v325, 2
  %v327 = vadd.f32 %v325, %v326
  %v328 = vrot.slane %v327, 1
  %v329 = vadd.f32 %v327, %v328
  %v331 = vlaneseq
  %v332 = vshrl.u32 %v331, 7
  %v333 = vsub.s32 0, %v332
  %v334 = vrot.slane %v186, %v333
  %v336 = vadd.f32 %v322, %v334
  %v337 = vadd.f32 %v329, %v334
  %v338 = vxor.u32 %v336, 2147483648
  %v339 = vxor.u32 %v337, 2147483648
  %v340 = vmul.f32 %v338, 1.442695
  %v341 = vpow.pop %v340
  %v342 = vmul.f32 %v339, 1.442695
  %v343 = vpow.pop %v342
  %v344 = vadd.f32 %v341, 1.0
  %v345 = vadd.f32 %v343, 1.0
  %v346 = vrcp.pop %v344
  %v347 = vmul.f32 1.0, %v346
  %v348 = vrcp.pop %v345
  %v349 = vmul.f32 1.0, %v348
  %350 = vrot.lane.b32.xlu0 %v334, 64
  %v351 = vpop.permute.xlu0 %350
  %v353 = vmul.f32 %v347, %v351
  %v354 = vmul.f32 %v349, %v351
  %357 = vrot.lane.b32.xlu0 %v353, 64
  %v358 = vpop.permute.xlu0 %357
  %359 = vrot.lane.b32.xlu0 %v354, 64
  %v360 = vpop.permute.xlu0 %359
  %v363 = vadd.f32 %v322, %v358
  %v364 = vadd.f32 %v329, %v360
  %v365 = vtanh.pop %v363
  %v366 = vtanh.pop %v364
  %v367 = vsub.f32 1.0, %v347
  %v368 = vsub.f32 1.0, %v349
  %371 = vrot.lane.b32.xlu0 %v365, 96
  %v372 = vpop.permute.xlu0 %371
  %373 = vrot.lane.b32.xlu0 %v366, 96
  %v374 = vpop.permute.xlu0 %373
  %v377 = vmul.f32 %v367, %v372
  %v378 = vmul.f32 %v368, %v374
  %v379 = vmul.f32 %v347, 0.0
  %v380 = vmul.f32 %v349, 0.0
  %v381 = vadd.f32 %v377, %v379
  %v382 = vadd.f32 %v378, %v380
  %v383 = vlaneseq
  %v384 = vshrl.u32 %v383, 7
  %v385 = vsub.s32 0, %v384
  %v386 = vrot.slane %v381, %v385
  %v387 = vlaneseq
  %v388 = vshrl.u32 %v387, 7
  %v389 = vsub.s32 0, %v388
  %v390 = vrot.slane %v382, %v389
  %v391 = vsel %vm312, %v386, 0.0
  %v392 = vsel %vm312, %v390, 0.0
  %vm393 = vcmp.eq.s32.totalorder %v169, 0
  %v395 = vlaneseq
  %v396 = vshrl.u32 %v395, 7
  %v397 = vsub.s32 0, %v396
  %v398 = vrot.slane %v188, %v397
  %399 = vrot.lane.b32.xlu0 %v398, 32
  %v400 = vpop.permute.xlu0 %399
  %v402 = vmul.f32 %v381, %v400
  %v403 = vmul.f32 %v382, %v400
  %v406 = vrot.slane %v403, 7
  %vm407 = vcmask 1041409
  %v408 = vsel %vm407, %v406, %v402
  %409 = vrot.lane.b32.xlu0 %v408, 96
  %v410 = vpop.permute.xlu0 %409
  %vm412 = vcmask 254976
  %v413 = vsel %vm412, %v410, 0.0
  %414 = vadd.xlane.f32.xlu0 %v413
  %v415 = vpop.xlane.xlu0 %414
  %v416 = vsel %vm393, %v415, 0.0
  %vm417 = vcmp.eq.s32.totalorder %v167, 1
  %v418 = vsel %vm417, %v310, 0.0
  %v419 = vsel %vm417, %v311, 0.0
  %vm420 = vcmask 64512
  %v421 = vsel %vm420, %v418, 0.0
  %v422 = vrot.slane %v421, 4
  %v423 = vadd.f32 %v421, %v422
  %v424 = vrot.slane %v423, 2
  %v425 = vadd.f32 %v423, %v424
  %v426 = vrot.slane %v425, 1
  %v427 = vadd.f32 %v425, %v426
  %v428 = vsel %vm420, %v419, 0.0
  %v429 = vrot.slane %v428, 4
  %v430 = vadd.f32 %v428, %v429
  %v431 = vrot.slane %v430, 2
  %v432 = vadd.f32 %v430, %v431
  %v433 = vrot.slane %v432, 1
  %v434 = vadd.f32 %v432, %v433
  %v437 = vsel %vm407, %v434, %v427
  %v439 = vadd.f32 %v416, %v437
  %vm440 = vcmask 58368
  %v441 = vsel %vm440, %v439, -inf
  %442 = vmax.xlane.f32.xlu0 %v441
  %v443 = vpop.xlane.xlu0 %442
  %v444 = vsub.f32 %v439, %v443
  %v445 = vmul.f32 %v444, 1.442695
  %v446 = vpow.pop %v445
  %v447 = vsel %vm440, %v446, 0.0
  %448 = vadd.xlane.f32.xlu0 %v447
  %v449 = vpop.xlane.xlu0 %448
  %v450 = vrcp.pop %v449
  %v451 = vmul.f32 %v446, %v450
  %v452 = vlaneseq
  %v453 = vshrl.u32 %v452, 7
  %v454 = vsub.s32 0, %v453
  %v455 = vrot.slane %v451, %v454
  %457 = vbcast.lane.b32.xlu0 %v455, 256
  %v458 = vpop.permute.xlu0 %457
  %v459 = vlaneseq
  %v460 = vshrl.u32 %v459, 7
  %v461 = vsub.s32 1, %v460
  %v462 = vrot.slane %v451, %v461
  %464 = vbcast.lane.b32.xlu0 %v462, 256
  %v465 = vpop.permute.xlu0 %464
  %v466 = vmul.f32 %v458, %v391
  %v467 = vmul.f32 %v465, %v392
  %vm468 = vcmask 523520
  %v469 = vsel %vm468, %v466, 0.0
  %v470 = vrot.slane %v469, 4
  %v471 = vadd.f32 %v469, %v470
  %v472 = vrot.slane %v471, 2
  %v473 = vadd.f32 %v471, %v472
  %v474 = vrot.slane %v473, 1
  %v475 = vadd.f32 %v473, %v474
  %v476 = vsel %vm468, %v467, 0.0
  %v477 = vrot.slane %v476, 4
  %v478 = vadd.f32 %v476, %v477
  %v479 = vrot.slane %v478, 2
  %v480 = vadd.f32 %v478, %v479
  %v481 = vrot.slane %v480, 1
  %v482 = vadd.f32 %v480, %v481
  %v485 = vsel %vm407, %v482, %v475
  %486 = vrot.lane.b32.xlu0 %v485, 96
  %v487 = vpop.permute.xlu0 %486
  %v488 = vsel %vm196, %v487, 0
  %490 = vmatprep.subr.mxu0 0.0
  %491 = vmatpush1.msra.mxu0 %v181
  %492 = vmatprep.subr.mxu0 0.0
  %493 = vmatpush1.msra.mxu0 %v182
  %494 = vmatprep.subr.mxu0 0.0
  %495 = vmatpush1.msra.mxu0 %v183
  %496 = vmatprep.subr.mxu0 0.0
  %497 = vmatpush1.msra.mxu0 %v184
  %498 = vmatprep.subr.mxu0 0.0
  %499 = vmatpush1.msra.mxu0 0.0
  %500 = vmatprep.subr.mxu0 0.0
  %501 = vmatpush1.msra.mxu0 0.0
  %502 = vmatprep.subr.mxu0 0.0
  %503 = vmatpush1.msra.mxu0 0.0
  %504 = vmatprep.subr.mxu0 0.0
  %505 = vmatpush1.msra.mxu0 0.0
  %506 = vmatprep.subr.mxu0 0.0
  %507 = vmatpush1.msra.mxu0 0.0
  %508 = vmatprep.subr.mxu0 0.0
  %509 = vmatpush1.msra.mxu0 0.0
  %510 = vmatprep.subr.mxu0 0.0
  %511 = vmatpush1.msra.mxu0 0.0
  %512 = vmatprep.subr.mxu0 0.0
  %513 = vmatpush1.msra.mxu0 0.0
  %514 = vmatprep.subr.mxu0 0.0
  %515 = vmatpush1.msra.mxu0 0.0
  %516 = vmatprep.subr.mxu0 0.0
  %517 = vmatpush1.msra.mxu0 0.0
  %518 = vmatprep.subr.mxu0 0.0
  %519 = vmatpush1.msra.mxu0 0.0
  %520 = vmatprep.subr.mxu0 0.0
  %521 = vmatpush1.msra.mxu0 0.0
  %522 = vmatprep.subr.mxu0 0.0
  %523 = vmatpush1.msra.mxu0 0.0
  %524 = vmatprep.subr.mxu0 0.0
  %525 = vmatpush1.msra.mxu0 0.0
  %526 = vmatprep.subr.mxu0 0.0
  %527 = vmatpush1.msra.mxu0 0.0
  %528 = vmatprep.subr.mxu0 0.0
  %529 = vmatpush1.msra.mxu0 0.0
  %530 = vmatprep.subr.mxu0 0.0
  %531 = vmatpush1.msra.mxu0 0.0
  %532 = vmatprep.subr.mxu0 0.0
  %533 = vmatpush1.msra.mxu0 0.0
  %534 = vmatprep.subr.mxu0 0.0
  %535 = vmatpush1.msra.mxu0 0.0
  %536 = vmatprep.subr.mxu0 0.0
  %537 = vmatpush1.msra.mxu0 0.0
  %538 = vmatprep.subr.mxu0 0.0
  %539 = vmatpush1.msra.mxu0 0.0
  %540 = vmatprep.subr.mxu0 0.0
  %541 = vmatpush1.msra.mxu0 0.0
  %542 = vmatprep.subr.mxu0 0.0
  %543 = vmatpush1.msra.mxu0 0.0
  %544 = vmatprep.subr.mxu0 0.0
  %545 = vmatpush1.msra.mxu0 0.0
  %546 = vmatprep.subr.mxu0 0.0
  %547 = vmatpush1.msra.mxu0 0.0
  %548 = vmatprep.subr.mxu0 0.0
  %549 = vmatpush1.msra.mxu0 0.0
  %550 = vmatprep.subr.mxu0 0.0
  %551 = vmatpush1.msra.mxu0 0.0
  %552 = vmatprep.subr.mxu0 0.0
  %553 = vmatpush1.msra.mxu0 0.0
  %554 = vmatprep.mubr.f32.mxu0 0.0
  %555 = vmatmul.mubr.f32.gmra.mrb[0].mxu0 %v488
  %v556 = vpop.f32.mrb[0].mxu0
  %v557 = vadd.f32 %v334, %v556
  %v558 = vpop.f32.mrb[0].mxu0
  %559 = vdwg.mxu0
  %v560 = vsel %vm417, %v270, 0.0
  %v561 = vsel %vm417, %v275, 0.0
  %v562 = vsel %vm315, %v560, 0.0
  %v563 = vrot.slane %v562, 4
  %v564 = vadd.f32 %v562, %v563
  %v565 = vrot.slane %v564, 2
  %v566 = vadd.f32 %v564, %v565
  %v567 = vrot.slane %v566, 1
  %v568 = vadd.f32 %v566, %v567
  %v569 = vsel %vm315, %v561, 0.0
  %v570 = vrot.slane %v569, 4
  %v571 = vadd.f32 %v569, %v570
  %v572 = vrot.slane %v571, 2
  %v573 = vadd.f32 %v571, %v572
  %v574 = vrot.slane %v573, 1
  %v575 = vadd.f32 %v573, %v574
  %v577 = vrot.slane %v557, 1
  %v580 = vadd.f32 %v568, %v557
  %v581 = vadd.f32 %v575, %v577
  %v582 = vxor.u32 %v580, 2147483648
  %v583 = vxor.u32 %v581, 2147483648
  %v584 = vmul.f32 %v582, 1.442695
  %v585 = vpow.pop %v584
  %v586 = vmul.f32 %v583, 1.442695
  %v587 = vpow.pop %v586
  %v588 = vadd.f32 %v585, 1.0
  %v589 = vadd.f32 %v587, 1.0
  %v590 = vrcp.pop %v588
  %v591 = vmul.f32 1.0, %v590
  %v592 = vrcp.pop %v589
  %v593 = vmul.f32 1.0, %v592
  %594 = vrot.lane.b32.xlu0 %v557, 64
  %v595 = vpop.permute.xlu0 %594
  %596 = vrot.lane.b32.xlu0 %v577, 64
  %v597 = vpop.permute.xlu0 %596
  %v600 = vmul.f32 %v591, %v595
  %v601 = vmul.f32 %v593, %v597
  %604 = vrot.lane.b32.xlu0 %v600, 64
  %v605 = vpop.permute.xlu0 %604
  %606 = vrot.lane.b32.xlu0 %v601, 64
  %v607 = vpop.permute.xlu0 %606
  %v610 = vadd.f32 %v568, %v605
  %v611 = vadd.f32 %v575, %v607
  %v612 = vtanh.pop %v610
  %v613 = vtanh.pop %v611
  %v614 = vsub.f32 1.0, %v591
  %v615 = vsub.f32 1.0, %v593
  %618 = vrot.lane.b32.xlu0 %v612, 96
  %v619 = vpop.permute.xlu0 %618
  %620 = vrot.lane.b32.xlu0 %v613, 96
  %v621 = vpop.permute.xlu0 %620
  %v624 = vmul.f32 %v614, %v619
  %v625 = vmul.f32 %v615, %v621
  %v626 = vmul.f32 %v591, %v475
  %v627 = vmul.f32 %v593, %v482
  %v628 = vadd.f32 %v624, %v626
  %v629 = vadd.f32 %v625, %v627
  %v630 = vlaneseq
  %v631 = vshrl.u32 %v630, 7
  %v632 = vsub.s32 0, %v631
  %v633 = vrot.slane %v628, %v632
  %v634 = vlaneseq
  %v635 = vshrl.u32 %v634, 7
  %v636 = vsub.s32 0, %v635
  %v637 = vrot.slane %v629, %v636
  %v638 = vsel %vm417, %v633, %v391
  %v639 = vsel %vm417, %v637, %v392
  %vm640 = vcmp.eq.s32.totalorder %v169, 1
  %v641 = vmul.f32 %v628, %v400
  %v642 = vmul.f32 %v629, %v400
  %v645 = vrot.slane %v642, 7
  %v646 = vsel %vm407, %v645, %v641
  %647 = vrot.lane.b32.xlu0 %v646, 96
  %v648 = vpop.permute.xlu0 %647
  %v650 = vsel %vm412, %v648, 0.0
  %651 = vadd.xlane.f32.xlu0 %v650
  %v652 = vpop.xlane.xlu0 %651
  %v653 = vsel %vm640, %v652, %v416
  %vm654 = vcmp.eq.s32.totalorder %v167, 2
  %v655 = vsel %vm654, %v310, 0.0
  %v656 = vsel %vm654, %v311, 0.0
  %v657 = vsel %vm420, %v655, 0.0
  %v658 = vrot.slane %v657, 4
  %v659 = vadd.f32 %v657, %v658
  %v660 = vrot.slane %v659, 2
  %v661 = vadd.f32 %v659, %v660
  %v662 = vrot.slane %v661, 1
  %v663 = vadd.f32 %v661, %v662
  %v664 = vsel %vm420, %v656, 0.0
  %v665 = vrot.slane %v664, 4
  %v666 = vadd.f32 %v664, %v665
  %v667 = vrot.slane %v666, 2
  %v668 = vadd.f32 %v666, %v667
  %v669 = vrot.slane %v668, 1
  %v670 = vadd.f32 %v668, %v669
  %v673 = vsel %vm407, %v670, %v663
  %v675 = vadd.f32 %v653, %v673
  %v676 = vsel %vm440, %v675, -inf
  %677 = vmax.xlane.f32.xlu0 %v676
  %v678 = vpop.xlane.xlu0 %677
  %v679 = vsub.f32 %v675, %v678
  %v680 = vmul.f32 %v679, 1.442695
  %v681 = vpow.pop %v680
  %v682 = vsel %vm440, %v681, 0.0
  %683 = vadd.xlane.f32.xlu0 %v682
  %v684 = vpop.xlane.xlu0 %683
  %v685 = vrcp.pop %v684
  %v686 = vmul.f32 %v681, %v685
  %v687 = vlaneseq
  %v688 = vshrl.u32 %v687, 7
  %v689 = vsub.s32 0, %v688
  %v690 = vrot.slane %v686, %v689
  %692 = vbcast.lane.b32.xlu0 %v690, 256
  %v693 = vpop.permute.xlu0 %692
  %v694 = vlaneseq
  %v695 = vshrl.u32 %v694, 7
  %v696 = vsub.s32 1, %v695
  %v697 = vrot.slane %v686, %v696
  %699 = vbcast.lane.b32.xlu0 %v697, 256
  %v700 = vpop.permute.xlu0 %699
  %v701 = vmul.f32 %v693, %v638
  %v702 = vmul.f32 %v700, %v639
  %v703 = vsel %vm468, %v701, 0.0
  %v704 = vrot.slane %v703, 4
  %v705 = vadd.f32 %v703, %v704
  %v706 = vrot.slane %v705, 2
  %v707 = vadd.f32 %v705, %v706
  %v708 = vrot.slane %v707, 1
  %v709 = vadd.f32 %v707, %v708
  %v710 = vsel %vm468, %v702, 0.0
  %v711 = vrot.slane %v710, 4
  %v712 = vadd.f32 %v710, %v711
  %v713 = vrot.slane %v712, 2
  %v714 = vadd.f32 %v712, %v713
  %v715 = vrot.slane %v714, 1
  %v716 = vadd.f32 %v714, %v715
  %v719 = vsel %vm407, %v716, %v709
  %720 = vrot.lane.b32.xlu0 %v719, 96
  %v721 = vpop.permute.xlu0 %720
  %v722 = vsel %vm196, %v721, 0
  %724 = vmatprep.subr.mxu0 0.0
  %725 = vmatpush1.msra.mxu0 %v181
  %726 = vmatprep.subr.mxu0 0.0
  %727 = vmatpush1.msra.mxu0 %v182
  %728 = vmatprep.subr.mxu0 0.0
  %729 = vmatpush1.msra.mxu0 %v183
  %730 = vmatprep.subr.mxu0 0.0
  %731 = vmatpush1.msra.mxu0 %v184
  %732 = vmatprep.subr.mxu0 0.0
  %733 = vmatpush1.msra.mxu0 0.0
  %734 = vmatprep.subr.mxu0 0.0
  %735 = vmatpush1.msra.mxu0 0.0
  %736 = vmatprep.subr.mxu0 0.0
  %737 = vmatpush1.msra.mxu0 0.0
  %738 = vmatprep.subr.mxu0 0.0
  %739 = vmatpush1.msra.mxu0 0.0
  %740 = vmatprep.subr.mxu0 0.0
  %741 = vmatpush1.msra.mxu0 0.0
  %742 = vmatprep.subr.mxu0 0.0
  %743 = vmatpush1.msra.mxu0 0.0
  %744 = vmatprep.subr.mxu0 0.0
  %745 = vmatpush1.msra.mxu0 0.0
  %746 = vmatprep.subr.mxu0 0.0
  %747 = vmatpush1.msra.mxu0 0.0
  %748 = vmatprep.subr.mxu0 0.0
  %749 = vmatpush1.msra.mxu0 0.0
  %750 = vmatprep.subr.mxu0 0.0
  %751 = vmatpush1.msra.mxu0 0.0
  %752 = vmatprep.subr.mxu0 0.0
  %753 = vmatpush1.msra.mxu0 0.0
  %754 = vmatprep.subr.mxu0 0.0
  %755 = vmatpush1.msra.mxu0 0.0
  %756 = vmatprep.subr.mxu0 0.0
  %757 = vmatpush1.msra.mxu0 0.0
  %758 = vmatprep.subr.mxu0 0.0
  %759 = vmatpush1.msra.mxu0 0.0
  %760 = vmatprep.subr.mxu0 0.0
  %761 = vmatpush1.msra.mxu0 0.0
  %762 = vmatprep.subr.mxu0 0.0
  %763 = vmatpush1.msra.mxu0 0.0
  %764 = vmatprep.subr.mxu0 0.0
  %765 = vmatpush1.msra.mxu0 0.0
  %766 = vmatprep.subr.mxu0 0.0
  %767 = vmatpush1.msra.mxu0 0.0
  %768 = vmatprep.subr.mxu0 0.0
  %769 = vmatpush1.msra.mxu0 0.0
  %770 = vmatprep.subr.mxu0 0.0
  %771 = vmatpush1.msra.mxu0 0.0
  %772 = vmatprep.subr.mxu0 0.0
  %773 = vmatpush1.msra.mxu0 0.0
  %774 = vmatprep.subr.mxu0 0.0
  %775 = vmatpush1.msra.mxu0 0.0
  %776 = vmatprep.subr.mxu0 0.0
  %777 = vmatpush1.msra.mxu0 0.0
  %778 = vmatprep.subr.mxu0 0.0
  %779 = vmatpush1.msra.mxu0 0.0
  %780 = vmatprep.subr.mxu0 0.0
  %781 = vmatpush1.msra.mxu0 0.0
  %782 = vmatprep.subr.mxu0 0.0
  %783 = vmatpush1.msra.mxu0 0.0
  %784 = vmatprep.subr.mxu0 0.0
  %785 = vmatpush1.msra.mxu0 0.0
  %786 = vmatprep.subr.mxu0 0.0
  %787 = vmatpush1.msra.mxu0 0.0
  %788 = vmatprep.mubr.f32.mxu0 0.0
  %789 = vmatmul.mubr.f32.gmra.mrb[0].mxu0 %v722
  %v790 = vpop.f32.mrb[0].mxu0
  %v791 = vadd.f32 %v334, %v790
  %v792 = vpop.f32.mrb[0].mxu0
  %793 = vdwg.mxu0
  %v794 = vsel %vm654, %v270, 0.0
  %v795 = vsel %vm654, %v275, 0.0
  %v796 = vsel %vm315, %v794, 0.0
  %v797 = vrot.slane %v796, 4
  %v798 = vadd.f32 %v796, %v797
  %v799 = vrot.slane %v798, 2
  %v800 = vadd.f32 %v798, %v799
  %v801 = vrot.slane %v800, 1
  %v802 = vadd.f32 %v800, %v801
  %v803 = vsel %vm315, %v795, 0.0
  %v804 = vrot.slane %v803, 4
  %v805 = vadd.f32 %v803, %v804
  %v806 = vrot.slane %v805, 2
  %v807 = vadd.f32 %v805, %v806
  %v808 = vrot.slane %v807, 1
  %v809 = vadd.f32 %v807, %v808
  %v811 = vrot.slane %v791, 1
  %v814 = vadd.f32 %v802, %v791
  %v815 = vadd.f32 %v809, %v811
  %v816 = vxor.u32 %v814, 2147483648
  %v817 = vxor.u32 %v815, 2147483648
  %v818 = vmul.f32 %v816, 1.442695
  %v819 = vpow.pop %v818
  %v820 = vmul.f32 %v817, 1.442695
  %v821 = vpow.pop %v820
  %v822 = vadd.f32 %v819, 1.0
  %v823 = vadd.f32 %v821, 1.0
  %v824 = vrcp.pop %v822
  %v825 = vmul.f32 1.0, %v824
  %v826 = vrcp.pop %v823
  %v827 = vmul.f32 1.0, %v826
  %828 = vrot.lane.b32.xlu0 %v791, 64
  %v829 = vpop.permute.xlu0 %828
  %830 = vrot.lane.b32.xlu0 %v811, 64
  %v831 = vpop.permute.xlu0 %830
  %v834 = vmul.f32 %v825, %v829
  %v835 = vmul.f32 %v827, %v831
  %838 = vrot.lane.b32.xlu0 %v834, 64
  %v839 = vpop.permute.xlu0 %838
  %840 = vrot.lane.b32.xlu0 %v835, 64
  %v841 = vpop.permute.xlu0 %840
  %v844 = vadd.f32 %v802, %v839
  %v845 = vadd.f32 %v809, %v841
  %v846 = vtanh.pop %v844
  %v847 = vtanh.pop %v845
  %v848 = vsub.f32 1.0, %v825
  %v849 = vsub.f32 1.0, %v827
  %852 = vrot.lane.b32.xlu0 %v846, 96
  %v853 = vpop.permute.xlu0 %852
  %854 = vrot.lane.b32.xlu0 %v847, 96
  %v855 = vpop.permute.xlu0 %854
  %v858 = vmul.f32 %v848, %v853
  %v859 = vmul.f32 %v849, %v855
  %v860 = vmul.f32 %v825, %v709
  %v861 = vmul.f32 %v827, %v716
  %v862 = vadd.f32 %v858, %v860
  %v863 = vadd.f32 %v859, %v861
  %v864 = vlaneseq
  %v865 = vshrl.u32 %v864, 7
  %v866 = vsub.s32 0, %v865
  %v867 = vrot.slane %v862, %v866
  %v868 = vlaneseq
  %v869 = vshrl.u32 %v868, 7
  %v870 = vsub.s32 0, %v869
  %v871 = vrot.slane %v863, %v870
  %v872 = vsel %vm654, %v867, %v638
  %v873 = vsel %vm654, %v871, %v639
  %vm874 = vcmp.eq.s32.totalorder %v169, 2
  %v875 = vmul.f32 %v862, %v400
  %v876 = vmul.f32 %v863, %v400
  %v879 = vrot.slane %v876, 7
  %v880 = vsel %vm407, %v879, %v875
  %881 = vrot.lane.b32.xlu0 %v880, 96
  %v882 = vpop.permute.xlu0 %881
  %v884 = vsel %vm412, %v882, 0.0
  %885 = vadd.xlane.f32.xlu0 %v884
  %v886 = vpop.xlane.xlu0 %885
  %v887 = vsel %vm874, %v886, %v653
  %vm888 = vcmp.eq.s32.totalorder %v167, 3
  %v889 = vsel %vm888, %v310, 0.0
  %v890 = vsel %vm888, %v311, 0.0
  %v891 = vsel %vm420, %v889, 0.0
  %v892 = vrot.slane %v891, 4
  %v893 = vadd.f32 %v891, %v892
  %v894 = vrot.slane %v893, 2
  %v895 = vadd.f32 %v893, %v894
  %v896 = vrot.slane %v895, 1
  %v897 = vadd.f32 %v895, %v896
  %v898 = vsel %vm420, %v890, 0.0
  %v899 = vrot.slane %v898, 4
  %v900 = vadd.f32 %v898, %v899
  %v901 = vrot.slane %v900, 2
  %v902 = vadd.f32 %v900, %v901
  %v903 = vrot.slane %v902, 1
  %v904 = vadd.f32 %v902, %v903
  %v907 = vsel %vm407, %v904, %v897
  %v909 = vadd.f32 %v887, %v907
  %v910 = vsel %vm440, %v909, -inf
  %911 = vmax.xlane.f32.xlu0 %v910
  %v912 = vpop.xlane.xlu0 %911
  %v913 = vsub.f32 %v909, %v912
  %v914 = vmul.f32 %v913, 1.442695
  %v915 = vpow.pop %v914
  %v916 = vsel %vm440, %v915, 0.0
  %917 = vadd.xlane.f32.xlu0 %v916
  %v918 = vpop.xlane.xlu0 %917
  %v919 = vrcp.pop %v918
  %v920 = vmul.f32 %v915, %v919
  %v921 = vlaneseq
  %v922 = vshrl.u32 %v921, 7
  %v923 = vsub.s32 0, %v922
  %v924 = vrot.slane %v920, %v923
  %926 = vbcast.lane.b32.xlu0 %v924, 256
  %v927 = vpop.permute.xlu0 %926
  %v928 = vlaneseq
  %v929 = vshrl.u32 %v928, 7
  %v930 = vsub.s32 1, %v929
  %v931 = vrot.slane %v920, %v930
  %933 = vbcast.lane.b32.xlu0 %v931, 256
  %v934 = vpop.permute.xlu0 %933
  %v935 = vmul.f32 %v927, %v872
  %v936 = vmul.f32 %v934, %v873
  %v937 = vsel %vm468, %v935, 0.0
  %v938 = vrot.slane %v937, 4
  %v939 = vadd.f32 %v937, %v938
  %v940 = vrot.slane %v939, 2
  %v941 = vadd.f32 %v939, %v940
  %v942 = vrot.slane %v941, 1
  %v943 = vadd.f32 %v941, %v942
  %v944 = vsel %vm468, %v936, 0.0
  %v945 = vrot.slane %v944, 4
  %v946 = vadd.f32 %v944, %v945
  %v947 = vrot.slane %v946, 2
  %v948 = vadd.f32 %v946, %v947
  %v949 = vrot.slane %v948, 1
  %v950 = vadd.f32 %v948, %v949
  %v953 = vsel %vm407, %v950, %v943
  %954 = vrot.lane.b32.xlu0 %v953, 96
  %v955 = vpop.permute.xlu0 %954
  %v956 = vsel %vm196, %v955, 0
  %958 = vmatprep.subr.mxu0 0.0
  %959 = vmatpush1.msra.mxu0 %v181
  %960 = vmatprep.subr.mxu0 0.0
  %961 = vmatpush1.msra.mxu0 %v182
  %962 = vmatprep.subr.mxu0 0.0
  %963 = vmatpush1.msra.mxu0 %v183
  %964 = vmatprep.subr.mxu0 0.0
  %965 = vmatpush1.msra.mxu0 %v184
  %966 = vmatprep.subr.mxu0 0.0
  %967 = vmatpush1.msra.mxu0 0.0
  %968 = vmatprep.subr.mxu0 0.0
  %969 = vmatpush1.msra.mxu0 0.0
  %970 = vmatprep.subr.mxu0 0.0
  %971 = vmatpush1.msra.mxu0 0.0
  %972 = vmatprep.subr.mxu0 0.0
  %973 = vmatpush1.msra.mxu0 0.0
  %974 = vmatprep.subr.mxu0 0.0
  %975 = vmatpush1.msra.mxu0 0.0
  %976 = vmatprep.subr.mxu0 0.0
  %977 = vmatpush1.msra.mxu0 0.0
  %978 = vmatprep.subr.mxu0 0.0
  %979 = vmatpush1.msra.mxu0 0.0
  %980 = vmatprep.subr.mxu0 0.0
  %981 = vmatpush1.msra.mxu0 0.0
  %982 = vmatprep.subr.mxu0 0.0
  %983 = vmatpush1.msra.mxu0 0.0
  %984 = vmatprep.subr.mxu0 0.0
  %985 = vmatpush1.msra.mxu0 0.0
  %986 = vmatprep.subr.mxu0 0.0
  %987 = vmatpush1.msra.mxu0 0.0
  %988 = vmatprep.subr.mxu0 0.0
  %989 = vmatpush1.msra.mxu0 0.0
  %990 = vmatprep.subr.mxu0 0.0
  %991 = vmatpush1.msra.mxu0 0.0
  %992 = vmatprep.subr.mxu0 0.0
  %993 = vmatpush1.msra.mxu0 0.0
  %994 = vmatprep.subr.mxu0 0.0
  %995 = vmatpush1.msra.mxu0 0.0
  %996 = vmatprep.subr.mxu0 0.0
  %997 = vmatpush1.msra.mxu0 0.0
  %998 = vmatprep.subr.mxu0 0.0
  %999 = vmatpush1.msra.mxu0 0.0
  %1000 = vmatprep.subr.mxu0 0.0
  %1001 = vmatpush1.msra.mxu0 0.0
  %1002 = vmatprep.subr.mxu0 0.0
  %1003 = vmatpush1.msra.mxu0 0.0
  %1004 = vmatprep.subr.mxu0 0.0
  %1005 = vmatpush1.msra.mxu0 0.0
  %1006 = vmatprep.subr.mxu0 0.0
  %1007 = vmatpush1.msra.mxu0 0.0
  %1008 = vmatprep.subr.mxu0 0.0
  %1009 = vmatpush1.msra.mxu0 0.0
  %1010 = vmatprep.subr.mxu0 0.0
  %1011 = vmatpush1.msra.mxu0 0.0
  %1012 = vmatprep.subr.mxu0 0.0
  %1013 = vmatpush1.msra.mxu0 0.0
  %1014 = vmatprep.subr.mxu0 0.0
  %1015 = vmatpush1.msra.mxu0 0.0
  %1016 = vmatprep.subr.mxu0 0.0
  %1017 = vmatpush1.msra.mxu0 0.0
  %1018 = vmatprep.subr.mxu0 0.0
  %1019 = vmatpush1.msra.mxu0 0.0
  %1020 = vmatprep.subr.mxu0 0.0
  %1021 = vmatpush1.msra.mxu0 0.0
  %1022 = vmatprep.mubr.f32.mxu0 0.0
  %1023 = vmatmul.mubr.f32.gmra.mrb[0].mxu0 %v956
  %v1024 = vpop.f32.mrb[0].mxu0
  %v1025 = vadd.f32 %v334, %v1024
  %v1026 = vpop.f32.mrb[0].mxu0
  %1027 = vdwg.mxu0
  %v1028 = vsel %vm888, %v270, 0.0
  %v1029 = vsel %vm888, %v275, 0.0
  %v1030 = vsel %vm315, %v1028, 0.0
  %v1031 = vrot.slane %v1030, 4
  %v1032 = vadd.f32 %v1030, %v1031
  %v1033 = vrot.slane %v1032, 2
  %v1034 = vadd.f32 %v1032, %v1033
  %v1035 = vrot.slane %v1034, 1
  %v1036 = vadd.f32 %v1034, %v1035
  %v1037 = vsel %vm315, %v1029, 0.0
  %v1038 = vrot.slane %v1037, 4
  %v1039 = vadd.f32 %v1037, %v1038
  %v1040 = vrot.slane %v1039, 2
  %v1041 = vadd.f32 %v1039, %v1040
  %v1042 = vrot.slane %v1041, 1
  %v1043 = vadd.f32 %v1041, %v1042
  %v1045 = vrot.slane %v1025, 1
  %v1048 = vadd.f32 %v1036, %v1025
  %v1049 = vadd.f32 %v1043, %v1045
  %v1050 = vxor.u32 %v1048, 2147483648
  %v1051 = vxor.u32 %v1049, 2147483648
  %v1052 = vmul.f32 %v1050, 1.442695
  %v1053 = vpow.pop %v1052
  %v1054 = vmul.f32 %v1051, 1.442695
  %v1055 = vpow.pop %v1054
  %v1056 = vadd.f32 %v1053, 1.0
  %v1057 = vadd.f32 %v1055, 1.0
  %v1058 = vrcp.pop %v1056
  %v1059 = vmul.f32 1.0, %v1058
  %v1060 = vrcp.pop %v1057
  %v1061 = vmul.f32 1.0, %v1060
  %1062 = vrot.lane.b32.xlu0 %v1025, 64
  %v1063 = vpop.permute.xlu0 %1062
  %1064 = vrot.lane.b32.xlu0 %v1045, 64
  %v1065 = vpop.permute.xlu0 %1064
  %v1068 = vmul.f32 %v1059, %v1063
  %v1069 = vmul.f32 %v1061, %v1065
  %1072 = vrot.lane.b32.xlu0 %v1068, 64
  %v1073 = vpop.permute.xlu0 %1072
  %1074 = vrot.lane.b32.xlu0 %v1069, 64
  %v1075 = vpop.permute.xlu0 %1074
  %v1078 = vadd.f32 %v1036, %v1073
  %v1079 = vadd.f32 %v1043, %v1075
  %v1080 = vtanh.pop %v1078
  %v1081 = vtanh.pop %v1079
  %v1082 = vsub.f32 1.0, %v1059
  %v1083 = vsub.f32 1.0, %v1061
  %1086 = vrot.lane.b32.xlu0 %v1080, 96
  %v1087 = vpop.permute.xlu0 %1086
  %1088 = vrot.lane.b32.xlu0 %v1081, 96
  %v1089 = vpop.permute.xlu0 %1088
  %v1092 = vmul.f32 %v1082, %v1087
  %v1093 = vmul.f32 %v1083, %v1089
  %v1094 = vmul.f32 %v1059, %v943
  %v1095 = vmul.f32 %v1061, %v950
  %v1096 = vadd.f32 %v1092, %v1094
  %v1097 = vadd.f32 %v1093, %v1095
  %v1098 = vlaneseq
  %v1099 = vshrl.u32 %v1098, 7
  %v1100 = vsub.s32 0, %v1099
  %v1101 = vrot.slane %v1096, %v1100
  %v1102 = vlaneseq
  %v1103 = vshrl.u32 %v1102, 7
  %v1104 = vsub.s32 0, %v1103
  %v1105 = vrot.slane %v1097, %v1104
  %v1106 = vsel %vm888, %v1101, %v872
  %v1107 = vsel %vm888, %v1105, %v873
  %vm1108 = vcmp.eq.s32.totalorder %v169, 3
  %v1109 = vmul.f32 %v1096, %v400
  %v1110 = vmul.f32 %v1097, %v400
  %v1113 = vrot.slane %v1110, 7
  %v1114 = vsel %vm407, %v1113, %v1109
  %1115 = vrot.lane.b32.xlu0 %v1114, 96
  %v1116 = vpop.permute.xlu0 %1115
  %v1118 = vsel %vm412, %v1116, 0.0
  %1119 = vadd.xlane.f32.xlu0 %v1118
  %v1120 = vpop.xlane.xlu0 %1119
  %v1121 = vsel %vm1108, %v1120, %v887
  %vm1122 = vcmp.eq.s32.totalorder %v167, 4
  %v1123 = vsel %vm1122, %v310, 0.0
  %v1124 = vsel %vm1122, %v311, 0.0
  %v1125 = vsel %vm420, %v1123, 0.0
  %v1126 = vrot.slane %v1125, 4
  %v1127 = vadd.f32 %v1125, %v1126
  %v1128 = vrot.slane %v1127, 2
  %v1129 = vadd.f32 %v1127, %v1128
  %v1130 = vrot.slane %v1129, 1
  %v1131 = vadd.f32 %v1129, %v1130
  %v1132 = vsel %vm420, %v1124, 0.0
  %v1133 = vrot.slane %v1132, 4
  %v1134 = vadd.f32 %v1132, %v1133
  %v1135 = vrot.slane %v1134, 2
  %v1136 = vadd.f32 %v1134, %v1135
  %v1137 = vrot.slane %v1136, 1
  %v1138 = vadd.f32 %v1136, %v1137
  %v1141 = vsel %vm407, %v1138, %v1131
  %v1143 = vadd.f32 %v1121, %v1141
  %v1144 = vsel %vm440, %v1143, -inf
  %1145 = vmax.xlane.f32.xlu0 %v1144
  %v1146 = vpop.xlane.xlu0 %1145
  %v1147 = vsub.f32 %v1143, %v1146
  %v1148 = vmul.f32 %v1147, 1.442695
  %v1149 = vpow.pop %v1148
  %v1150 = vsel %vm440, %v1149, 0.0
  %1151 = vadd.xlane.f32.xlu0 %v1150
  %v1152 = vpop.xlane.xlu0 %1151
  %v1153 = vrcp.pop %v1152
  %v1154 = vmul.f32 %v1149, %v1153
  %v1155 = vlaneseq
  %v1156 = vshrl.u32 %v1155, 7
  %v1157 = vsub.s32 0, %v1156
  %v1158 = vrot.slane %v1154, %v1157
  %1160 = vbcast.lane.b32.xlu0 %v1158, 256
  %v1161 = vpop.permute.xlu0 %1160
  %v1162 = vlaneseq
  %v1163 = vshrl.u32 %v1162, 7
  %v1164 = vsub.s32 1, %v1163
  %v1165 = vrot.slane %v1154, %v1164
  %1167 = vbcast.lane.b32.xlu0 %v1165, 256
  %v1168 = vpop.permute.xlu0 %1167
  %v1169 = vmul.f32 %v1161, %v1106
  %v1170 = vmul.f32 %v1168, %v1107
  %v1171 = vsel %vm468, %v1169, 0.0
  %v1172 = vrot.slane %v1171, 4
  %v1173 = vadd.f32 %v1171, %v1172
  %v1174 = vrot.slane %v1173, 2
  %v1175 = vadd.f32 %v1173, %v1174
  %v1176 = vrot.slane %v1175, 1
  %v1177 = vadd.f32 %v1175, %v1176
  %v1178 = vsel %vm468, %v1170, 0.0
  %v1179 = vrot.slane %v1178, 4
  %v1180 = vadd.f32 %v1178, %v1179
  %v1181 = vrot.slane %v1180, 2
  %v1182 = vadd.f32 %v1180, %v1181
  %v1183 = vrot.slane %v1182, 1
  %v1184 = vadd.f32 %v1182, %v1183
  %v1187 = vsel %vm407, %v1184, %v1177
  %1188 = vrot.lane.b32.xlu0 %v1187, 96
  %v1189 = vpop.permute.xlu0 %1188
  %v1190 = vsel %vm196, %v1189, 0
  %1192 = vmatprep.subr.mxu0 0.0
  %1193 = vmatpush1.msra.mxu0 %v181
  %1194 = vmatprep.subr.mxu0 0.0
  %1195 = vmatpush1.msra.mxu0 %v182
  %1196 = vmatprep.subr.mxu0 0.0
  %1197 = vmatpush1.msra.mxu0 %v183
  %1198 = vmatprep.subr.mxu0 0.0
  %1199 = vmatpush1.msra.mxu0 %v184
  %1200 = vmatprep.subr.mxu0 0.0
  %1201 = vmatpush1.msra.mxu0 0.0
  %1202 = vmatprep.subr.mxu0 0.0
  %1203 = vmatpush1.msra.mxu0 0.0
  %1204 = vmatprep.subr.mxu0 0.0
  %1205 = vmatpush1.msra.mxu0 0.0
  %1206 = vmatprep.subr.mxu0 0.0
  %1207 = vmatpush1.msra.mxu0 0.0
  %1208 = vmatprep.subr.mxu0 0.0
  %1209 = vmatpush1.msra.mxu0 0.0
  %1210 = vmatprep.subr.mxu0 0.0
  %1211 = vmatpush1.msra.mxu0 0.0
  %1212 = vmatprep.subr.mxu0 0.0
  %1213 = vmatpush1.msra.mxu0 0.0
  %1214 = vmatprep.subr.mxu0 0.0
  %1215 = vmatpush1.msra.mxu0 0.0
  %1216 = vmatprep.subr.mxu0 0.0
  %1217 = vmatpush1.msra.mxu0 0.0
  %1218 = vmatprep.subr.mxu0 0.0
  %1219 = vmatpush1.msra.mxu0 0.0
  %1220 = vmatprep.subr.mxu0 0.0
  %1221 = vmatpush1.msra.mxu0 0.0
  %1222 = vmatprep.subr.mxu0 0.0
  %1223 = vmatpush1.msra.mxu0 0.0
  %1224 = vmatprep.subr.mxu0 0.0
  %1225 = vmatpush1.msra.mxu0 0.0
  %1226 = vmatprep.subr.mxu0 0.0
  %1227 = vmatpush1.msra.mxu0 0.0
  %1228 = vmatprep.subr.mxu0 0.0
  %1229 = vmatpush1.msra.mxu0 0.0
  %1230 = vmatprep.subr.mxu0 0.0
  %1231 = vmatpush1.msra.mxu0 0.0
  %1232 = vmatprep.subr.mxu0 0.0
  %1233 = vmatpush1.msra.mxu0 0.0
  %1234 = vmatprep.subr.mxu0 0.0
  %1235 = vmatpush1.msra.mxu0 0.0
  %1236 = vmatprep.subr.mxu0 0.0
  %1237 = vmatpush1.msra.mxu0 0.0
  %1238 = vmatprep.subr.mxu0 0.0
  %1239 = vmatpush1.msra.mxu0 0.0
  %1240 = vmatprep.subr.mxu0 0.0
  %1241 = vmatpush1.msra.mxu0 0.0
  %1242 = vmatprep.subr.mxu0 0.0
  %1243 = vmatpush1.msra.mxu0 0.0
  %1244 = vmatprep.subr.mxu0 0.0
  %1245 = vmatpush1.msra.mxu0 0.0
  %1246 = vmatprep.subr.mxu0 0.0
  %1247 = vmatpush1.msra.mxu0 0.0
  %1248 = vmatprep.subr.mxu0 0.0
  %1249 = vmatpush1.msra.mxu0 0.0
  %1250 = vmatprep.subr.mxu0 0.0
  %1251 = vmatpush1.msra.mxu0 0.0
  %1252 = vmatprep.subr.mxu0 0.0
  %1253 = vmatpush1.msra.mxu0 0.0
  %1254 = vmatprep.subr.mxu0 0.0
  %1255 = vmatpush1.msra.mxu0 0.0
  %1256 = vmatprep.mubr.f32.mxu0 0.0
  %1257 = vmatmul.mubr.f32.gmra.mrb[0].mxu0 %v1190
  %v1258 = vpop.f32.mrb[0].mxu0
  %v1259 = vadd.f32 %v334, %v1258
  %v1260 = vpop.f32.mrb[0].mxu0
  %1261 = vdwg.mxu0
  %v1262 = vsel %vm1122, %v270, 0.0
  %v1263 = vsel %vm1122, %v275, 0.0
  %v1264 = vsel %vm315, %v1262, 0.0
  %v1265 = vrot.slane %v1264, 4
  %v1266 = vadd.f32 %v1264, %v1265
  %v1267 = vrot.slane %v1266, 2
  %v1268 = vadd.f32 %v1266, %v1267
  %v1269 = vrot.slane %v1268, 1
  %v1270 = vadd.f32 %v1268, %v1269
  %v1271 = vsel %vm315, %v1263, 0.0
  %v1272 = vrot.slane %v1271, 4
  %v1273 = vadd.f32 %v1271, %v1272
  %v1274 = vrot.slane %v1273, 2
  %v1275 = vadd.f32 %v1273, %v1274
  %v1276 = vrot.slane %v1275, 1
  %v1277 = vadd.f32 %v1275, %v1276
  %v1279 = vrot.slane %v1259, 1
  %v1282 = vadd.f32 %v1270, %v1259
  %v1283 = vadd.f32 %v1277, %v1279
  %v1284 = vxor.u32 %v1282, 2147483648
  %v1285 = vxor.u32 %v1283, 2147483648
  %v1286 = vmul.f32 %v1284, 1.442695
  %v1287 = vpow.pop %v1286
  %v1288 = vmul.f32 %v1285, 1.442695
  %v1289 = vpow.pop %v1288
  %v1290 = vadd.f32 %v1287, 1.0
  %v1291 = vadd.f32 %v1289, 1.0
  %v1292 = vrcp.pop %v1290
  %v1293 = vmul.f32 1.0, %v1292
  %v1294 = vrcp.pop %v1291
  %v1295 = vmul.f32 1.0, %v1294
  %1296 = vrot.lane.b32.xlu0 %v1259, 64
  %v1297 = vpop.permute.xlu0 %1296
  %1298 = vrot.lane.b32.xlu0 %v1279, 64
  %v1299 = vpop.permute.xlu0 %1298
  %v1302 = vmul.f32 %v1293, %v1297
  %v1303 = vmul.f32 %v1295, %v1299
  %1306 = vrot.lane.b32.xlu0 %v1302, 64
  %v1307 = vpop.permute.xlu0 %1306
  %1308 = vrot.lane.b32.xlu0 %v1303, 64
  %v1309 = vpop.permute.xlu0 %1308
  %v1312 = vadd.f32 %v1270, %v1307
  %v1313 = vadd.f32 %v1277, %v1309
  %v1314 = vtanh.pop %v1312
  %v1315 = vtanh.pop %v1313
  %v1316 = vsub.f32 1.0, %v1293
  %v1317 = vsub.f32 1.0, %v1295
  %1320 = vrot.lane.b32.xlu0 %v1314, 96
  %v1321 = vpop.permute.xlu0 %1320
  %1322 = vrot.lane.b32.xlu0 %v1315, 96
  %v1323 = vpop.permute.xlu0 %1322
  %v1326 = vmul.f32 %v1316, %v1321
  %v1327 = vmul.f32 %v1317, %v1323
  %v1328 = vmul.f32 %v1293, %v1177
  %v1329 = vmul.f32 %v1295, %v1184
  %v1330 = vadd.f32 %v1326, %v1328
  %v1331 = vadd.f32 %v1327, %v1329
  %v1332 = vlaneseq
  %v1333 = vshrl.u32 %v1332, 7
  %v1334 = vsub.s32 0, %v1333
  %v1335 = vrot.slane %v1330, %v1334
  %v1336 = vlaneseq
  %v1337 = vshrl.u32 %v1336, 7
  %v1338 = vsub.s32 0, %v1337
  %v1339 = vrot.slane %v1331, %v1338
  %v1340 = vsel %vm1122, %v1335, %v1106
  %v1341 = vsel %vm1122, %v1339, %v1107
  %vm1342 = vcmp.eq.s32.totalorder %v169, 4
  %v1343 = vmul.f32 %v1330, %v400
  %v1344 = vmul.f32 %v1331, %v400
  %v1347 = vrot.slane %v1344, 7
  %v1348 = vsel %vm407, %v1347, %v1343
  %1349 = vrot.lane.b32.xlu0 %v1348, 96
  %v1350 = vpop.permute.xlu0 %1349
  %v1352 = vsel %vm412, %v1350, 0.0
  %1353 = vadd.xlane.f32.xlu0 %v1352
  %v1354 = vpop.xlane.xlu0 %1353
  %v1355 = vsel %vm1342, %v1354, %v1121
  %vm1356 = vcmp.eq.s32.totalorder %v167, 5
  %v1357 = vsel %vm1356, %v310, 0.0
  %v1358 = vsel %vm1356, %v311, 0.0
  %v1359 = vsel %vm420, %v1357, 0.0
  %v1360 = vrot.slane %v1359, 4
  %v1361 = vadd.f32 %v1359, %v1360
  %v1362 = vrot.slane %v1361, 2
  %v1363 = vadd.f32 %v1361, %v1362
  %v1364 = vrot.slane %v1363, 1
  %v1365 = vadd.f32 %v1363, %v1364
  %v1366 = vsel %vm420, %v1358, 0.0
  %v1367 = vrot.slane %v1366, 4
  %v1368 = vadd.f32 %v1366, %v1367
  %v1369 = vrot.slane %v1368, 2
  %v1370 = vadd.f32 %v1368, %v1369
  %v1371 = vrot.slane %v1370, 1
  %v1372 = vadd.f32 %v1370, %v1371
  %v1375 = vsel %vm407, %v1372, %v1365
  %v1377 = vadd.f32 %v1355, %v1375
  %v1378 = vsel %vm440, %v1377, -inf
  %1379 = vmax.xlane.f32.xlu0 %v1378
  %v1380 = vpop.xlane.xlu0 %1379
  %v1381 = vsub.f32 %v1377, %v1380
  %v1382 = vmul.f32 %v1381, 1.442695
  %v1383 = vpow.pop %v1382
  %v1384 = vsel %vm440, %v1383, 0.0
  %1385 = vadd.xlane.f32.xlu0 %v1384
  %v1386 = vpop.xlane.xlu0 %1385
  %v1387 = vrcp.pop %v1386
  %v1388 = vmul.f32 %v1383, %v1387
  %v1389 = vlaneseq
  %v1390 = vshrl.u32 %v1389, 7
  %v1391 = vsub.s32 0, %v1390
  %v1392 = vrot.slane %v1388, %v1391
  %1394 = vbcast.lane.b32.xlu0 %v1392, 256
  %v1395 = vpop.permute.xlu0 %1394
  %v1396 = vlaneseq
  %v1397 = vshrl.u32 %v1396, 7
  %v1398 = vsub.s32 1, %v1397
  %v1399 = vrot.slane %v1388, %v1398
  %1401 = vbcast.lane.b32.xlu0 %v1399, 256
  %v1402 = vpop.permute.xlu0 %1401
  %v1403 = vmul.f32 %v1395, %v1340
  %v1404 = vmul.f32 %v1402, %v1341
  %v1405 = vsel %vm468, %v1403, 0.0
  %v1406 = vrot.slane %v1405, 4
  %v1407 = vadd.f32 %v1405, %v1406
  %v1408 = vrot.slane %v1407, 2
  %v1409 = vadd.f32 %v1407, %v1408
  %v1410 = vrot.slane %v1409, 1
  %v1411 = vadd.f32 %v1409, %v1410
  %v1412 = vsel %vm468, %v1404, 0.0
  %v1413 = vrot.slane %v1412, 4
  %v1414 = vadd.f32 %v1412, %v1413
  %v1415 = vrot.slane %v1414, 2
  %v1416 = vadd.f32 %v1414, %v1415
  %v1417 = vrot.slane %v1416, 1
  %v1418 = vadd.f32 %v1416, %v1417
  %v1421 = vsel %vm407, %v1418, %v1411
  %1422 = vrot.lane.b32.xlu0 %v1421, 96
  %v1423 = vpop.permute.xlu0 %1422
  %v1424 = vsel %vm196, %v1423, 0
  %1426 = vmatprep.subr.mxu0 0.0
  %1427 = vmatpush1.msra.mxu0 %v181
  %1428 = vmatprep.subr.mxu0 0.0
  %1429 = vmatpush1.msra.mxu0 %v182
  %1430 = vmatprep.subr.mxu0 0.0
  %1431 = vmatpush1.msra.mxu0 %v183
  %1432 = vmatprep.subr.mxu0 0.0
  %1433 = vmatpush1.msra.mxu0 %v184
  %1434 = vmatprep.subr.mxu0 0.0
  %1435 = vmatpush1.msra.mxu0 0.0
  %1436 = vmatprep.subr.mxu0 0.0
  %1437 = vmatpush1.msra.mxu0 0.0
  %1438 = vmatprep.subr.mxu0 0.0
  %1439 = vmatpush1.msra.mxu0 0.0
  %1440 = vmatprep.subr.mxu0 0.0
  %1441 = vmatpush1.msra.mxu0 0.0
  %1442 = vmatprep.subr.mxu0 0.0
  %1443 = vmatpush1.msra.mxu0 0.0
  %1444 = vmatprep.subr.mxu0 0.0
  %1445 = vmatpush1.msra.mxu0 0.0
  %1446 = vmatprep.subr.mxu0 0.0
  %1447 = vmatpush1.msra.mxu0 0.0
  %1448 = vmatprep.subr.mxu0 0.0
  %1449 = vmatpush1.msra.mxu0 0.0
  %1450 = vmatprep.subr.mxu0 0.0
  %1451 = vmatpush1.msra.mxu0 0.0
  %1452 = vmatprep.subr.mxu0 0.0
  %1453 = vmatpush1.msra.mxu0 0.0
  %1454 = vmatprep.subr.mxu0 0.0
  %1455 = vmatpush1.msra.mxu0 0.0
  %1456 = vmatprep.subr.mxu0 0.0
  %1457 = vmatpush1.msra.mxu0 0.0
  %1458 = vmatprep.subr.mxu0 0.0
  %1459 = vmatpush1.msra.mxu0 0.0
  %1460 = vmatprep.subr.mxu0 0.0
  %1461 = vmatpush1.msra.mxu0 0.0
  %1462 = vmatprep.subr.mxu0 0.0
  %1463 = vmatpush1.msra.mxu0 0.0
  %1464 = vmatprep.subr.mxu0 0.0
  %1465 = vmatpush1.msra.mxu0 0.0
  %1466 = vmatprep.subr.mxu0 0.0
  %1467 = vmatpush1.msra.mxu0 0.0
  %1468 = vmatprep.subr.mxu0 0.0
  %1469 = vmatpush1.msra.mxu0 0.0
  %1470 = vmatprep.subr.mxu0 0.0
  %1471 = vmatpush1.msra.mxu0 0.0
  %1472 = vmatprep.subr.mxu0 0.0
  %1473 = vmatpush1.msra.mxu0 0.0
  %1474 = vmatprep.subr.mxu0 0.0
  %1475 = vmatpush1.msra.mxu0 0.0
  %1476 = vmatprep.subr.mxu0 0.0
  %1477 = vmatpush1.msra.mxu0 0.0
  %1478 = vmatprep.subr.mxu0 0.0
  %1479 = vmatpush1.msra.mxu0 0.0
  %1480 = vmatprep.subr.mxu0 0.0
  %1481 = vmatpush1.msra.mxu0 0.0
  %1482 = vmatprep.subr.mxu0 0.0
  %1483 = vmatpush1.msra.mxu0 0.0
  %1484 = vmatprep.subr.mxu0 0.0
  %1485 = vmatpush1.msra.mxu0 0.0
  %1486 = vmatprep.subr.mxu0 0.0
  %1487 = vmatpush1.msra.mxu0 0.0
  %1488 = vmatprep.subr.mxu0 0.0
  %1489 = vmatpush1.msra.mxu0 0.0
  %1490 = vmatprep.mubr.f32.mxu0 0.0
  %1491 = vmatmul.mubr.f32.gmra.mrb[0].mxu0 %v1424
  %v1492 = vpop.f32.mrb[0].mxu0
  %v1493 = vadd.f32 %v334, %v1492
  %v1494 = vpop.f32.mrb[0].mxu0
  %1495 = vdwg.mxu0
  %v1496 = vsel %vm1356, %v270, 0.0
  %v1497 = vsel %vm1356, %v275, 0.0
  %v1498 = vsel %vm315, %v1496, 0.0
  %v1499 = vrot.slane %v1498, 4
  %v1500 = vadd.f32 %v1498, %v1499
  %v1501 = vrot.slane %v1500, 2
  %v1502 = vadd.f32 %v1500, %v1501
  %v1503 = vrot.slane %v1502, 1
  %v1504 = vadd.f32 %v1502, %v1503
  %v1505 = vsel %vm315, %v1497, 0.0
  %v1506 = vrot.slane %v1505, 4
  %v1507 = vadd.f32 %v1505, %v1506
  %v1508 = vrot.slane %v1507, 2
  %v1509 = vadd.f32 %v1507, %v1508
  %v1510 = vrot.slane %v1509, 1
  %v1511 = vadd.f32 %v1509, %v1510
  %v1513 = vrot.slane %v1493, 1
  %v1516 = vadd.f32 %v1504, %v1493
  %v1517 = vadd.f32 %v1511, %v1513
  %v1518 = vxor.u32 %v1516, 2147483648
  %v1519 = vxor.u32 %v1517, 2147483648
  %v1520 = vmul.f32 %v1518, 1.442695
  %v1521 = vpow.pop %v1520
  %v1522 = vmul.f32 %v1519, 1.442695
  %v1523 = vpow.pop %v1522
  %v1524 = vadd.f32 %v1521, 1.0
  %v1525 = vadd.f32 %v1523, 1.0
  %v1526 = vrcp.pop %v1524
  %v1527 = vmul.f32 1.0, %v1526
  %v1528 = vrcp.pop %v1525
  %v1529 = vmul.f32 1.0, %v1528
  %1530 = vrot.lane.b32.xlu0 %v1493, 64
  %v1531 = vpop.permute.xlu0 %1530
  %1532 = vrot.lane.b32.xlu0 %v1513, 64
  %v1533 = vpop.permute.xlu0 %1532
  %v1536 = vmul.f32 %v1527, %v1531
  %v1537 = vmul.f32 %v1529, %v1533
  %1540 = vrot.lane.b32.xlu0 %v1536, 64
  %v1541 = vpop.permute.xlu0 %1540
  %1542 = vrot.lane.b32.xlu0 %v1537, 64
  %v1543 = vpop.permute.xlu0 %1542
  %v1546 = vadd.f32 %v1504, %v1541
  %v1547 = vadd.f32 %v1511, %v1543
  %v1548 = vtanh.pop %v1546
  %v1549 = vtanh.pop %v1547
  %v1550 = vsub.f32 1.0, %v1527
  %v1551 = vsub.f32 1.0, %v1529
  %1554 = vrot.lane.b32.xlu0 %v1548, 96
  %v1555 = vpop.permute.xlu0 %1554
  %1556 = vrot.lane.b32.xlu0 %v1549, 96
  %v1557 = vpop.permute.xlu0 %1556
  %v1560 = vmul.f32 %v1550, %v1555
  %v1561 = vmul.f32 %v1551, %v1557
  %v1562 = vmul.f32 %v1527, %v1411
  %v1563 = vmul.f32 %v1529, %v1418
  %v1564 = vadd.f32 %v1560, %v1562
  %v1565 = vadd.f32 %v1561, %v1563
  %v1566 = vlaneseq
  %v1567 = vshrl.u32 %v1566, 7
  %v1568 = vsub.s32 0, %v1567
  %v1569 = vrot.slane %v1564, %v1568
  %v1570 = vlaneseq
  %v1571 = vshrl.u32 %v1570, 7
  %v1572 = vsub.s32 0, %v1571
  %v1573 = vrot.slane %v1565, %v1572
  %v1574 = vsel %vm1356, %v1569, %v1340
  %v1575 = vsel %vm1356, %v1573, %v1341
  %vm1576 = vcmp.eq.s32.totalorder %v169, 5
  %v1577 = vmul.f32 %v1564, %v400
  %v1578 = vmul.f32 %v1565, %v400
  %v1581 = vrot.slane %v1578, 7
  %v1582 = vsel %vm407, %v1581, %v1577
  %1583 = vrot.lane.b32.xlu0 %v1582, 96
  %v1584 = vpop.permute.xlu0 %1583
  %v1586 = vsel %vm412, %v1584, 0.0
  %1587 = vadd.xlane.f32.xlu0 %v1586
  %v1588 = vpop.xlane.xlu0 %1587
  %v1589 = vsel %vm1576, %v1588, %v1355
  %vm1590 = vcmp.eq.s32.totalorder %v167, 6
  %v1591 = vsel %vm1590, %v310, 0.0
  %v1592 = vsel %vm1590, %v311, 0.0
  %v1593 = vsel %vm420, %v1591, 0.0
  %v1594 = vrot.slane %v1593, 4
  %v1595 = vadd.f32 %v1593, %v1594
  %v1596 = vrot.slane %v1595, 2
  %v1597 = vadd.f32 %v1595, %v1596
  %v1598 = vrot.slane %v1597, 1
  %v1599 = vadd.f32 %v1597, %v1598
  %v1600 = vsel %vm420, %v1592, 0.0
  %v1601 = vrot.slane %v1600, 4
  %v1602 = vadd.f32 %v1600, %v1601
  %v1603 = vrot.slane %v1602, 2
  %v1604 = vadd.f32 %v1602, %v1603
  %v1605 = vrot.slane %v1604, 1
  %v1606 = vadd.f32 %v1604, %v1605
  %v1609 = vsel %vm407, %v1606, %v1599
  %v1611 = vadd.f32 %v1589, %v1609
  %v1612 = vsel %vm440, %v1611, -inf
  %1613 = vmax.xlane.f32.xlu0 %v1612
  %v1614 = vpop.xlane.xlu0 %1613
  %v1615 = vsub.f32 %v1611, %v1614
  %v1616 = vmul.f32 %v1615, 1.442695
  %v1617 = vpow.pop %v1616
  %v1618 = vsel %vm440, %v1617, 0.0
  %1619 = vadd.xlane.f32.xlu0 %v1618
  %v1620 = vpop.xlane.xlu0 %1619
  %v1621 = vrcp.pop %v1620
  %v1622 = vmul.f32 %v1617, %v1621
  %v1623 = vlaneseq
  %v1624 = vshrl.u32 %v1623, 7
  %v1625 = vsub.s32 0, %v1624
  %v1626 = vrot.slane %v1622, %v1625
  %1628 = vbcast.lane.b32.xlu0 %v1626, 256
  %v1629 = vpop.permute.xlu0 %1628
  %v1630 = vlaneseq
  %v1631 = vshrl.u32 %v1630, 7
  %v1632 = vsub.s32 1, %v1631
  %v1633 = vrot.slane %v1622, %v1632
  %1635 = vbcast.lane.b32.xlu0 %v1633, 256
  %v1636 = vpop.permute.xlu0 %1635
  %v1637 = vmul.f32 %v1629, %v1574
  %v1638 = vmul.f32 %v1636, %v1575
  %v1639 = vsel %vm468, %v1637, 0.0
  %v1640 = vrot.slane %v1639, 4
  %v1641 = vadd.f32 %v1639, %v1640
  %v1642 = vrot.slane %v1641, 2
  %v1643 = vadd.f32 %v1641, %v1642
  %v1644 = vrot.slane %v1643, 1
  %v1645 = vadd.f32 %v1643, %v1644
  %v1646 = vsel %vm468, %v1638, 0.0
  %v1647 = vrot.slane %v1646, 4
  %v1648 = vadd.f32 %v1646, %v1647
  %v1649 = vrot.slane %v1648, 2
  %v1650 = vadd.f32 %v1648, %v1649
  %v1651 = vrot.slane %v1650, 1
  %v1652 = vadd.f32 %v1650, %v1651
  %v1655 = vsel %vm407, %v1652, %v1645
  %1656 = vrot.lane.b32.xlu0 %v1655, 96
  %v1657 = vpop.permute.xlu0 %1656
  %v1658 = vsel %vm196, %v1657, 0
  %1660 = vmatprep.subr.mxu0 0.0
  %1661 = vmatpush1.msra.mxu0 %v181
  %1662 = vmatprep.subr.mxu0 0.0
  %1663 = vmatpush1.msra.mxu0 %v182
  %1664 = vmatprep.subr.mxu0 0.0
  %1665 = vmatpush1.msra.mxu0 %v183
  %1666 = vmatprep.subr.mxu0 0.0
  %1667 = vmatpush1.msra.mxu0 %v184
  %1668 = vmatprep.subr.mxu0 0.0
  %1669 = vmatpush1.msra.mxu0 0.0
  %1670 = vmatprep.subr.mxu0 0.0
  %1671 = vmatpush1.msra.mxu0 0.0
  %1672 = vmatprep.subr.mxu0 0.0
  %1673 = vmatpush1.msra.mxu0 0.0
  %1674 = vmatprep.subr.mxu0 0.0
  %1675 = vmatpush1.msra.mxu0 0.0
  %1676 = vmatprep.subr.mxu0 0.0
  %1677 = vmatpush1.msra.mxu0 0.0
  %1678 = vmatprep.subr.mxu0 0.0
  %1679 = vmatpush1.msra.mxu0 0.0
  %1680 = vmatprep.subr.mxu0 0.0
  %1681 = vmatpush1.msra.mxu0 0.0
  %1682 = vmatprep.subr.mxu0 0.0
  %1683 = vmatpush1.msra.mxu0 0.0
  %1684 = vmatprep.subr.mxu0 0.0
  %1685 = vmatpush1.msra.mxu0 0.0
  %1686 = vmatprep.subr.mxu0 0.0
  %1687 = vmatpush1.msra.mxu0 0.0
  %1688 = vmatprep.subr.mxu0 0.0
  %1689 = vmatpush1.msra.mxu0 0.0
  %1690 = vmatprep.subr.mxu0 0.0
  %1691 = vmatpush1.msra.mxu0 0.0
  %1692 = vmatprep.subr.mxu0 0.0
  %1693 = vmatpush1.msra.mxu0 0.0
  %1694 = vmatprep.subr.mxu0 0.0
  %1695 = vmatpush1.msra.mxu0 0.0
  %1696 = vmatprep.subr.mxu0 0.0
  %1697 = vmatpush1.msra.mxu0 0.0
  %1698 = vmatprep.subr.mxu0 0.0
  %1699 = vmatpush1.msra.mxu0 0.0
  %1700 = vmatprep.subr.mxu0 0.0
  %1701 = vmatpush1.msra.mxu0 0.0
  %1702 = vmatprep.subr.mxu0 0.0
  %1703 = vmatpush1.msra.mxu0 0.0
  %1704 = vmatprep.subr.mxu0 0.0
  %1705 = vmatpush1.msra.mxu0 0.0
  %1706 = vmatprep.subr.mxu0 0.0
  %1707 = vmatpush1.msra.mxu0 0.0
  %1708 = vmatprep.subr.mxu0 0.0
  %1709 = vmatpush1.msra.mxu0 0.0
  %1710 = vmatprep.subr.mxu0 0.0
  %1711 = vmatpush1.msra.mxu0 0.0
  %1712 = vmatprep.subr.mxu0 0.0
  %1713 = vmatpush1.msra.mxu0 0.0
  %1714 = vmatprep.subr.mxu0 0.0
  %1715 = vmatpush1.msra.mxu0 0.0
  %1716 = vmatprep.subr.mxu0 0.0
  %1717 = vmatpush1.msra.mxu0 0.0
  %1718 = vmatprep.subr.mxu0 0.0
  %1719 = vmatpush1.msra.mxu0 0.0
  %1720 = vmatprep.subr.mxu0 0.0
  %1721 = vmatpush1.msra.mxu0 0.0
  %1722 = vmatprep.subr.mxu0 0.0
  %1723 = vmatpush1.msra.mxu0 0.0
  %1724 = vmatprep.mubr.f32.mxu0 0.0
  %1725 = vmatmul.mubr.f32.gmra.mrb[0].mxu0 %v1658
  %v1726 = vpop.f32.mrb[0].mxu0
  %v1727 = vadd.f32 %v334, %v1726
  %v1728 = vpop.f32.mrb[0].mxu0
  %1729 = vdwg.mxu0
  %v1730 = vsel %vm1590, %v270, 0.0
  %v1731 = vsel %vm1590, %v275, 0.0
  %v1732 = vsel %vm315, %v1730, 0.0
  %v1733 = vrot.slane %v1732, 4
  %v1734 = vadd.f32 %v1732, %v1733
  %v1735 = vrot.slane %v1734, 2
  %v1736 = vadd.f32 %v1734, %v1735
  %v1737 = vrot.slane %v1736, 1
  %v1738 = vadd.f32 %v1736, %v1737
  %v1739 = vsel %vm315, %v1731, 0.0
  %v1740 = vrot.slane %v1739, 4
  %v1741 = vadd.f32 %v1739, %v1740
  %v1742 = vrot.slane %v1741, 2
  %v1743 = vadd.f32 %v1741, %v1742
  %v1744 = vrot.slane %v1743, 1
  %v1745 = vadd.f32 %v1743, %v1744
  %v1747 = vrot.slane %v1727, 1
  %v1750 = vadd.f32 %v1738, %v1727
  %v1751 = vadd.f32 %v1745, %v1747
  %v1752 = vxor.u32 %v1750, 2147483648
  %v1753 = vxor.u32 %v1751, 2147483648
  %v1754 = vmul.f32 %v1752, 1.442695
  %v1755 = vpow.pop %v1754
  %v1756 = vmul.f32 %v1753, 1.442695
  %v1757 = vpow.pop %v1756
  %v1758 = vadd.f32 %v1755, 1.0
  %v1759 = vadd.f32 %v1757, 1.0
  %v1760 = vrcp.pop %v1758
  %v1761 = vmul.f32 1.0, %v1760
  %v1762 = vrcp.pop %v1759
  %v1763 = vmul.f32 1.0, %v1762
  %1764 = vrot.lane.b32.xlu0 %v1727, 64
  %v1765 = vpop.permute.xlu0 %1764
  %1766 = vrot.lane.b32.xlu0 %v1747, 64
  %v1767 = vpop.permute.xlu0 %1766
  %v1770 = vmul.f32 %v1761, %v1765
  %v1771 = vmul.f32 %v1763, %v1767
  %1774 = vrot.lane.b32.xlu0 %v1770, 64
  %v1775 = vpop.permute.xlu0 %1774
  %1776 = vrot.lane.b32.xlu0 %v1771, 64
  %v1777 = vpop.permute.xlu0 %1776
  %v1780 = vadd.f32 %v1738, %v1775
  %v1781 = vadd.f32 %v1745, %v1777
  %v1782 = vtanh.pop %v1780
  %v1783 = vtanh.pop %v1781
  %v1784 = vsub.f32 1.0, %v1761
  %v1785 = vsub.f32 1.0, %v1763
  %1788 = vrot.lane.b32.xlu0 %v1782, 96
  %v1789 = vpop.permute.xlu0 %1788
  %1790 = vrot.lane.b32.xlu0 %v1783, 96
  %v1791 = vpop.permute.xlu0 %1790
  %v1794 = vmul.f32 %v1784, %v1789
  %v1795 = vmul.f32 %v1785, %v1791
  %v1796 = vmul.f32 %v1761, %v1645
  %v1797 = vmul.f32 %v1763, %v1652
  %v1798 = vadd.f32 %v1794, %v1796
  %v1799 = vadd.f32 %v1795, %v1797
  %v1800 = vlaneseq
  %v1801 = vshrl.u32 %v1800, 7
  %v1802 = vsub.s32 0, %v1801
  %v1803 = vrot.slane %v1798, %v1802
  %v1804 = vlaneseq
  %v1805 = vshrl.u32 %v1804, 7
  %v1806 = vsub.s32 0, %v1805
  %v1807 = vrot.slane %v1799, %v1806
  %v1808 = vsel %vm1590, %v1803, %v1574
  %v1809 = vsel %vm1590, %v1807, %v1575
  %vm1810 = vcmp.eq.s32.totalorder %v169, 6
  %v1811 = vmul.f32 %v1798, %v400
  %v1812 = vmul.f32 %v1799, %v400
  %v1815 = vrot.slane %v1812, 7
  %v1816 = vsel %vm407, %v1815, %v1811
  %1817 = vrot.lane.b32.xlu0 %v1816, 96
  %v1818 = vpop.permute.xlu0 %1817
  %v1820 = vsel %vm412, %v1818, 0.0
  %1821 = vadd.xlane.f32.xlu0 %v1820
  %v1822 = vpop.xlane.xlu0 %1821
  %v1823 = vsel %vm1810, %v1822, %v1589
  %vm1824 = vcmp.eq.s32.totalorder %v167, 7
  %v1825 = vsel %vm1824, %v310, 0.0
  %v1826 = vsel %vm1824, %v311, 0.0
  %v1827 = vsel %vm420, %v1825, 0.0
  %v1828 = vrot.slane %v1827, 4
  %v1829 = vadd.f32 %v1827, %v1828
  %v1830 = vrot.slane %v1829, 2
  %v1831 = vadd.f32 %v1829, %v1830
  %v1832 = vrot.slane %v1831, 1
  %v1833 = vadd.f32 %v1831, %v1832
  %v1834 = vsel %vm420, %v1826, 0.0
  %v1835 = vrot.slane %v1834, 4
  %v1836 = vadd.f32 %v1834, %v1835
  %v1837 = vrot.slane %v1836, 2
  %v1838 = vadd.f32 %v1836, %v1837
  %v1839 = vrot.slane %v1838, 1
  %v1840 = vadd.f32 %v1838, %v1839
  %v1843 = vsel %vm407, %v1840, %v1833
  %v1845 = vadd.f32 %v1823, %v1843
  %v1846 = vsel %vm440, %v1845, -inf
  %1847 = vmax.xlane.f32.xlu0 %v1846
  %v1848 = vpop.xlane.xlu0 %1847
  %v1849 = vsub.f32 %v1845, %v1848
  %v1850 = vmul.f32 %v1849, 1.442695
  %v1851 = vpow.pop %v1850
  %v1852 = vsel %vm440, %v1851, 0.0
  %1853 = vadd.xlane.f32.xlu0 %v1852
  %v1854 = vpop.xlane.xlu0 %1853
  %v1855 = vrcp.pop %v1854
  %v1856 = vmul.f32 %v1851, %v1855
  %v1857 = vlaneseq
  %v1858 = vshrl.u32 %v1857, 7
  %v1859 = vsub.s32 0, %v1858
  %v1860 = vrot.slane %v1856, %v1859
  %1862 = vbcast.lane.b32.xlu0 %v1860, 256
  %v1863 = vpop.permute.xlu0 %1862
  %v1864 = vlaneseq
  %v1865 = vshrl.u32 %v1864, 7
  %v1866 = vsub.s32 1, %v1865
  %v1867 = vrot.slane %v1856, %v1866
  %1869 = vbcast.lane.b32.xlu0 %v1867, 256
  %v1870 = vpop.permute.xlu0 %1869
  %v1871 = vmul.f32 %v1863, %v1808
  %v1872 = vmul.f32 %v1870, %v1809
  %v1873 = vsel %vm468, %v1871, 0.0
  %v1874 = vrot.slane %v1873, 4
  %v1875 = vadd.f32 %v1873, %v1874
  %v1876 = vrot.slane %v1875, 2
  %v1877 = vadd.f32 %v1875, %v1876
  %v1878 = vrot.slane %v1877, 1
  %v1879 = vadd.f32 %v1877, %v1878
  %v1880 = vsel %vm468, %v1872, 0.0
  %v1881 = vrot.slane %v1880, 4
  %v1882 = vadd.f32 %v1880, %v1881
  %v1883 = vrot.slane %v1882, 2
  %v1884 = vadd.f32 %v1882, %v1883
  %v1885 = vrot.slane %v1884, 1
  %v1886 = vadd.f32 %v1884, %v1885
  %v1889 = vsel %vm407, %v1886, %v1879
  %1890 = vrot.lane.b32.xlu0 %v1889, 96
  %v1891 = vpop.permute.xlu0 %1890
  %v1892 = vsel %vm196, %v1891, 0
  %1894 = vmatprep.subr.mxu0 0.0
  %1895 = vmatpush1.msra.mxu0 %v181
  %1896 = vmatprep.subr.mxu0 0.0
  %1897 = vmatpush1.msra.mxu0 %v182
  %1898 = vmatprep.subr.mxu0 0.0
  %1899 = vmatpush1.msra.mxu0 %v183
  %1900 = vmatprep.subr.mxu0 0.0
  %1901 = vmatpush1.msra.mxu0 %v184
  %1902 = vmatprep.subr.mxu0 0.0
  %1903 = vmatpush1.msra.mxu0 0.0
  %1904 = vmatprep.subr.mxu0 0.0
  %1905 = vmatpush1.msra.mxu0 0.0
  %1906 = vmatprep.subr.mxu0 0.0
  %1907 = vmatpush1.msra.mxu0 0.0
  %1908 = vmatprep.subr.mxu0 0.0
  %1909 = vmatpush1.msra.mxu0 0.0
  %1910 = vmatprep.subr.mxu0 0.0
  %1911 = vmatpush1.msra.mxu0 0.0
  %1912 = vmatprep.subr.mxu0 0.0
  %1913 = vmatpush1.msra.mxu0 0.0
  %1914 = vmatprep.subr.mxu0 0.0
  %1915 = vmatpush1.msra.mxu0 0.0
  %1916 = vmatprep.subr.mxu0 0.0
  %1917 = vmatpush1.msra.mxu0 0.0
  %1918 = vmatprep.subr.mxu0 0.0
  %1919 = vmatpush1.msra.mxu0 0.0
  %1920 = vmatprep.subr.mxu0 0.0
  %1921 = vmatpush1.msra.mxu0 0.0
  %1922 = vmatprep.subr.mxu0 0.0
  %1923 = vmatpush1.msra.mxu0 0.0
  %1924 = vmatprep.subr.mxu0 0.0
  %1925 = vmatpush1.msra.mxu0 0.0
  %1926 = vmatprep.subr.mxu0 0.0
  %1927 = vmatpush1.msra.mxu0 0.0
  %1928 = vmatprep.subr.mxu0 0.0
  %1929 = vmatpush1.msra.mxu0 0.0
  %1930 = vmatprep.subr.mxu0 0.0
  %1931 = vmatpush1.msra.mxu0 0.0
  %1932 = vmatprep.subr.mxu0 0.0
  %1933 = vmatpush1.msra.mxu0 0.0
  %1934 = vmatprep.subr.mxu0 0.0
  %1935 = vmatpush1.msra.mxu0 0.0
  %1936 = vmatprep.subr.mxu0 0.0
  %1937 = vmatpush1.msra.mxu0 0.0
  %1938 = vmatprep.subr.mxu0 0.0
  %1939 = vmatpush1.msra.mxu0 0.0
  %1940 = vmatprep.subr.mxu0 0.0
  %1941 = vmatpush1.msra.mxu0 0.0
  %1942 = vmatprep.subr.mxu0 0.0
  %1943 = vmatpush1.msra.mxu0 0.0
  %1944 = vmatprep.subr.mxu0 0.0
  %1945 = vmatpush1.msra.mxu0 0.0
  %1946 = vmatprep.subr.mxu0 0.0
  %1947 = vmatpush1.msra.mxu0 0.0
  %1948 = vmatprep.subr.mxu0 0.0
  %1949 = vmatpush1.msra.mxu0 0.0
  %1950 = vmatprep.subr.mxu0 0.0
  %1951 = vmatpush1.msra.mxu0 0.0
  %1952 = vmatprep.subr.mxu0 0.0
  %1953 = vmatpush1.msra.mxu0 0.0
  %1954 = vmatprep.subr.mxu0 0.0
  %1955 = vmatpush1.msra.mxu0 0.0
  %1956 = vmatprep.subr.mxu0 0.0
  %1957 = vmatpush1.msra.mxu0 0.0
  %1958 = vmatprep.mubr.f32.mxu0 0.0
  %1959 = vmatmul.mubr.f32.gmra.mrb[0].mxu0 %v1892
  %v1960 = vpop.f32.mrb[0].mxu0
  %v1961 = vadd.f32 %v334, %v1960
  %v1962 = vpop.f32.mrb[0].mxu0
  %1963 = vdwg.mxu0
  %v1964 = vsel %vm1824, %v270, 0.0
  %v1965 = vsel %vm1824, %v275, 0.0
  %v1966 = vsel %vm315, %v1964, 0.0
  %v1967 = vrot.slane %v1966, 4
  %v1968 = vadd.f32 %v1966, %v1967
  %v1969 = vrot.slane %v1968, 2
  %v1970 = vadd.f32 %v1968, %v1969
  %v1971 = vrot.slane %v1970, 1
  %v1972 = vadd.f32 %v1970, %v1971
  %v1973 = vsel %vm315, %v1965, 0.0
  %v1974 = vrot.slane %v1973, 4
  %v1975 = vadd.f32 %v1973, %v1974
  %v1976 = vrot.slane %v1975, 2
  %v1977 = vadd.f32 %v1975, %v1976
  %v1978 = vrot.slane %v1977, 1
  %v1979 = vadd.f32 %v1977, %v1978
  %v1981 = vrot.slane %v1961, 1
  %v1984 = vadd.f32 %v1972, %v1961
  %v1985 = vadd.f32 %v1979, %v1981
  %v1986 = vxor.u32 %v1984, 2147483648
  %v1987 = vxor.u32 %v1985, 2147483648
  %v1988 = vmul.f32 %v1986, 1.442695
  %v1989 = vpow.pop %v1988
  %v1990 = vmul.f32 %v1987, 1.442695
  %v1991 = vpow.pop %v1990
  %v1992 = vadd.f32 %v1989, 1.0
  %v1993 = vadd.f32 %v1991, 1.0
  %v1994 = vrcp.pop %v1992
  %v1995 = vmul.f32 1.0, %v1994
  %v1996 = vrcp.pop %v1993
  %v1997 = vmul.f32 1.0, %v1996
  %1998 = vrot.lane.b32.xlu0 %v1961, 64
  %v1999 = vpop.permute.xlu0 %1998
  %2000 = vrot.lane.b32.xlu0 %v1981, 64
  %v2001 = vpop.permute.xlu0 %2000
  %v2004 = vmul.f32 %v1995, %v1999
  %v2005 = vmul.f32 %v1997, %v2001
  %2008 = vrot.lane.b32.xlu0 %v2004, 64
  %v2009 = vpop.permute.xlu0 %2008
  %2010 = vrot.lane.b32.xlu0 %v2005, 64
  %v2011 = vpop.permute.xlu0 %2010
  %v2014 = vadd.f32 %v1972, %v2009
  %v2015 = vadd.f32 %v1979, %v2011
  %v2016 = vtanh.pop %v2014
  %v2017 = vtanh.pop %v2015
  %v2018 = vsub.f32 1.0, %v1995
  %v2019 = vsub.f32 1.0, %v1997
  %2022 = vrot.lane.b32.xlu0 %v2016, 96
  %v2023 = vpop.permute.xlu0 %2022
  %2024 = vrot.lane.b32.xlu0 %v2017, 96
  %v2025 = vpop.permute.xlu0 %2024
  %v2028 = vmul.f32 %v2018, %v2023
  %v2029 = vmul.f32 %v2019, %v2025
  %v2030 = vmul.f32 %v1995, %v1879
  %v2031 = vmul.f32 %v1997, %v1886
  %v2032 = vadd.f32 %v2028, %v2030
  %v2033 = vadd.f32 %v2029, %v2031
  %v2034 = vlaneseq
  %v2035 = vshrl.u32 %v2034, 7
  %v2036 = vsub.s32 0, %v2035
  %v2037 = vrot.slane %v2032, %v2036
  %v2038 = vlaneseq
  %v2039 = vshrl.u32 %v2038, 7
  %v2040 = vsub.s32 0, %v2039
  %v2041 = vrot.slane %v2033, %v2040
  %v2042 = vsel %vm1824, %v2037, %v1808
  %v2043 = vsel %vm1824, %v2041, %v1809
  %s2044 = scalar_lea.vmem %s4, 32
  %v2045 = vld [vmem:[%s2044] sm:$0xff]
  %v2046 = vld [vmem:[%s2044 + $0x8] sm:$0xff]
  %v2047 = vld [vmem:[%s2044 + $0x10] sm:$0xff]
  %v2048 = vld [vmem:[%s2044 + $0x18] sm:$0xff]
  %s2049 = scalar_lea.vmem %s5, 32
  %v2050 = vld [vmem:[%s2049] sm:$0xff]
  %v2051 = vld [vmem:[%s2049 + $0x8] sm:$0xff]
  %v2052 = vld [vmem:[%s2049 + $0x10] sm:$0xff]
  %v2053 = vld [vmem:[%s2049 + $0x18] sm:$0xff]
  %s2054 = scalar_lea.vmem %s6, 1
  %v2055 = vld [vmem:[%s2054] sm:$0x1]
  %s2056 = scalar_lea.vmem %s7, 1
  %v2057 = vld [vmem:[%s2056] sm:$0x1]
  %s2058 = scalar_lea.vmem %s8, 1
  %v2059 = vld [vmem:[%s2058] sm:$0x1]
  %s2060 = scalar_lea.vmem %s9, 1
  %v2061 = vld [vmem:[%s2060] sm:$0x1]
  %s2062 = scalar_lea.vmem %s10, 1
  %v2063 = vld [vmem:[%s2062] sm:$0x1]
  %v2065 = vlaneseq
  %v2066 = vshrl.u32 %v2065, 7
  %v2067 = vsub.s32 0, %v2066
  %v2068 = vrot.slane %v2055, %v2067
  %2072 = vrot.lane.b32.xlu0 %v2042, 96
  %v2073 = vpop.permute.xlu0 %2072
  %2074 = vrot.lane.b32.xlu0 %v2043, 96
  %v2075 = vpop.permute.xlu0 %2074
  %v2076 = vsel %vm196, %v2073, 0
  %v2078 = vsel %vm196, %v2075, 0
  %2080 = vmatprep.subr.mxu0 0.0
  %2081 = vmatpush1.msra.mxu0 %v2045
  %2082 = vmatprep.subr.mxu0 0.0
  %2083 = vmatpush1.msra.mxu0 %v2046
  %2084 = vmatprep.subr.mxu0 0.0
  %2085 = vmatpush1.msra.mxu0 %v2047
  %2086 = vmatprep.subr.mxu0 0.0
  %2087 = vmatpush1.msra.mxu0 %v2048
  %2088 = vmatprep.subr.mxu0 0.0
  %2089 = vmatpush1.msra.mxu0 0.0
  %2090 = vmatprep.subr.mxu0 0.0
  %2091 = vmatpush1.msra.mxu0 0.0
  %2092 = vmatprep.subr.mxu0 0.0
  %2093 = vmatpush1.msra.mxu0 0.0
  %2094 = vmatprep.subr.mxu0 0.0
  %2095 = vmatpush1.msra.mxu0 0.0
  %2096 = vmatprep.subr.mxu0 0.0
  %2097 = vmatpush1.msra.mxu0 0.0
  %2098 = vmatprep.subr.mxu0 0.0
  %2099 = vmatpush1.msra.mxu0 0.0
  %2100 = vmatprep.subr.mxu0 0.0
  %2101 = vmatpush1.msra.mxu0 0.0
  %2102 = vmatprep.subr.mxu0 0.0
  %2103 = vmatpush1.msra.mxu0 0.0
  %2104 = vmatprep.subr.mxu0 0.0
  %2105 = vmatpush1.msra.mxu0 0.0
  %2106 = vmatprep.subr.mxu0 0.0
  %2107 = vmatpush1.msra.mxu0 0.0
  %2108 = vmatprep.subr.mxu0 0.0
  %2109 = vmatpush1.msra.mxu0 0.0
  %2110 = vmatprep.subr.mxu0 0.0
  %2111 = vmatpush1.msra.mxu0 0.0
  %2112 = vmatprep.subr.mxu0 0.0
  %2113 = vmatpush1.msra.mxu0 0.0
  %2114 = vmatprep.subr.mxu0 0.0
  %2115 = vmatpush1.msra.mxu0 0.0
  %2116 = vmatprep.subr.mxu0 0.0
  %2117 = vmatpush1.msra.mxu0 0.0
  %2118 = vmatprep.subr.mxu0 0.0
  %2119 = vmatpush1.msra.mxu0 0.0
  %2120 = vmatprep.subr.mxu0 0.0
  %2121 = vmatpush1.msra.mxu0 0.0
  %2122 = vmatprep.subr.mxu0 0.0
  %2123 = vmatpush1.msra.mxu0 0.0
  %2124 = vmatprep.subr.mxu0 0.0
  %2125 = vmatpush1.msra.mxu0 0.0
  %2126 = vmatprep.subr.mxu0 0.0
  %2127 = vmatpush1.msra.mxu0 0.0
  %2128 = vmatprep.subr.mxu0 0.0
  %2129 = vmatpush1.msra.mxu0 0.0
  %2130 = vmatprep.subr.mxu0 0.0
  %2131 = vmatpush1.msra.mxu0 0.0
  %2132 = vmatprep.subr.mxu0 0.0
  %2133 = vmatpush1.msra.mxu0 0.0
  %2134 = vmatprep.subr.mxu0 0.0
  %2135 = vmatpush1.msra.mxu0 0.0
  %2136 = vmatprep.subr.mxu0 0.0
  %2137 = vmatpush1.msra.mxu0 0.0
  %2138 = vmatprep.subr.mxu0 0.0
  %2139 = vmatpush1.msra.mxu0 0.0
  %2140 = vmatprep.subr.mxu0 0.0
  %2141 = vmatpush1.msra.mxu0 0.0
  %2142 = vmatprep.subr.mxu0 0.0
  %2143 = vmatpush1.msra.mxu0 0.0
  %2144 = vmatprep.mubr.f32.mxu0 0.0
  %2145 = vmatmul.mubr.f32.gmra.mrb[0].mxu0 %v2076
  %v2146 = vpop.f32.mrb[0].mxu0
  %v2147 = vadd.f32 %v2068, %v2146
  %v2148 = vpop.f32.mrb[0].mxu0
  %2149 = vmatprep.mubr.f32.mxu0 0.0
  %2150 = vmatmul.mubr.f32.gmra.mrb[0].mxu0 %v2078
  %v2151 = vpop.f32.mrb[0].mxu0
  %v2152 = vadd.f32 %v2068, %v2151
  %v2153 = vpop.f32.mrb[0].mxu0
  %2154 = vdwg.mxu0
  %v2156 = vlaneseq
  %v2157 = vshrl.u32 %v2156, 7
  %v2158 = vsub.s32 0, %v2157
  %v2159 = vrot.slane %v2059, %v2158
  %2160 = vrot.lane.b32.xlu0 %v2159, 32
  %v2161 = vpop.permute.xlu0 %2160
  %v2163 = vmul.f32 %v2042, %v2161
  %v2164 = vmul.f32 %v2043, %v2161
  %2167 = vrot.lane.b32.xlu0 %v2163, 96
  %v2168 = vpop.permute.xlu0 %2167
  %2169 = vrot.lane.b32.xlu0 %v2164, 96
  %v2170 = vpop.permute.xlu0 %2169
  %v2173 = vsel %vm196, %v2168, 0.0
  %2174 = vadd.xlane.f32.xlu0 %v2173
  %v2175 = vpop.xlane.xlu0 %2174
  %v2176 = vsel %vm196, %v2170, 0.0
  %2177 = vadd.xlane.f32.xlu0 %v2176
  %v2178 = vpop.xlane.xlu0 %2177
  %v2180 = vlaneseq
  %v2181 = vshrl.u32 %v2180, 7
  %v2182 = vsub.s32 0, %v2181
  %v2183 = vrot.slane %v2063, %v2182
  %v2185 = vadd.f32 %v2175, %v2183
  %v2186 = vadd.f32 %v2178, %v2183
  %2188 = vset.pattern.permute.xlu0 0
  %2189 = vperm.xlu0 %2188, %v2185
  %v2190 = vpop.permute.xlu0 %2189
  %2193 = vset.pattern.permute.xlu0 0
  %2194 = vperm.xlu0 %2193, %v2186
  %v2195 = vpop.permute.xlu0 %2194
  %v2197 = vadd.f32 %v2190, %v175
  %v2198 = vadd.f32 %v2195, %v176
  %v2199 = vsel %vm312, %v2147, 0.0
  %v2200 = vsel %vm312, %v2152, 0.0
  %v2201 = vsel %vm315, %v2199, 0.0
  %v2202 = vrot.slane %v2201, 4
  %v2203 = vadd.f32 %v2201, %v2202
  %v2204 = vrot.slane %v2203, 2
  %v2205 = vadd.f32 %v2203, %v2204
  %v2206 = vrot.slane %v2205, 1
  %v2207 = vadd.f32 %v2205, %v2206
  %v2208 = vsel %vm315, %v2200, 0.0
  %v2209 = vrot.slane %v2208, 4
  %v2210 = vadd.f32 %v2208, %v2209
  %v2211 = vrot.slane %v2210, 2
  %v2212 = vadd.f32 %v2210, %v2211
  %v2213 = vrot.slane %v2212, 1
  %v2214 = vadd.f32 %v2212, %v2213
  %v2216 = vlaneseq
  %v2217 = vshrl.u32 %v2216, 7
  %v2218 = vsub.s32 0, %v2217
  %v2219 = vrot.slane %v2057, %v2218
  %v2221 = vadd.f32 %v2207, %v2219
  %v2222 = vadd.f32 %v2214, %v2219
  %v2223 = vxor.u32 %v2221, 2147483648
  %v2224 = vxor.u32 %v2222, 2147483648
  %v2225 = vmul.f32 %v2223, 1.442695
  %v2226 = vpow.pop %v2225
  %v2227 = vmul.f32 %v2224, 1.442695
  %v2228 = vpow.pop %v2227
  %v2229 = vadd.f32 %v2226, 1.0
  %v2230 = vadd.f32 %v2228, 1.0
  %v2231 = vrcp.pop %v2229
  %v2232 = vmul.f32 1.0, %v2231
  %v2233 = vrcp.pop %v2230
  %v2234 = vmul.f32 1.0, %v2233
  %2235 = vrot.lane.b32.xlu0 %v2219, 64
  %v2236 = vpop.permute.xlu0 %2235
  %v2238 = vmul.f32 %v2232, %v2236
  %v2239 = vmul.f32 %v2234, %v2236
  %2242 = vrot.lane.b32.xlu0 %v2238, 64
  %v2243 = vpop.permute.xlu0 %2242
  %2244 = vrot.lane.b32.xlu0 %v2239, 64
  %v2245 = vpop.permute.xlu0 %2244
  %v2248 = vadd.f32 %v2207, %v2243
  %v2249 = vadd.f32 %v2214, %v2245
  %v2250 = vtanh.pop %v2248
  %v2251 = vtanh.pop %v2249
  %v2252 = vsub.f32 1.0, %v2232
  %v2253 = vsub.f32 1.0, %v2234
  %2256 = vrot.lane.b32.xlu0 %v2250, 96
  %v2257 = vpop.permute.xlu0 %2256
  %2258 = vrot.lane.b32.xlu0 %v2251, 96
  %v2259 = vpop.permute.xlu0 %2258
  %v2262 = vmul.f32 %v2252, %v2257
  %v2263 = vmul.f32 %v2253, %v2259
  %v2264 = vmul.f32 %v2232, 0.0
  %v2265 = vmul.f32 %v2234, 0.0
  %v2266 = vadd.f32 %v2262, %v2264
  %v2267 = vadd.f32 %v2263, %v2265
  %v2268 = vlaneseq
  %v2269 = vshrl.u32 %v2268, 7
  %v2270 = vsub.s32 0, %v2269
  %v2271 = vrot.slane %v2266, %v2270
  %v2272 = vlaneseq
  %v2273 = vshrl.u32 %v2272, 7
  %v2274 = vsub.s32 0, %v2273
  %v2275 = vrot.slane %v2267, %v2274
  %v2276 = vsel %vm312, %v2271, 0.0
  %v2277 = vsel %vm312, %v2275, 0.0
  %v2279 = vlaneseq
  %v2280 = vshrl.u32 %v2279, 7
  %v2281 = vsub.s32 0, %v2280
  %v2282 = vrot.slane %v2061, %v2281
  %2283 = vrot.lane.b32.xlu0 %v2282, 32
  %v2284 = vpop.permute.xlu0 %2283
  %v2286 = vmul.f32 %v2266, %v2284
  %v2287 = vmul.f32 %v2267, %v2284
  %v2290 = vrot.slane %v2287, 7
  %v2291 = vsel %vm407, %v2290, %v2286
  %2292 = vrot.lane.b32.xlu0 %v2291, 96
  %v2293 = vpop.permute.xlu0 %2292
  %v2295 = vsel %vm412, %v2293, 0.0
  %2296 = vadd.xlane.f32.xlu0 %v2295
  %v2297 = vpop.xlane.xlu0 %2296
  %v2298 = vsel %vm393, %v2297, 0.0
  %v2299 = vsel %vm417, %v2197, 0.0
  %v2300 = vsel %vm417, %v2198, 0.0
  %v2301 = vsel %vm420, %v2299, 0.0
  %v2302 = vrot.slane %v2301, 4
  %v2303 = vadd.f32 %v2301, %v2302
  %v2304 = vrot.slane %v2303, 2
  %v2305 = vadd.f32 %v2303, %v2304
  %v2306 = vrot.slane %v2305, 1
  %v2307 = vadd.f32 %v2305, %v2306
  %v2308 = vsel %vm420, %v2300, 0.0
  %v2309 = vrot.slane %v2308, 4
  %v2310 = vadd.f32 %v2308, %v2309
  %v2311 = vrot.slane %v2310, 2
  %v2312 = vadd.f32 %v2310, %v2311
  %v2313 = vrot.slane %v2312, 1
  %v2314 = vadd.f32 %v2312, %v2313
  %v2317 = vsel %vm407, %v2314, %v2307
  %v2319 = vadd.f32 %v2298, %v2317
  %v2320 = vsel %vm440, %v2319, -inf
  %2321 = vmax.xlane.f32.xlu0 %v2320
  %v2322 = vpop.xlane.xlu0 %2321
  %v2323 = vsub.f32 %v2319, %v2322
  %v2324 = vmul.f32 %v2323, 1.442695
  %v2325 = vpow.pop %v2324
  %v2326 = vsel %vm440, %v2325, 0.0
  %2327 = vadd.xlane.f32.xlu0 %v2326
  %v2328 = vpop.xlane.xlu0 %2327
  %v2329 = vrcp.pop %v2328
  %v2330 = vmul.f32 %v2325, %v2329
  %v2331 = vlaneseq
  %v2332 = vshrl.u32 %v2331, 7
  %v2333 = vsub.s32 0, %v2332
  %v2334 = vrot.slane %v2330, %v2333
  %2336 = vbcast.lane.b32.xlu0 %v2334, 256
  %v2337 = vpop.permute.xlu0 %2336
  %v2338 = vlaneseq
  %v2339 = vshrl.u32 %v2338, 7
  %v2340 = vsub.s32 1, %v2339
  %v2341 = vrot.slane %v2330, %v2340
  %2343 = vbcast.lane.b32.xlu0 %v2341, 256
  %v2344 = vpop.permute.xlu0 %2343
  %v2345 = vmul.f32 %v2337, %v2276
  %v2346 = vmul.f32 %v2344, %v2277
  %v2347 = vsel %vm468, %v2345, 0.0
  %v2348 = vrot.slane %v2347, 4
  %v2349 = vadd.f32 %v2347, %v2348
  %v2350 = vrot.slane %v2349, 2
  %v2351 = vadd.f32 %v2349, %v2350
  %v2352 = vrot.slane %v2351, 1
  %v2353 = vadd.f32 %v2351, %v2352
  %v2354 = vsel %vm468, %v2346, 0.0
  %v2355 = vrot.slane %v2354, 4
  %v2356 = vadd.f32 %v2354, %v2355
  %v2357 = vrot.slane %v2356, 2
  %v2358 = vadd.f32 %v2356, %v2357
  %v2359 = vrot.slane %v2358, 1
  %v2360 = vadd.f32 %v2358, %v2359
  %v2363 = vsel %vm407, %v2360, %v2353
  %2364 = vrot.lane.b32.xlu0 %v2363, 96
  %v2365 = vpop.permute.xlu0 %2364
  %v2366 = vsel %vm196, %v2365, 0
  %2368 = vmatprep.subr.mxu0 0.0
  %2369 = vmatpush1.msra.mxu0 %v2050
  %2370 = vmatprep.subr.mxu0 0.0
  %2371 = vmatpush1.msra.mxu0 %v2051
  %2372 = vmatprep.subr.mxu0 0.0
  %2373 = vmatpush1.msra.mxu0 %v2052
  %2374 = vmatprep.subr.mxu0 0.0
  %2375 = vmatpush1.msra.mxu0 %v2053
  %2376 = vmatprep.subr.mxu0 0.0
  %2377 = vmatpush1.msra.mxu0 0.0
  %2378 = vmatprep.subr.mxu0 0.0
  %2379 = vmatpush1.msra.mxu0 0.0
  %2380 = vmatprep.subr.mxu0 0.0
  %2381 = vmatpush1.msra.mxu0 0.0
  %2382 = vmatprep.subr.mxu0 0.0
  %2383 = vmatpush1.msra.mxu0 0.0
  %2384 = vmatprep.subr.mxu0 0.0
  %2385 = vmatpush1.msra.mxu0 0.0
  %2386 = vmatprep.subr.mxu0 0.0
  %2387 = vmatpush1.msra.mxu0 0.0
  %2388 = vmatprep.subr.mxu0 0.0
  %2389 = vmatpush1.msra.mxu0 0.0
  %2390 = vmatprep.subr.mxu0 0.0
  %2391 = vmatpush1.msra.mxu0 0.0
  %2392 = vmatprep.subr.mxu0 0.0
  %2393 = vmatpush1.msra.mxu0 0.0
  %2394 = vmatprep.subr.mxu0 0.0
  %2395 = vmatpush1.msra.mxu0 0.0
  %2396 = vmatprep.subr.mxu0 0.0
  %2397 = vmatpush1.msra.mxu0 0.0
  %2398 = vmatprep.subr.mxu0 0.0
  %2399 = vmatpush1.msra.mxu0 0.0
  %2400 = vmatprep.subr.mxu0 0.0
  %2401 = vmatpush1.msra.mxu0 0.0
  %2402 = vmatprep.subr.mxu0 0.0
  %2403 = vmatpush1.msra.mxu0 0.0
  %2404 = vmatprep.subr.mxu0 0.0
  %2405 = vmatpush1.msra.mxu0 0.0
  %2406 = vmatprep.subr.mxu0 0.0
  %2407 = vmatpush1.msra.mxu0 0.0
  %2408 = vmatprep.subr.mxu0 0.0
  %2409 = vmatpush1.msra.mxu0 0.0
  %2410 = vmatprep.subr.mxu0 0.0
  %2411 = vmatpush1.msra.mxu0 0.0
  %2412 = vmatprep.subr.mxu0 0.0
  %2413 = vmatpush1.msra.mxu0 0.0
  %2414 = vmatprep.subr.mxu0 0.0
  %2415 = vmatpush1.msra.mxu0 0.0
  %2416 = vmatprep.subr.mxu0 0.0
  %2417 = vmatpush1.msra.mxu0 0.0
  %2418 = vmatprep.subr.mxu0 0.0
  %2419 = vmatpush1.msra.mxu0 0.0
  %2420 = vmatprep.subr.mxu0 0.0
  %2421 = vmatpush1.msra.mxu0 0.0
  %2422 = vmatprep.subr.mxu0 0.0
  %2423 = vmatpush1.msra.mxu0 0.0
  %2424 = vmatprep.subr.mxu0 0.0
  %2425 = vmatpush1.msra.mxu0 0.0
  %2426 = vmatprep.subr.mxu0 0.0
  %2427 = vmatpush1.msra.mxu0 0.0
  %2428 = vmatprep.subr.mxu0 0.0
  %2429 = vmatpush1.msra.mxu0 0.0
  %2430 = vmatprep.subr.mxu0 0.0
  %2431 = vmatpush1.msra.mxu0 0.0
  %2432 = vmatprep.mubr.f32.mxu0 0.0
  %2433 = vmatmul.mubr.f32.gmra.mrb[0].mxu0 %v2366
  %v2434 = vpop.f32.mrb[0].mxu0
  %v2435 = vadd.f32 %v2219, %v2434
  %v2436 = vpop.f32.mrb[0].mxu0
  %2437 = vdwg.mxu0
  %v2438 = vsel %vm417, %v2147, 0.0
  %v2439 = vsel %vm417, %v2152, 0.0
  %v2440 = vsel %vm315, %v2438, 0.0
  %v2441 = vrot.slane %v2440, 4
  %v2442 = vadd.f32 %v2440, %v2441
  %v2443 = vrot.slane %v2442, 2
  %v2444 = vadd.f32 %v2442, %v2443
  %v2445 = vrot.slane %v2444, 1
  %v2446 = vadd.f32 %v2444, %v2445
  %v2447 = vsel %vm315, %v2439, 0.0
  %v2448 = vrot.slane %v2447, 4
  %v2449 = vadd.f32 %v2447, %v2448
  %v2450 = vrot.slane %v2449, 2
  %v2451 = vadd.f32 %v2449, %v2450
  %v2452 = vrot.slane %v2451, 1
  %v2453 = vadd.f32 %v2451, %v2452
  %v2455 = vrot.slane %v2435, 1
  %v2458 = vadd.f32 %v2446, %v2435
  %v2459 = vadd.f32 %v2453, %v2455
  %v2460 = vxor.u32 %v2458, 2147483648
  %v2461 = vxor.u32 %v2459, 2147483648
  %v2462 = vmul.f32 %v2460, 1.442695
  %v2463 = vpow.pop %v2462
  %v2464 = vmul.f32 %v2461, 1.442695
  %v2465 = vpow.pop %v2464
  %v2466 = vadd.f32 %v2463, 1.0
  %v2467 = vadd.f32 %v2465, 1.0
  %v2468 = vrcp.pop %v2466
  %v2469 = vmul.f32 1.0, %v2468
  %v2470 = vrcp.pop %v2467
  %v2471 = vmul.f32 1.0, %v2470
  %2472 = vrot.lane.b32.xlu0 %v2435, 64
  %v2473 = vpop.permute.xlu0 %2472
  %2474 = vrot.lane.b32.xlu0 %v2455, 64
  %v2475 = vpop.permute.xlu0 %2474
  %v2478 = vmul.f32 %v2469, %v2473
  %v2479 = vmul.f32 %v2471, %v2475
  %2482 = vrot.lane.b32.xlu0 %v2478, 64
  %v2483 = vpop.permute.xlu0 %2482
  %2484 = vrot.lane.b32.xlu0 %v2479, 64
  %v2485 = vpop.permute.xlu0 %2484
  %v2488 = vadd.f32 %v2446, %v2483
  %v2489 = vadd.f32 %v2453, %v2485
  %v2490 = vtanh.pop %v2488
  %v2491 = vtanh.pop %v2489
  %v2492 = vsub.f32 1.0, %v2469
  %v2493 = vsub.f32 1.0, %v2471
  %2496 = vrot.lane.b32.xlu0 %v2490, 96
  %v2497 = vpop.permute.xlu0 %2496
  %2498 = vrot.lane.b32.xlu0 %v2491, 96
  %v2499 = vpop.permute.xlu0 %2498
  %v2502 = vmul.f32 %v2492, %v2497
  %v2503 = vmul.f32 %v2493, %v2499
  %v2504 = vmul.f32 %v2469, %v2353
  %v2505 = vmul.f32 %v2471, %v2360
  %v2506 = vadd.f32 %v2502, %v2504
  %v2507 = vadd.f32 %v2503, %v2505
  %v2508 = vlaneseq
  %v2509 = vshrl.u32 %v2508, 7
  %v2510 = vsub.s32 0, %v2509
  %v2511 = vrot.slane %v2506, %v2510
  %v2512 = vlaneseq
  %v2513 = vshrl.u32 %v2512, 7
  %v2514 = vsub.s32 0, %v2513
  %v2515 = vrot.slane %v2507, %v2514
  %v2516 = vsel %vm417, %v2511, %v2276
  %v2517 = vsel %vm417, %v2515, %v2277
  %v2518 = vmul.f32 %v2506, %v2284
  %v2519 = vmul.f32 %v2507, %v2284
  %v2522 = vrot.slane %v2519, 7
  %v2523 = vsel %vm407, %v2522, %v2518
  %2524 = vrot.lane.b32.xlu0 %v2523, 96
  %v2525 = vpop.permute.xlu0 %2524
  %v2527 = vsel %vm412, %v2525, 0.0
  %2528 = vadd.xlane.f32.xlu0 %v2527
  %v2529 = vpop.xlane.xlu0 %2528
  %v2530 = vsel %vm640, %v2529, %v2298
  %v2531 = vsel %vm654, %v2197, 0.0
  %v2532 = vsel %vm654, %v2198, 0.0
  %v2533 = vsel %vm420, %v2531, 0.0
  %v2534 = vrot.slane %v2533, 4
  %v2535 = vadd.f32 %v2533, %v2534
  %v2536 = vrot.slane %v2535, 2
  %v2537 = vadd.f32 %v2535, %v2536
  %v2538 = vrot.slane %v2537, 1
  %v2539 = vadd.f32 %v2537, %v2538
  %v2540 = vsel %vm420, %v2532, 0.0
  %v2541 = vrot.slane %v2540, 4
  %v2542 = vadd.f32 %v2540, %v2541
  %v2543 = vrot.slane %v2542, 2
  %v2544 = vadd.f32 %v2542, %v2543
  %v2545 = vrot.slane %v2544, 1
  %v2546 = vadd.f32 %v2544, %v2545
  %v2549 = vsel %vm407, %v2546, %v2539
  %v2551 = vadd.f32 %v2530, %v2549
  %v2552 = vsel %vm440, %v2551, -inf
  %2553 = vmax.xlane.f32.xlu0 %v2552
  %v2554 = vpop.xlane.xlu0 %2553
  %v2555 = vsub.f32 %v2551, %v2554
  %v2556 = vmul.f32 %v2555, 1.442695
  %v2557 = vpow.pop %v2556
  %v2558 = vsel %vm440, %v2557, 0.0
  %2559 = vadd.xlane.f32.xlu0 %v2558
  %v2560 = vpop.xlane.xlu0 %2559
  %v2561 = vrcp.pop %v2560
  %v2562 = vmul.f32 %v2557, %v2561
  %v2563 = vlaneseq
  %v2564 = vshrl.u32 %v2563, 7
  %v2565 = vsub.s32 0, %v2564
  %v2566 = vrot.slane %v2562, %v2565
  %2568 = vbcast.lane.b32.xlu0 %v2566, 256
  %v2569 = vpop.permute.xlu0 %2568
  %v2570 = vlaneseq
  %v2571 = vshrl.u32 %v2570, 7
  %v2572 = vsub.s32 1, %v2571
  %v2573 = vrot.slane %v2562, %v2572
  %2575 = vbcast.lane.b32.xlu0 %v2573, 256
  %v2576 = vpop.permute.xlu0 %2575
  %v2577 = vmul.f32 %v2569, %v2516
  %v2578 = vmul.f32 %v2576, %v2517
  %v2579 = vsel %vm468, %v2577, 0.0
  %v2580 = vrot.slane %v2579, 4
  %v2581 = vadd.f32 %v2579, %v2580
  %v2582 = vrot.slane %v2581, 2
  %v2583 = vadd.f32 %v2581, %v2582
  %v2584 = vrot.slane %v2583, 1
  %v2585 = vadd.f32 %v2583, %v2584
  %v2586 = vsel %vm468, %v2578, 0.0
  %v2587 = vrot.slane %v2586, 4
  %v2588 = vadd.f32 %v2586, %v2587
  %v2589 = vrot.slane %v2588, 2
  %v2590 = vadd.f32 %v2588, %v2589
  %v2591 = vrot.slane %v2590, 1
  %v2592 = vadd.f32 %v2590, %v2591
  %v2595 = vsel %vm407, %v2592, %v2585
  %2596 = vrot.lane.b32.xlu0 %v2595, 96
  %v2597 = vpop.permute.xlu0 %2596
  %v2598 = vsel %vm196, %v2597, 0
  %2600 = vmatprep.subr.mxu0 0.0
  %2601 = vmatpush1.msra.mxu0 %v2050
  %2602 = vmatprep.subr.mxu0 0.0
  %2603 = vmatpush1.msra.mxu0 %v2051
  %2604 = vmatprep.subr.mxu0 0.0
  %2605 = vmatpush1.msra.mxu0 %v2052
  %2606 = vmatprep.subr.mxu0 0.0
  %2607 = vmatpush1.msra.mxu0 %v2053
  %2608 = vmatprep.subr.mxu0 0.0
  %2609 = vmatpush1.msra.mxu0 0.0
  %2610 = vmatprep.subr.mxu0 0.0
  %2611 = vmatpush1.msra.mxu0 0.0
  %2612 = vmatprep.subr.mxu0 0.0
  %2613 = vmatpush1.msra.mxu0 0.0
  %2614 = vmatprep.subr.mxu0 0.0
  %2615 = vmatpush1.msra.mxu0 0.0
  %2616 = vmatprep.subr.mxu0 0.0
  %2617 = vmatpush1.msra.mxu0 0.0
  %2618 = vmatprep.subr.mxu0 0.0
  %2619 = vmatpush1.msra.mxu0 0.0
  %2620 = vmatprep.subr.mxu0 0.0
  %2621 = vmatpush1.msra.mxu0 0.0
  %2622 = vmatprep.subr.mxu0 0.0
  %2623 = vmatpush1.msra.mxu0 0.0
  %2624 = vmatprep.subr.mxu0 0.0
  %2625 = vmatpush1.msra.mxu0 0.0
  %2626 = vmatprep.subr.mxu0 0.0
  %2627 = vmatpush1.msra.mxu0 0.0
  %2628 = vmatprep.subr.mxu0 0.0
  %2629 = vmatpush1.msra.mxu0 0.0
  %2630 = vmatprep.subr.mxu0 0.0
  %2631 = vmatpush1.msra.mxu0 0.0
  %2632 = vmatprep.subr.mxu0 0.0
  %2633 = vmatpush1.msra.mxu0 0.0
  %2634 = vmatprep.subr.mxu0 0.0
  %2635 = vmatpush1.msra.mxu0 0.0
  %2636 = vmatprep.subr.mxu0 0.0
  %2637 = vmatpush1.msra.mxu0 0.0
  %2638 = vmatprep.subr.mxu0 0.0
  %2639 = vmatpush1.msra.mxu0 0.0
  %2640 = vmatprep.subr.mxu0 0.0
  %2641 = vmatpush1.msra.mxu0 0.0
  %2642 = vmatprep.subr.mxu0 0.0
  %2643 = vmatpush1.msra.mxu0 0.0
  %2644 = vmatprep.subr.mxu0 0.0
  %2645 = vmatpush1.msra.mxu0 0.0
  %2646 = vmatprep.subr.mxu0 0.0
  %2647 = vmatpush1.msra.mxu0 0.0
  %2648 = vmatprep.subr.mxu0 0.0
  %2649 = vmatpush1.msra.mxu0 0.0
  %2650 = vmatprep.subr.mxu0 0.0
  %2651 = vmatpush1.msra.mxu0 0.0
  %2652 = vmatprep.subr.mxu0 0.0
  %2653 = vmatpush1.msra.mxu0 0.0
  %2654 = vmatprep.subr.mxu0 0.0
  %2655 = vmatpush1.msra.mxu0 0.0
  %2656 = vmatprep.subr.mxu0 0.0
  %2657 = vmatpush1.msra.mxu0 0.0
  %2658 = vmatprep.subr.mxu0 0.0
  %2659 = vmatpush1.msra.mxu0 0.0
  %2660 = vmatprep.subr.mxu0 0.0
  %2661 = vmatpush1.msra.mxu0 0.0
  %2662 = vmatprep.subr.mxu0 0.0
  %2663 = vmatpush1.msra.mxu0 0.0
  %2664 = vmatprep.mubr.f32.mxu0 0.0
  %2665 = vmatmul.mubr.f32.gmra.mrb[0].mxu0 %v2598
  %v2666 = vpop.f32.mrb[0].mxu0
  %v2667 = vadd.f32 %v2219, %v2666
  %v2668 = vpop.f32.mrb[0].mxu0
  %2669 = vdwg.mxu0
  %v2670 = vsel %vm654, %v2147, 0.0
  %v2671 = vsel %vm654, %v2152, 0.0
  %v2672 = vsel %vm315, %v2670, 0.0
  %v2673 = vrot.slane %v2672, 4
  %v2674 = vadd.f32 %v2672, %v2673
  %v2675 = vrot.slane %v2674, 2
  %v2676 = vadd.f32 %v2674, %v2675
  %v2677 = vrot.slane %v2676, 1
  %v2678 = vadd.f32 %v2676, %v2677
  %v2679 = vsel %vm315, %v2671, 0.0
  %v2680 = vrot.slane %v2679, 4
  %v2681 = vadd.f32 %v2679, %v2680
  %v2682 = vrot.slane %v2681, 2
  %v2683 = vadd.f32 %v2681, %v2682
  %v2684 = vrot.slane %v2683, 1
  %v2685 = vadd.f32 %v2683, %v2684
  %v2687 = vrot.slane %v2667, 1
  %v2690 = vadd.f32 %v2678, %v2667
  %v2691 = vadd.f32 %v2685, %v2687
  %v2692 = vxor.u32 %v2690, 2147483648
  %v2693 = vxor.u32 %v2691, 2147483648
  %v2694 = vmul.f32 %v2692, 1.442695
  %v2695 = vpow.pop %v2694
  %v2696 = vmul.f32 %v2693, 1.442695
  %v2697 = vpow.pop %v2696
  %v2698 = vadd.f32 %v2695, 1.0
  %v2699 = vadd.f32 %v2697, 1.0
  %v2700 = vrcp.pop %v2698
  %v2701 = vmul.f32 1.0, %v2700
  %v2702 = vrcp.pop %v2699
  %v2703 = vmul.f32 1.0, %v2702
  %2704 = vrot.lane.b32.xlu0 %v2667, 64
  %v2705 = vpop.permute.xlu0 %2704
  %2706 = vrot.lane.b32.xlu0 %v2687, 64
  %v2707 = vpop.permute.xlu0 %2706
  %v2710 = vmul.f32 %v2701, %v2705
  %v2711 = vmul.f32 %v2703, %v2707
  %2714 = vrot.lane.b32.xlu0 %v2710, 64
  %v2715 = vpop.permute.xlu0 %2714
  %2716 = vrot.lane.b32.xlu0 %v2711, 64
  %v2717 = vpop.permute.xlu0 %2716
  %v2720 = vadd.f32 %v2678, %v2715
  %v2721 = vadd.f32 %v2685, %v2717
  %v2722 = vtanh.pop %v2720
  %v2723 = vtanh.pop %v2721
  %v2724 = vsub.f32 1.0, %v2701
  %v2725 = vsub.f32 1.0, %v2703
  %2728 = vrot.lane.b32.xlu0 %v2722, 96
  %v2729 = vpop.permute.xlu0 %2728
  %2730 = vrot.lane.b32.xlu0 %v2723, 96
  %v2731 = vpop.permute.xlu0 %2730
  %v2734 = vmul.f32 %v2724, %v2729
  %v2735 = vmul.f32 %v2725, %v2731
  %v2736 = vmul.f32 %v2701, %v2585
  %v2737 = vmul.f32 %v2703, %v2592
  %v2738 = vadd.f32 %v2734, %v2736
  %v2739 = vadd.f32 %v2735, %v2737
  %v2740 = vlaneseq
  %v2741 = vshrl.u32 %v2740, 7
  %v2742 = vsub.s32 0, %v2741
  %v2743 = vrot.slane %v2738, %v2742
  %v2744 = vlaneseq
  %v2745 = vshrl.u32 %v2744, 7
  %v2746 = vsub.s32 0, %v2745
  %v2747 = vrot.slane %v2739, %v2746
  %v2748 = vsel %vm654, %v2743, %v2516
  %v2749 = vsel %vm654, %v2747, %v2517
  %v2750 = vmul.f32 %v2738, %v2284
  %v2751 = vmul.f32 %v2739, %v2284
  %v2754 = vrot.slane %v2751, 7
  %v2755 = vsel %vm407, %v2754, %v2750
  %2756 = vrot.lane.b32.xlu0 %v2755, 96
  %v2757 = vpop.permute.xlu0 %2756
  %v2759 = vsel %vm412, %v2757, 0.0
  %2760 = vadd.xlane.f32.xlu0 %v2759
  %v2761 = vpop.xlane.xlu0 %2760
  %v2762 = vsel %vm874, %v2761, %v2530
  %v2763 = vsel %vm888, %v2197, 0.0
  %v2764 = vsel %vm888, %v2198, 0.0
  %v2765 = vsel %vm420, %v2763, 0.0
  %v2766 = vrot.slane %v2765, 4
  %v2767 = vadd.f32 %v2765, %v2766
  %v2768 = vrot.slane %v2767, 2
  %v2769 = vadd.f32 %v2767, %v2768
  %v2770 = vrot.slane %v2769, 1
  %v2771 = vadd.f32 %v2769, %v2770
  %v2772 = vsel %vm420, %v2764, 0.0
  %v2773 = vrot.slane %v2772, 4
  %v2774 = vadd.f32 %v2772, %v2773
  %v2775 = vrot.slane %v2774, 2
  %v2776 = vadd.f32 %v2774, %v2775
  %v2777 = vrot.slane %v2776, 1
  %v2778 = vadd.f32 %v2776, %v2777
  %v2781 = vsel %vm407, %v2778, %v2771
  %v2783 = vadd.f32 %v2762, %v2781
  %v2784 = vsel %vm440, %v2783, -inf
  %2785 = vmax.xlane.f32.xlu0 %v2784
  %v2786 = vpop.xlane.xlu0 %2785
  %v2787 = vsub.f32 %v2783, %v2786
  %v2788 = vmul.f32 %v2787, 1.442695
  %v2789 = vpow.pop %v2788
  %v2790 = vsel %vm440, %v2789, 0.0
  %2791 = vadd.xlane.f32.xlu0 %v2790
  %v2792 = vpop.xlane.xlu0 %2791
  %v2793 = vrcp.pop %v2792
  %v2794 = vmul.f32 %v2789, %v2793
  %v2795 = vlaneseq
  %v2796 = vshrl.u32 %v2795, 7
  %v2797 = vsub.s32 0, %v2796
  %v2798 = vrot.slane %v2794, %v2797
  %2800 = vbcast.lane.b32.xlu0 %v2798, 256
  %v2801 = vpop.permute.xlu0 %2800
  %v2802 = vlaneseq
  %v2803 = vshrl.u32 %v2802, 7
  %v2804 = vsub.s32 1, %v2803
  %v2805 = vrot.slane %v2794, %v2804
  %2807 = vbcast.lane.b32.xlu0 %v2805, 256
  %v2808 = vpop.permute.xlu0 %2807
  %v2809 = vmul.f32 %v2801, %v2748
  %v2810 = vmul.f32 %v2808, %v2749
  %v2811 = vsel %vm468, %v2809, 0.0
  %v2812 = vrot.slane %v2811, 4
  %v2813 = vadd.f32 %v2811, %v2812
  %v2814 = vrot.slane %v2813, 2
  %v2815 = vadd.f32 %v2813, %v2814
  %v2816 = vrot.slane %v2815, 1
  %v2817 = vadd.f32 %v2815, %v2816
  %v2818 = vsel %vm468, %v2810, 0.0
  %v2819 = vrot.slane %v2818, 4
  %v2820 = vadd.f32 %v2818, %v2819
  %v2821 = vrot.slane %v2820, 2
  %v2822 = vadd.f32 %v2820, %v2821
  %v2823 = vrot.slane %v2822, 1
  %v2824 = vadd.f32 %v2822, %v2823
  %v2827 = vsel %vm407, %v2824, %v2817
  %2828 = vrot.lane.b32.xlu0 %v2827, 96
  %v2829 = vpop.permute.xlu0 %2828
  %v2830 = vsel %vm196, %v2829, 0
  %2832 = vmatprep.subr.mxu0 0.0
  %2833 = vmatpush1.msra.mxu0 %v2050
  %2834 = vmatprep.subr.mxu0 0.0
  %2835 = vmatpush1.msra.mxu0 %v2051
  %2836 = vmatprep.subr.mxu0 0.0
  %2837 = vmatpush1.msra.mxu0 %v2052
  %2838 = vmatprep.subr.mxu0 0.0
  %2839 = vmatpush1.msra.mxu0 %v2053
  %2840 = vmatprep.subr.mxu0 0.0
  %2841 = vmatpush1.msra.mxu0 0.0
  %2842 = vmatprep.subr.mxu0 0.0
  %2843 = vmatpush1.msra.mxu0 0.0
  %2844 = vmatprep.subr.mxu0 0.0
  %2845 = vmatpush1.msra.mxu0 0.0
  %2846 = vmatprep.subr.mxu0 0.0
  %2847 = vmatpush1.msra.mxu0 0.0
  %2848 = vmatprep.subr.mxu0 0.0
  %2849 = vmatpush1.msra.mxu0 0.0
  %2850 = vmatprep.subr.mxu0 0.0
  %2851 = vmatpush1.msra.mxu0 0.0
  %2852 = vmatprep.subr.mxu0 0.0
  %2853 = vmatpush1.msra.mxu0 0.0
  %2854 = vmatprep.subr.mxu0 0.0
  %2855 = vmatpush1.msra.mxu0 0.0
  %2856 = vmatprep.subr.mxu0 0.0
  %2857 = vmatpush1.msra.mxu0 0.0
  %2858 = vmatprep.subr.mxu0 0.0
  %2859 = vmatpush1.msra.mxu0 0.0
  %2860 = vmatprep.subr.mxu0 0.0
  %2861 = vmatpush1.msra.mxu0 0.0
  %2862 = vmatprep.subr.mxu0 0.0
  %2863 = vmatpush1.msra.mxu0 0.0
  %2864 = vmatprep.subr.mxu0 0.0
  %2865 = vmatpush1.msra.mxu0 0.0
  %2866 = vmatprep.subr.mxu0 0.0
  %2867 = vmatpush1.msra.mxu0 0.0
  %2868 = vmatprep.subr.mxu0 0.0
  %2869 = vmatpush1.msra.mxu0 0.0
  %2870 = vmatprep.subr.mxu0 0.0
  %2871 = vmatpush1.msra.mxu0 0.0
  %2872 = vmatprep.subr.mxu0 0.0
  %2873 = vmatpush1.msra.mxu0 0.0
  %2874 = vmatprep.subr.mxu0 0.0
  %2875 = vmatpush1.msra.mxu0 0.0
  %2876 = vmatprep.subr.mxu0 0.0
  %2877 = vmatpush1.msra.mxu0 0.0
  %2878 = vmatprep.subr.mxu0 0.0
  %2879 = vmatpush1.msra.mxu0 0.0
  %2880 = vmatprep.subr.mxu0 0.0
  %2881 = vmatpush1.msra.mxu0 0.0
  %2882 = vmatprep.subr.mxu0 0.0
  %2883 = vmatpush1.msra.mxu0 0.0
  %2884 = vmatprep.subr.mxu0 0.0
  %2885 = vmatpush1.msra.mxu0 0.0
  %2886 = vmatprep.subr.mxu0 0.0
  %2887 = vmatpush1.msra.mxu0 0.0
  %2888 = vmatprep.subr.mxu0 0.0
  %2889 = vmatpush1.msra.mxu0 0.0
  %2890 = vmatprep.subr.mxu0 0.0
  %2891 = vmatpush1.msra.mxu0 0.0
  %2892 = vmatprep.subr.mxu0 0.0
  %2893 = vmatpush1.msra.mxu0 0.0
  %2894 = vmatprep.subr.mxu0 0.0
  %2895 = vmatpush1.msra.mxu0 0.0
  %2896 = vmatprep.mubr.f32.mxu0 0.0
  %2897 = vmatmul.mubr.f32.gmra.mrb[0].mxu0 %v2830
  %v2898 = vpop.f32.mrb[0].mxu0
  %v2899 = vadd.f32 %v2219, %v2898
  %v2900 = vpop.f32.mrb[0].mxu0
  %2901 = vdwg.mxu0
  %v2902 = vsel %vm888, %v2147, 0.0
  %v2903 = vsel %vm888, %v2152, 0.0
  %v2904 = vsel %vm315, %v2902, 0.0
  %v2905 = vrot.slane %v2904, 4
  %v2906 = vadd.f32 %v2904, %v2905
  %v2907 = vrot.slane %v2906, 2
  %v2908 = vadd.f32 %v2906, %v2907
  %v2909 = vrot.slane %v2908, 1
  %v2910 = vadd.f32 %v2908, %v2909
  %v2911 = vsel %vm315, %v2903, 0.0
  %v2912 = vrot.slane %v2911, 4
  %v2913 = vadd.f32 %v2911, %v2912
  %v2914 = vrot.slane %v2913, 2
  %v2915 = vadd.f32 %v2913, %v2914
  %v2916 = vrot.slane %v2915, 1
  %v2917 = vadd.f32 %v2915, %v2916
  %v2919 = vrot.slane %v2899, 1
  %v2922 = vadd.f32 %v2910, %v2899
  %v2923 = vadd.f32 %v2917, %v2919
  %v2924 = vxor.u32 %v2922, 2147483648
  %v2925 = vxor.u32 %v2923, 2147483648
  %v2926 = vmul.f32 %v2924, 1.442695
  %v2927 = vpow.pop %v2926
  %v2928 = vmul.f32 %v2925, 1.442695
  %v2929 = vpow.pop %v2928
  %v2930 = vadd.f32 %v2927, 1.0
  %v2931 = vadd.f32 %v2929, 1.0
  %v2932 = vrcp.pop %v2930
  %v2933 = vmul.f32 1.0, %v2932
  %v2934 = vrcp.pop %v2931
  %v2935 = vmul.f32 1.0, %v2934
  %2936 = vrot.lane.b32.xlu0 %v2899, 64
  %v2937 = vpop.permute.xlu0 %2936
  %2938 = vrot.lane.b32.xlu0 %v2919, 64
  %v2939 = vpop.permute.xlu0 %2938
  %v2942 = vmul.f32 %v2933, %v2937
  %v2943 = vmul.f32 %v2935, %v2939
  %2946 = vrot.lane.b32.xlu0 %v2942, 64
  %v2947 = vpop.permute.xlu0 %2946
  %2948 = vrot.lane.b32.xlu0 %v2943, 64
  %v2949 = vpop.permute.xlu0 %2948
  %v2952 = vadd.f32 %v2910, %v2947
  %v2953 = vadd.f32 %v2917, %v2949
  %v2954 = vtanh.pop %v2952
  %v2955 = vtanh.pop %v2953
  %v2956 = vsub.f32 1.0, %v2933
  %v2957 = vsub.f32 1.0, %v2935
  %2960 = vrot.lane.b32.xlu0 %v2954, 96
  %v2961 = vpop.permute.xlu0 %2960
  %2962 = vrot.lane.b32.xlu0 %v2955, 96
  %v2963 = vpop.permute.xlu0 %2962
  %v2966 = vmul.f32 %v2956, %v2961
  %v2967 = vmul.f32 %v2957, %v2963
  %v2968 = vmul.f32 %v2933, %v2817
  %v2969 = vmul.f32 %v2935, %v2824
  %v2970 = vadd.f32 %v2966, %v2968
  %v2971 = vadd.f32 %v2967, %v2969
  %v2972 = vlaneseq
  %v2973 = vshrl.u32 %v2972, 7
  %v2974 = vsub.s32 0, %v2973
  %v2975 = vrot.slane %v2970, %v2974
  %v2976 = vlaneseq
  %v2977 = vshrl.u32 %v2976, 7
  %v2978 = vsub.s32 0, %v2977
  %v2979 = vrot.slane %v2971, %v2978
  %v2980 = vsel %vm888, %v2975, %v2748
  %v2981 = vsel %vm888, %v2979, %v2749
  %v2982 = vmul.f32 %v2970, %v2284
  %v2983 = vmul.f32 %v2971, %v2284
  %v2986 = vrot.slane %v2983, 7
  %v2987 = vsel %vm407, %v2986, %v2982
  %2988 = vrot.lane.b32.xlu0 %v2987, 96
  %v2989 = vpop.permute.xlu0 %2988
  %v2991 = vsel %vm412, %v2989, 0.0
  %2992 = vadd.xlane.f32.xlu0 %v2991
  %v2993 = vpop.xlane.xlu0 %2992
  %v2994 = vsel %vm1108, %v2993, %v2762
  %v2995 = vsel %vm1122, %v2197, 0.0
  %v2996 = vsel %vm1122, %v2198, 0.0
  %v2997 = vsel %vm420, %v2995, 0.0
  %v2998 = vrot.slane %v2997, 4
  %v2999 = vadd.f32 %v2997, %v2998
  %v3000 = vrot.slane %v2999, 2
  %v3001 = vadd.f32 %v2999, %v3000
  %v3002 = vrot.slane %v3001, 1
  %v3003 = vadd.f32 %v3001, %v3002
  %v3004 = vsel %vm420, %v2996, 0.0
  %v3005 = vrot.slane %v3004, 4
  %v3006 = vadd.f32 %v3004, %v3005
  %v3007 = vrot.slane %v3006, 2
  %v3008 = vadd.f32 %v3006, %v3007
  %v3009 = vrot.slane %v3008, 1
  %v3010 = vadd.f32 %v3008, %v3009
  %v3013 = vsel %vm407, %v3010, %v3003
  %v3015 = vadd.f32 %v2994, %v3013
  %v3016 = vsel %vm440, %v3015, -inf
  %3017 = vmax.xlane.f32.xlu0 %v3016
  %v3018 = vpop.xlane.xlu0 %3017
  %v3019 = vsub.f32 %v3015, %v3018
  %v3020 = vmul.f32 %v3019, 1.442695
  %v3021 = vpow.pop %v3020
  %v3022 = vsel %vm440, %v3021, 0.0
  %3023 = vadd.xlane.f32.xlu0 %v3022
  %v3024 = vpop.xlane.xlu0 %3023
  %v3025 = vrcp.pop %v3024
  %v3026 = vmul.f32 %v3021, %v3025
  %v3027 = vlaneseq
  %v3028 = vshrl.u32 %v3027, 7
  %v3029 = vsub.s32 0, %v3028
  %v3030 = vrot.slane %v3026, %v3029
  %3032 = vbcast.lane.b32.xlu0 %v3030, 256
  %v3033 = vpop.permute.xlu0 %3032
  %v3034 = vlaneseq
  %v3035 = vshrl.u32 %v3034, 7
  %v3036 = vsub.s32 1, %v3035
  %v3037 = vrot.slane %v3026, %v3036
  %3039 = vbcast.lane.b32.xlu0 %v3037, 256
  %v3040 = vpop.permute.xlu0 %3039
  %v3041 = vmul.f32 %v3033, %v2980
  %v3042 = vmul.f32 %v3040, %v2981
  %v3043 = vsel %vm468, %v3041, 0.0
  %v3044 = vrot.slane %v3043, 4
  %v3045 = vadd.f32 %v3043, %v3044
  %v3046 = vrot.slane %v3045, 2
  %v3047 = vadd.f32 %v3045, %v3046
  %v3048 = vrot.slane %v3047, 1
  %v3049 = vadd.f32 %v3047, %v3048
  %v3050 = vsel %vm468, %v3042, 0.0
  %v3051 = vrot.slane %v3050, 4
  %v3052 = vadd.f32 %v3050, %v3051
  %v3053 = vrot.slane %v3052, 2
  %v3054 = vadd.f32 %v3052, %v3053
  %v3055 = vrot.slane %v3054, 1
  %v3056 = vadd.f32 %v3054, %v3055
  %v3059 = vsel %vm407, %v3056, %v3049
  %3060 = vrot.lane.b32.xlu0 %v3059, 96
  %v3061 = vpop.permute.xlu0 %3060
  %v3062 = vsel %vm196, %v3061, 0
  %3064 = vmatprep.subr.mxu0 0.0
  %3065 = vmatpush1.msra.mxu0 %v2050
  %3066 = vmatprep.subr.mxu0 0.0
  %3067 = vmatpush1.msra.mxu0 %v2051
  %3068 = vmatprep.subr.mxu0 0.0
  %3069 = vmatpush1.msra.mxu0 %v2052
  %3070 = vmatprep.subr.mxu0 0.0
  %3071 = vmatpush1.msra.mxu0 %v2053
  %3072 = vmatprep.subr.mxu0 0.0
  %3073 = vmatpush1.msra.mxu0 0.0
  %3074 = vmatprep.subr.mxu0 0.0
  %3075 = vmatpush1.msra.mxu0 0.0
  %3076 = vmatprep.subr.mxu0 0.0
  %3077 = vmatpush1.msra.mxu0 0.0
  %3078 = vmatprep.subr.mxu0 0.0
  %3079 = vmatpush1.msra.mxu0 0.0
  %3080 = vmatprep.subr.mxu0 0.0
  %3081 = vmatpush1.msra.mxu0 0.0
  %3082 = vmatprep.subr.mxu0 0.0
  %3083 = vmatpush1.msra.mxu0 0.0
  %3084 = vmatprep.subr.mxu0 0.0
  %3085 = vmatpush1.msra.mxu0 0.0
  %3086 = vmatprep.subr.mxu0 0.0
  %3087 = vmatpush1.msra.mxu0 0.0
  %3088 = vmatprep.subr.mxu0 0.0
  %3089 = vmatpush1.msra.mxu0 0.0
  %3090 = vmatprep.subr.mxu0 0.0
  %3091 = vmatpush1.msra.mxu0 0.0
  %3092 = vmatprep.subr.mxu0 0.0
  %3093 = vmatpush1.msra.mxu0 0.0
  %3094 = vmatprep.subr.mxu0 0.0
  %3095 = vmatpush1.msra.mxu0 0.0
  %3096 = vmatprep.subr.mxu0 0.0
  %3097 = vmatpush1.msra.mxu0 0.0
  %3098 = vmatprep.subr.mxu0 0.0
  %3099 = vmatpush1.msra.mxu0 0.0
  %3100 = vmatprep.subr.mxu0 0.0
  %3101 = vmatpush1.msra.mxu0 0.0
  %3102 = vmatprep.subr.mxu0 0.0
  %3103 = vmatpush1.msra.mxu0 0.0
  %3104 = vmatprep.subr.mxu0 0.0
  %3105 = vmatpush1.msra.mxu0 0.0
  %3106 = vmatprep.subr.mxu0 0.0
  %3107 = vmatpush1.msra.mxu0 0.0
  %3108 = vmatprep.subr.mxu0 0.0
  %3109 = vmatpush1.msra.mxu0 0.0
  %3110 = vmatprep.subr.mxu0 0.0
  %3111 = vmatpush1.msra.mxu0 0.0
  %3112 = vmatprep.subr.mxu0 0.0
  %3113 = vmatpush1.msra.mxu0 0.0
  %3114 = vmatprep.subr.mxu0 0.0
  %3115 = vmatpush1.msra.mxu0 0.0
  %3116 = vmatprep.subr.mxu0 0.0
  %3117 = vmatpush1.msra.mxu0 0.0
  %3118 = vmatprep.subr.mxu0 0.0
  %3119 = vmatpush1.msra.mxu0 0.0
  %3120 = vmatprep.subr.mxu0 0.0
  %3121 = vmatpush1.msra.mxu0 0.0
  %3122 = vmatprep.subr.mxu0 0.0
  %3123 = vmatpush1.msra.mxu0 0.0
  %3124 = vmatprep.subr.mxu0 0.0
  %3125 = vmatpush1.msra.mxu0 0.0
  %3126 = vmatprep.subr.mxu0 0.0
  %3127 = vmatpush1.msra.mxu0 0.0
  %3128 = vmatprep.mubr.f32.mxu0 0.0
  %3129 = vmatmul.mubr.f32.gmra.mrb[0].mxu0 %v3062
  %v3130 = vpop.f32.mrb[0].mxu0
  %v3131 = vadd.f32 %v2219, %v3130
  %v3132 = vpop.f32.mrb[0].mxu0
  %3133 = vdwg.mxu0
  %v3134 = vsel %vm1122, %v2147, 0.0
  %v3135 = vsel %vm1122, %v2152, 0.0
  %v3136 = vsel %vm315, %v3134, 0.0
  %v3137 = vrot.slane %v3136, 4
  %v3138 = vadd.f32 %v3136, %v3137
  %v3139 = vrot.slane %v3138, 2
  %v3140 = vadd.f32 %v3138, %v3139
  %v3141 = vrot.slane %v3140, 1
  %v3142 = vadd.f32 %v3140, %v3141
  %v3143 = vsel %vm315, %v3135, 0.0
  %v3144 = vrot.slane %v3143, 4
  %v3145 = vadd.f32 %v3143, %v3144
  %v3146 = vrot.slane %v3145, 2
  %v3147 = vadd.f32 %v3145, %v3146
  %v3148 = vrot.slane %v3147, 1
  %v3149 = vadd.f32 %v3147, %v3148
  %v3151 = vrot.slane %v3131, 1
  %v3154 = vadd.f32 %v3142, %v3131
  %v3155 = vadd.f32 %v3149, %v3151
  %v3156 = vxor.u32 %v3154, 2147483648
  %v3157 = vxor.u32 %v3155, 2147483648
  %v3158 = vmul.f32 %v3156, 1.442695
  %v3159 = vpow.pop %v3158
  %v3160 = vmul.f32 %v3157, 1.442695
  %v3161 = vpow.pop %v3160
  %v3162 = vadd.f32 %v3159, 1.0
  %v3163 = vadd.f32 %v3161, 1.0
  %v3164 = vrcp.pop %v3162
  %v3165 = vmul.f32 1.0, %v3164
  %v3166 = vrcp.pop %v3163
  %v3167 = vmul.f32 1.0, %v3166
  %3168 = vrot.lane.b32.xlu0 %v3131, 64
  %v3169 = vpop.permute.xlu0 %3168
  %3170 = vrot.lane.b32.xlu0 %v3151, 64
  %v3171 = vpop.permute.xlu0 %3170
  %v3174 = vmul.f32 %v3165, %v3169
  %v3175 = vmul.f32 %v3167, %v3171
  %3178 = vrot.lane.b32.xlu0 %v3174, 64
  %v3179 = vpop.permute.xlu0 %3178
  %3180 = vrot.lane.b32.xlu0 %v3175, 64
  %v3181 = vpop.permute.xlu0 %3180
  %v3184 = vadd.f32 %v3142, %v3179
  %v3185 = vadd.f32 %v3149, %v3181
  %v3186 = vtanh.pop %v3184
  %v3187 = vtanh.pop %v3185
  %v3188 = vsub.f32 1.0, %v3165
  %v3189 = vsub.f32 1.0, %v3167
  %3192 = vrot.lane.b32.xlu0 %v3186, 96
  %v3193 = vpop.permute.xlu0 %3192
  %3194 = vrot.lane.b32.xlu0 %v3187, 96
  %v3195 = vpop.permute.xlu0 %3194
  %v3198 = vmul.f32 %v3188, %v3193
  %v3199 = vmul.f32 %v3189, %v3195
  %v3200 = vmul.f32 %v3165, %v3049
  %v3201 = vmul.f32 %v3167, %v3056
  %v3202 = vadd.f32 %v3198, %v3200
  %v3203 = vadd.f32 %v3199, %v3201
  %v3204 = vlaneseq
  %v3205 = vshrl.u32 %v3204, 7
  %v3206 = vsub.s32 0, %v3205
  %v3207 = vrot.slane %v3202, %v3206
  %v3208 = vlaneseq
  %v3209 = vshrl.u32 %v3208, 7
  %v3210 = vsub.s32 0, %v3209
  %v3211 = vrot.slane %v3203, %v3210
  %v3212 = vsel %vm1122, %v3207, %v2980
  %v3213 = vsel %vm1122, %v3211, %v2981
  %v3214 = vmul.f32 %v3202, %v2284
  %v3215 = vmul.f32 %v3203, %v2284
  %v3218 = vrot.slane %v3215, 7
  %v3219 = vsel %vm407, %v3218, %v3214
  %3220 = vrot.lane.b32.xlu0 %v3219, 96
  %v3221 = vpop.permute.xlu0 %3220
  %v3223 = vsel %vm412, %v3221, 0.0
  %3224 = vadd.xlane.f32.xlu0 %v3223
  %v3225 = vpop.xlane.xlu0 %3224
  %v3226 = vsel %vm1342, %v3225, %v2994
  %v3227 = vsel %vm1356, %v2197, 0.0
  %v3228 = vsel %vm1356, %v2198, 0.0
  %v3229 = vsel %vm420, %v3227, 0.0
  %v3230 = vrot.slane %v3229, 4
  %v3231 = vadd.f32 %v3229, %v3230
  %v3232 = vrot.slane %v3231, 2
  %v3233 = vadd.f32 %v3231, %v3232
  %v3234 = vrot.slane %v3233, 1
  %v3235 = vadd.f32 %v3233, %v3234
  %v3236 = vsel %vm420, %v3228, 0.0
  %v3237 = vrot.slane %v3236, 4
  %v3238 = vadd.f32 %v3236, %v3237
  %v3239 = vrot.slane %v3238, 2
  %v3240 = vadd.f32 %v3238, %v3239
  %v3241 = vrot.slane %v3240, 1
  %v3242 = vadd.f32 %v3240, %v3241
  %v3245 = vsel %vm407, %v3242, %v3235
  %v3247 = vadd.f32 %v3226, %v3245
  %v3248 = vsel %vm440, %v3247, -inf
  %3249 = vmax.xlane.f32.xlu0 %v3248
  %v3250 = vpop.xlane.xlu0 %3249
  %v3251 = vsub.f32 %v3247, %v3250
  %v3252 = vmul.f32 %v3251, 1.442695
  %v3253 = vpow.pop %v3252
  %v3254 = vsel %vm440, %v3253, 0.0
  %3255 = vadd.xlane.f32.xlu0 %v3254
  %v3256 = vpop.xlane.xlu0 %3255
  %v3257 = vrcp.pop %v3256
  %v3258 = vmul.f32 %v3253, %v3257
  %v3259 = vlaneseq
  %v3260 = vshrl.u32 %v3259, 7
  %v3261 = vsub.s32 0, %v3260
  %v3262 = vrot.slane %v3258, %v3261
  %3264 = vbcast.lane.b32.xlu0 %v3262, 256
  %v3265 = vpop.permute.xlu0 %3264
  %v3266 = vlaneseq
  %v3267 = vshrl.u32 %v3266, 7
  %v3268 = vsub.s32 1, %v3267
  %v3269 = vrot.slane %v3258, %v3268
  %3271 = vbcast.lane.b32.xlu0 %v3269, 256
  %v3272 = vpop.permute.xlu0 %3271
  %v3273 = vmul.f32 %v3265, %v3212
  %v3274 = vmul.f32 %v3272, %v3213
  %v3275 = vsel %vm468, %v3273, 0.0
  %v3276 = vrot.slane %v3275, 4
  %v3277 = vadd.f32 %v3275, %v3276
  %v3278 = vrot.slane %v3277, 2
  %v3279 = vadd.f32 %v3277, %v3278
  %v3280 = vrot.slane %v3279, 1
  %v3281 = vadd.f32 %v3279, %v3280
  %v3282 = vsel %vm468, %v3274, 0.0
  %v3283 = vrot.slane %v3282, 4
  %v3284 = vadd.f32 %v3282, %v3283
  %v3285 = vrot.slane %v3284, 2
  %v3286 = vadd.f32 %v3284, %v3285
  %v3287 = vrot.slane %v3286, 1
  %v3288 = vadd.f32 %v3286, %v3287
  %v3291 = vsel %vm407, %v3288, %v3281
  %3292 = vrot.lane.b32.xlu0 %v3291, 96
  %v3293 = vpop.permute.xlu0 %3292
  %v3294 = vsel %vm196, %v3293, 0
  %3296 = vmatprep.subr.mxu0 0.0
  %3297 = vmatpush1.msra.mxu0 %v2050
  %3298 = vmatprep.subr.mxu0 0.0
  %3299 = vmatpush1.msra.mxu0 %v2051
  %3300 = vmatprep.subr.mxu0 0.0
  %3301 = vmatpush1.msra.mxu0 %v2052
  %3302 = vmatprep.subr.mxu0 0.0
  %3303 = vmatpush1.msra.mxu0 %v2053
  %3304 = vmatprep.subr.mxu0 0.0
  %3305 = vmatpush1.msra.mxu0 0.0
  %3306 = vmatprep.subr.mxu0 0.0
  %3307 = vmatpush1.msra.mxu0 0.0
  %3308 = vmatprep.subr.mxu0 0.0
  %3309 = vmatpush1.msra.mxu0 0.0
  %3310 = vmatprep.subr.mxu0 0.0
  %3311 = vmatpush1.msra.mxu0 0.0
  %3312 = vmatprep.subr.mxu0 0.0
  %3313 = vmatpush1.msra.mxu0 0.0
  %3314 = vmatprep.subr.mxu0 0.0
  %3315 = vmatpush1.msra.mxu0 0.0
  %3316 = vmatprep.subr.mxu0 0.0
  %3317 = vmatpush1.msra.mxu0 0.0
  %3318 = vmatprep.subr.mxu0 0.0
  %3319 = vmatpush1.msra.mxu0 0.0
  %3320 = vmatprep.subr.mxu0 0.0
  %3321 = vmatpush1.msra.mxu0 0.0
  %3322 = vmatprep.subr.mxu0 0.0
  %3323 = vmatpush1.msra.mxu0 0.0
  %3324 = vmatprep.subr.mxu0 0.0
  %3325 = vmatpush1.msra.mxu0 0.0
  %3326 = vmatprep.subr.mxu0 0.0
  %3327 = vmatpush1.msra.mxu0 0.0
  %3328 = vmatprep.subr.mxu0 0.0
  %3329 = vmatpush1.msra.mxu0 0.0
  %3330 = vmatprep.subr.mxu0 0.0
  %3331 = vmatpush1.msra.mxu0 0.0
  %3332 = vmatprep.subr.mxu0 0.0
  %3333 = vmatpush1.msra.mxu0 0.0
  %3334 = vmatprep.subr.mxu0 0.0
  %3335 = vmatpush1.msra.mxu0 0.0
  %3336 = vmatprep.subr.mxu0 0.0
  %3337 = vmatpush1.msra.mxu0 0.0
  %3338 = vmatprep.subr.mxu0 0.0
  %3339 = vmatpush1.msra.mxu0 0.0
  %3340 = vmatprep.subr.mxu0 0.0
  %3341 = vmatpush1.msra.mxu0 0.0
  %3342 = vmatprep.subr.mxu0 0.0
  %3343 = vmatpush1.msra.mxu0 0.0
  %3344 = vmatprep.subr.mxu0 0.0
  %3345 = vmatpush1.msra.mxu0 0.0
  %3346 = vmatprep.subr.mxu0 0.0
  %3347 = vmatpush1.msra.mxu0 0.0
  %3348 = vmatprep.subr.mxu0 0.0
  %3349 = vmatpush1.msra.mxu0 0.0
  %3350 = vmatprep.subr.mxu0 0.0
  %3351 = vmatpush1.msra.mxu0 0.0
  %3352 = vmatprep.subr.mxu0 0.0
  %3353 = vmatpush1.msra.mxu0 0.0
  %3354 = vmatprep.subr.mxu0 0.0
  %3355 = vmatpush1.msra.mxu0 0.0
  %3356 = vmatprep.subr.mxu0 0.0
  %3357 = vmatpush1.msra.mxu0 0.0
  %3358 = vmatprep.subr.mxu0 0.0
  %3359 = vmatpush1.msra.mxu0 0.0
  %3360 = vmatprep.mubr.f32.mxu0 0.0
  %3361 = vmatmul.mubr.f32.gmra.mrb[0].mxu0 %v3294
  %v3362 = vpop.f32.mrb[0].mxu0
  %v3363 = vadd.f32 %v2219, %v3362
  %v3364 = vpop.f32.mrb[0].mxu0
  %3365 = vdwg.mxu0
  %v3366 = vsel %vm1356, %v2147, 0.0
  %v3367 = vsel %vm1356, %v2152, 0.0
  %v3368 = vsel %vm315, %v3366, 0.0
  %v3369 = vrot.slane %v3368, 4
  %v3370 = vadd.f32 %v3368, %v3369
  %v3371 = vrot.slane %v3370, 2
  %v3372 = vadd.f32 %v3370, %v3371
  %v3373 = vrot.slane %v3372, 1
  %v3374 = vadd.f32 %v3372, %v3373
  %v3375 = vsel %vm315, %v3367, 0.0
  %v3376 = vrot.slane %v3375, 4
  %v3377 = vadd.f32 %v3375, %v3376
  %v3378 = vrot.slane %v3377, 2
  %v3379 = vadd.f32 %v3377, %v3378
  %v3380 = vrot.slane %v3379, 1
  %v3381 = vadd.f32 %v3379, %v3380
  %v3383 = vrot.slane %v3363, 1
  %v3386 = vadd.f32 %v3374, %v3363
  %v3387 = vadd.f32 %v3381, %v3383
  %v3388 = vxor.u32 %v3386, 2147483648
  %v3389 = vxor.u32 %v3387, 2147483648
  %v3390 = vmul.f32 %v3388, 1.442695
  %v3391 = vpow.pop %v3390
  %v3392 = vmul.f32 %v3389, 1.442695
  %v3393 = vpow.pop %v3392
  %v3394 = vadd.f32 %v3391, 1.0
  %v3395 = vadd.f32 %v3393, 1.0
  %v3396 = vrcp.pop %v3394
  %v3397 = vmul.f32 1.0, %v3396
  %v3398 = vrcp.pop %v3395
  %v3399 = vmul.f32 1.0, %v3398
  %3400 = vrot.lane.b32.xlu0 %v3363, 64
  %v3401 = vpop.permute.xlu0 %3400
  %3402 = vrot.lane.b32.xlu0 %v3383, 64
  %v3403 = vpop.permute.xlu0 %3402
  %v3406 = vmul.f32 %v3397, %v3401
  %v3407 = vmul.f32 %v3399, %v3403
  %3410 = vrot.lane.b32.xlu0 %v3406, 64
  %v3411 = vpop.permute.xlu0 %3410
  %3412 = vrot.lane.b32.xlu0 %v3407, 64
  %v3413 = vpop.permute.xlu0 %3412
  %v3416 = vadd.f32 %v3374, %v3411
  %v3417 = vadd.f32 %v3381, %v3413
  %v3418 = vtanh.pop %v3416
  %v3419 = vtanh.pop %v3417
  %v3420 = vsub.f32 1.0, %v3397
  %v3421 = vsub.f32 1.0, %v3399
  %3424 = vrot.lane.b32.xlu0 %v3418, 96
  %v3425 = vpop.permute.xlu0 %3424
  %3426 = vrot.lane.b32.xlu0 %v3419, 96
  %v3427 = vpop.permute.xlu0 %3426
  %v3430 = vmul.f32 %v3420, %v3425
  %v3431 = vmul.f32 %v3421, %v3427
  %v3432 = vmul.f32 %v3397, %v3281
  %v3433 = vmul.f32 %v3399, %v3288
  %v3434 = vadd.f32 %v3430, %v3432
  %v3435 = vadd.f32 %v3431, %v3433
  %v3436 = vlaneseq
  %v3437 = vshrl.u32 %v3436, 7
  %v3438 = vsub.s32 0, %v3437
  %v3439 = vrot.slane %v3434, %v3438
  %v3440 = vlaneseq
  %v3441 = vshrl.u32 %v3440, 7
  %v3442 = vsub.s32 0, %v3441
  %v3443 = vrot.slane %v3435, %v3442
  %v3444 = vsel %vm1356, %v3439, %v3212
  %v3445 = vsel %vm1356, %v3443, %v3213
  %v3446 = vmul.f32 %v3434, %v2284
  %v3447 = vmul.f32 %v3435, %v2284
  %v3450 = vrot.slane %v3447, 7
  %v3451 = vsel %vm407, %v3450, %v3446
  %3452 = vrot.lane.b32.xlu0 %v3451, 96
  %v3453 = vpop.permute.xlu0 %3452
  %v3455 = vsel %vm412, %v3453, 0.0
  %3456 = vadd.xlane.f32.xlu0 %v3455
  %v3457 = vpop.xlane.xlu0 %3456
  %v3458 = vsel %vm1576, %v3457, %v3226
  %v3459 = vsel %vm1590, %v2197, 0.0
  %v3460 = vsel %vm1590, %v2198, 0.0
  %v3461 = vsel %vm420, %v3459, 0.0
  %v3462 = vrot.slane %v3461, 4
  %v3463 = vadd.f32 %v3461, %v3462
  %v3464 = vrot.slane %v3463, 2
  %v3465 = vadd.f32 %v3463, %v3464
  %v3466 = vrot.slane %v3465, 1
  %v3467 = vadd.f32 %v3465, %v3466
  %v3468 = vsel %vm420, %v3460, 0.0
  %v3469 = vrot.slane %v3468, 4
  %v3470 = vadd.f32 %v3468, %v3469
  %v3471 = vrot.slane %v3470, 2
  %v3472 = vadd.f32 %v3470, %v3471
  %v3473 = vrot.slane %v3472, 1
  %v3474 = vadd.f32 %v3472, %v3473
  %v3477 = vsel %vm407, %v3474, %v3467
  %v3479 = vadd.f32 %v3458, %v3477
  %v3480 = vsel %vm440, %v3479, -inf
  %3481 = vmax.xlane.f32.xlu0 %v3480
  %v3482 = vpop.xlane.xlu0 %3481
  %v3483 = vsub.f32 %v3479, %v3482
  %v3484 = vmul.f32 %v3483, 1.442695
  %v3485 = vpow.pop %v3484
  %v3486 = vsel %vm440, %v3485, 0.0
  %3487 = vadd.xlane.f32.xlu0 %v3486
  %v3488 = vpop.xlane.xlu0 %3487
  %v3489 = vrcp.pop %v3488
  %v3490 = vmul.f32 %v3485, %v3489
  %v3491 = vlaneseq
  %v3492 = vshrl.u32 %v3491, 7
  %v3493 = vsub.s32 0, %v3492
  %v3494 = vrot.slane %v3490, %v3493
  %3496 = vbcast.lane.b32.xlu0 %v3494, 256
  %v3497 = vpop.permute.xlu0 %3496
  %v3498 = vlaneseq
  %v3499 = vshrl.u32 %v3498, 7
  %v3500 = vsub.s32 1, %v3499
  %v3501 = vrot.slane %v3490, %v3500
  %3503 = vbcast.lane.b32.xlu0 %v3501, 256
  %v3504 = vpop.permute.xlu0 %3503
  %v3505 = vmul.f32 %v3497, %v3444
  %v3506 = vmul.f32 %v3504, %v3445
  %v3507 = vsel %vm468, %v3505, 0.0
  %v3508 = vrot.slane %v3507, 4
  %v3509 = vadd.f32 %v3507, %v3508
  %v3510 = vrot.slane %v3509, 2
  %v3511 = vadd.f32 %v3509, %v3510
  %v3512 = vrot.slane %v3511, 1
  %v3513 = vadd.f32 %v3511, %v3512
  %v3514 = vsel %vm468, %v3506, 0.0
  %v3515 = vrot.slane %v3514, 4
  %v3516 = vadd.f32 %v3514, %v3515
  %v3517 = vrot.slane %v3516, 2
  %v3518 = vadd.f32 %v3516, %v3517
  %v3519 = vrot.slane %v3518, 1
  %v3520 = vadd.f32 %v3518, %v3519
  %v3523 = vsel %vm407, %v3520, %v3513
  %3524 = vrot.lane.b32.xlu0 %v3523, 96
  %v3525 = vpop.permute.xlu0 %3524
  %v3526 = vsel %vm196, %v3525, 0
  %3528 = vmatprep.subr.mxu0 0.0
  %3529 = vmatpush1.msra.mxu0 %v2050
  %3530 = vmatprep.subr.mxu0 0.0
  %3531 = vmatpush1.msra.mxu0 %v2051
  %3532 = vmatprep.subr.mxu0 0.0
  %3533 = vmatpush1.msra.mxu0 %v2052
  %3534 = vmatprep.subr.mxu0 0.0
  %3535 = vmatpush1.msra.mxu0 %v2053
  %3536 = vmatprep.subr.mxu0 0.0
  %3537 = vmatpush1.msra.mxu0 0.0
  %3538 = vmatprep.subr.mxu0 0.0
  %3539 = vmatpush1.msra.mxu0 0.0
  %3540 = vmatprep.subr.mxu0 0.0
  %3541 = vmatpush1.msra.mxu0 0.0
  %3542 = vmatprep.subr.mxu0 0.0
  %3543 = vmatpush1.msra.mxu0 0.0
  %3544 = vmatprep.subr.mxu0 0.0
  %3545 = vmatpush1.msra.mxu0 0.0
  %3546 = vmatprep.subr.mxu0 0.0
  %3547 = vmatpush1.msra.mxu0 0.0
  %3548 = vmatprep.subr.mxu0 0.0
  %3549 = vmatpush1.msra.mxu0 0.0
  %3550 = vmatprep.subr.mxu0 0.0
  %3551 = vmatpush1.msra.mxu0 0.0
  %3552 = vmatprep.subr.mxu0 0.0
  %3553 = vmatpush1.msra.mxu0 0.0
  %3554 = vmatprep.subr.mxu0 0.0
  %3555 = vmatpush1.msra.mxu0 0.0
  %3556 = vmatprep.subr.mxu0 0.0
  %3557 = vmatpush1.msra.mxu0 0.0
  %3558 = vmatprep.subr.mxu0 0.0
  %3559 = vmatpush1.msra.mxu0 0.0
  %3560 = vmatprep.subr.mxu0 0.0
  %3561 = vmatpush1.msra.mxu0 0.0
  %3562 = vmatprep.subr.mxu0 0.0
  %3563 = vmatpush1.msra.mxu0 0.0
  %3564 = vmatprep.subr.mxu0 0.0
  %3565 = vmatpush1.msra.mxu0 0.0
  %3566 = vmatprep.subr.mxu0 0.0
  %3567 = vmatpush1.msra.mxu0 0.0
  %3568 = vmatprep.subr.mxu0 0.0
  %3569 = vmatpush1.msra.mxu0 0.0
  %3570 = vmatprep.subr.mxu0 0.0
  %3571 = vmatpush1.msra.mxu0 0.0
  %3572 = vmatprep.subr.mxu0 0.0
  %3573 = vmatpush1.msra.mxu0 0.0
  %3574 = vmatprep.subr.mxu0 0.0
  %3575 = vmatpush1.msra.mxu0 0.0
  %3576 = vmatprep.subr.mxu0 0.0
  %3577 = vmatpush1.msra.mxu0 0.0
  %3578 = vmatprep.subr.mxu0 0.0
  %3579 = vmatpush1.msra.mxu0 0.0
  %3580 = vmatprep.subr.mxu0 0.0
  %3581 = vmatpush1.msra.mxu0 0.0
  %3582 = vmatprep.subr.mxu0 0.0
  %3583 = vmatpush1.msra.mxu0 0.0
  %3584 = vmatprep.subr.mxu0 0.0
  %3585 = vmatpush1.msra.mxu0 0.0
  %3586 = vmatprep.subr.mxu0 0.0
  %3587 = vmatpush1.msra.mxu0 0.0
  %3588 = vmatprep.subr.mxu0 0.0
  %3589 = vmatpush1.msra.mxu0 0.0
  %3590 = vmatprep.subr.mxu0 0.0
  %3591 = vmatpush1.msra.mxu0 0.0
  %3592 = vmatprep.mubr.f32.mxu0 0.0
  %3593 = vmatmul.mubr.f32.gmra.mrb[0].mxu0 %v3526
  %v3594 = vpop.f32.mrb[0].mxu0
  %v3595 = vadd.f32 %v2219, %v3594
  %v3596 = vpop.f32.mrb[0].mxu0
  %3597 = vdwg.mxu0
  %v3598 = vsel %vm1590, %v2147, 0.0
  %v3599 = vsel %vm1590, %v2152, 0.0
  %v3600 = vsel %vm315, %v3598, 0.0
  %v3601 = vrot.slane %v3600, 4
  %v3602 = vadd.f32 %v3600, %v3601
  %v3603 = vrot.slane %v3602, 2
  %v3604 = vadd.f32 %v3602, %v3603
  %v3605 = vrot.slane %v3604, 1
  %v3606 = vadd.f32 %v3604, %v3605
  %v3607 = vsel %vm315, %v3599, 0.0
  %v3608 = vrot.slane %v3607, 4
  %v3609 = vadd.f32 %v3607, %v3608
  %v3610 = vrot.slane %v3609, 2
  %v3611 = vadd.f32 %v3609, %v3610
  %v3612 = vrot.slane %v3611, 1
  %v3613 = vadd.f32 %v3611, %v3612
  %v3615 = vrot.slane %v3595, 1
  %v3618 = vadd.f32 %v3606, %v3595
  %v3619 = vadd.f32 %v3613, %v3615
  %v3620 = vxor.u32 %v3618, 2147483648
  %v3621 = vxor.u32 %v3619, 2147483648
  %v3622 = vmul.f32 %v3620, 1.442695
  %v3623 = vpow.pop %v3622
  %v3624 = vmul.f32 %v3621, 1.442695
  %v3625 = vpow.pop %v3624
  %v3626 = vadd.f32 %v3623, 1.0
  %v3627 = vadd.f32 %v3625, 1.0
  %v3628 = vrcp.pop %v3626
  %v3629 = vmul.f32 1.0, %v3628
  %v3630 = vrcp.pop %v3627
  %v3631 = vmul.f32 1.0, %v3630
  %3632 = vrot.lane.b32.xlu0 %v3595, 64
  %v3633 = vpop.permute.xlu0 %3632
  %3634 = vrot.lane.b32.xlu0 %v3615, 64
  %v3635 = vpop.permute.xlu0 %3634
  %v3638 = vmul.f32 %v3629, %v3633
  %v3639 = vmul.f32 %v3631, %v3635
  %3642 = vrot.lane.b32.xlu0 %v3638, 64
  %v3643 = vpop.permute.xlu0 %3642
  %3644 = vrot.lane.b32.xlu0 %v3639, 64
  %v3645 = vpop.permute.xlu0 %3644
  %v3648 = vadd.f32 %v3606, %v3643
  %v3649 = vadd.f32 %v3613, %v3645
  %v3650 = vtanh.pop %v3648
  %v3651 = vtanh.pop %v3649
  %v3652 = vsub.f32 1.0, %v3629
  %v3653 = vsub.f32 1.0, %v3631
  %3656 = vrot.lane.b32.xlu0 %v3650, 96
  %v3657 = vpop.permute.xlu0 %3656
  %3658 = vrot.lane.b32.xlu0 %v3651, 96
  %v3659 = vpop.permute.xlu0 %3658
  %v3662 = vmul.f32 %v3652, %v3657
  %v3663 = vmul.f32 %v3653, %v3659
  %v3664 = vmul.f32 %v3629, %v3513
  %v3665 = vmul.f32 %v3631, %v3520
  %v3666 = vadd.f32 %v3662, %v3664
  %v3667 = vadd.f32 %v3663, %v3665
  %v3668 = vlaneseq
  %v3669 = vshrl.u32 %v3668, 7
  %v3670 = vsub.s32 0, %v3669
  %v3671 = vrot.slane %v3666, %v3670
  %v3672 = vlaneseq
  %v3673 = vshrl.u32 %v3672, 7
  %v3674 = vsub.s32 0, %v3673
  %v3675 = vrot.slane %v3667, %v3674
  %v3676 = vsel %vm1590, %v3671, %v3444
  %v3677 = vsel %vm1590, %v3675, %v3445
  %v3678 = vmul.f32 %v3666, %v2284
  %v3679 = vmul.f32 %v3667, %v2284
  %v3682 = vrot.slane %v3679, 7
  %v3683 = vsel %vm407, %v3682, %v3678
  %3684 = vrot.lane.b32.xlu0 %v3683, 96
  %v3685 = vpop.permute.xlu0 %3684
  %v3687 = vsel %vm412, %v3685, 0.0
  %3688 = vadd.xlane.f32.xlu0 %v3687
  %v3689 = vpop.xlane.xlu0 %3688
  %v3690 = vsel %vm1810, %v3689, %v3458
  %v3691 = vsel %vm1824, %v2197, 0.0
  %v3692 = vsel %vm1824, %v2198, 0.0
  %v3693 = vsel %vm420, %v3691, 0.0
  %v3694 = vrot.slane %v3693, 4
  %v3695 = vadd.f32 %v3693, %v3694
  %v3696 = vrot.slane %v3695, 2
  %v3697 = vadd.f32 %v3695, %v3696
  %v3698 = vrot.slane %v3697, 1
  %v3699 = vadd.f32 %v3697, %v3698
  %v3700 = vsel %vm420, %v3692, 0.0
  %v3701 = vrot.slane %v3700, 4
  %v3702 = vadd.f32 %v3700, %v3701
  %v3703 = vrot.slane %v3702, 2
  %v3704 = vadd.f32 %v3702, %v3703
  %v3705 = vrot.slane %v3704, 1
  %v3706 = vadd.f32 %v3704, %v3705
  %v3709 = vsel %vm407, %v3706, %v3699
  %v3711 = vadd.f32 %v3690, %v3709
  %v3712 = vsel %vm440, %v3711, -inf
  %3713 = vmax.xlane.f32.xlu0 %v3712
  %v3714 = vpop.xlane.xlu0 %3713
  %v3715 = vsub.f32 %v3711, %v3714
  %v3716 = vmul.f32 %v3715, 1.442695
  %v3717 = vpow.pop %v3716
  %v3718 = vsel %vm440, %v3717, 0.0
  %3719 = vadd.xlane.f32.xlu0 %v3718
  %v3720 = vpop.xlane.xlu0 %3719
  %v3721 = vrcp.pop %v3720
  %v3722 = vmul.f32 %v3717, %v3721
  %v3723 = vlaneseq
  %v3724 = vshrl.u32 %v3723, 7
  %v3725 = vsub.s32 0, %v3724
  %v3726 = vrot.slane %v3722, %v3725
  %3728 = vbcast.lane.b32.xlu0 %v3726, 256
  %v3729 = vpop.permute.xlu0 %3728
  %v3730 = vlaneseq
  %v3731 = vshrl.u32 %v3730, 7
  %v3732 = vsub.s32 1, %v3731
  %v3733 = vrot.slane %v3722, %v3732
  %3735 = vbcast.lane.b32.xlu0 %v3733, 256
  %v3736 = vpop.permute.xlu0 %3735
  %v3737 = vmul.f32 %v3729, %v3676
  %v3738 = vmul.f32 %v3736, %v3677
  %v3739 = vsel %vm468, %v3737, 0.0
  %v3740 = vrot.slane %v3739, 4
  %v3741 = vadd.f32 %v3739, %v3740
  %v3742 = vrot.slane %v3741, 2
  %v3743 = vadd.f32 %v3741, %v3742
  %v3744 = vrot.slane %v3743, 1
  %v3745 = vadd.f32 %v3743, %v3744
  %v3746 = vsel %vm468, %v3738, 0.0
  %v3747 = vrot.slane %v3746, 4
  %v3748 = vadd.f32 %v3746, %v3747
  %v3749 = vrot.slane %v3748, 2
  %v3750 = vadd.f32 %v3748, %v3749
  %v3751 = vrot.slane %v3750, 1
  %v3752 = vadd.f32 %v3750, %v3751
  %v3755 = vsel %vm407, %v3752, %v3745
  %3756 = vrot.lane.b32.xlu0 %v3755, 96
  %v3757 = vpop.permute.xlu0 %3756
  %v3758 = vsel %vm196, %v3757, 0
  %3760 = vmatprep.subr.mxu0 0.0
  %3761 = vmatpush1.msra.mxu0 %v2050
  %3762 = vmatprep.subr.mxu0 0.0
  %3763 = vmatpush1.msra.mxu0 %v2051
  %3764 = vmatprep.subr.mxu0 0.0
  %3765 = vmatpush1.msra.mxu0 %v2052
  %3766 = vmatprep.subr.mxu0 0.0
  %3767 = vmatpush1.msra.mxu0 %v2053
  %3768 = vmatprep.subr.mxu0 0.0
  %3769 = vmatpush1.msra.mxu0 0.0
  %3770 = vmatprep.subr.mxu0 0.0
  %3771 = vmatpush1.msra.mxu0 0.0
  %3772 = vmatprep.subr.mxu0 0.0
  %3773 = vmatpush1.msra.mxu0 0.0
  %3774 = vmatprep.subr.mxu0 0.0
  %3775 = vmatpush1.msra.mxu0 0.0
  %3776 = vmatprep.subr.mxu0 0.0
  %3777 = vmatpush1.msra.mxu0 0.0
  %3778 = vmatprep.subr.mxu0 0.0
  %3779 = vmatpush1.msra.mxu0 0.0
  %3780 = vmatprep.subr.mxu0 0.0
  %3781 = vmatpush1.msra.mxu0 0.0
  %3782 = vmatprep.subr.mxu0 0.0
  %3783 = vmatpush1.msra.mxu0 0.0
  %3784 = vmatprep.subr.mxu0 0.0
  %3785 = vmatpush1.msra.mxu0 0.0
  %3786 = vmatprep.subr.mxu0 0.0
  %3787 = vmatpush1.msra.mxu0 0.0
  %3788 = vmatprep.subr.mxu0 0.0
  %3789 = vmatpush1.msra.mxu0 0.0
  %3790 = vmatprep.subr.mxu0 0.0
  %3791 = vmatpush1.msra.mxu0 0.0
  %3792 = vmatprep.subr.mxu0 0.0
  %3793 = vmatpush1.msra.mxu0 0.0
  %3794 = vmatprep.subr.mxu0 0.0
  %3795 = vmatpush1.msra.mxu0 0.0
  %3796 = vmatprep.subr.mxu0 0.0
  %3797 = vmatpush1.msra.mxu0 0.0
  %3798 = vmatprep.subr.mxu0 0.0
  %3799 = vmatpush1.msra.mxu0 0.0
  %3800 = vmatprep.subr.mxu0 0.0
  %3801 = vmatpush1.msra.mxu0 0.0
  %3802 = vmatprep.subr.mxu0 0.0
  %3803 = vmatpush1.msra.mxu0 0.0
  %3804 = vmatprep.subr.mxu0 0.0
  %3805 = vmatpush1.msra.mxu0 0.0
  %3806 = vmatprep.subr.mxu0 0.0
  %3807 = vmatpush1.msra.mxu0 0.0
  %3808 = vmatprep.subr.mxu0 0.0
  %3809 = vmatpush1.msra.mxu0 0.0
  %3810 = vmatprep.subr.mxu0 0.0
  %3811 = vmatpush1.msra.mxu0 0.0
  %3812 = vmatprep.subr.mxu0 0.0
  %3813 = vmatpush1.msra.mxu0 0.0
  %3814 = vmatprep.subr.mxu0 0.0
  %3815 = vmatpush1.msra.mxu0 0.0
  %3816 = vmatprep.subr.mxu0 0.0
  %3817 = vmatpush1.msra.mxu0 0.0
  %3818 = vmatprep.subr.mxu0 0.0
  %3819 = vmatpush1.msra.mxu0 0.0
  %3820 = vmatprep.subr.mxu0 0.0
  %3821 = vmatpush1.msra.mxu0 0.0
  %3822 = vmatprep.subr.mxu0 0.0
  %3823 = vmatpush1.msra.mxu0 0.0
  %3824 = vmatprep.mubr.f32.mxu0 0.0
  %3825 = vmatmul.mubr.f32.gmra.mrb[0].mxu0 %v3758
  %v3826 = vpop.f32.mrb[0].mxu0
  %v3827 = vadd.f32 %v2219, %v3826
  %v3828 = vpop.f32.mrb[0].mxu0
  %3829 = vdwg.mxu0
  %v3830 = vsel %vm1824, %v2147, 0.0
  %v3831 = vsel %vm1824, %v2152, 0.0
  %v3832 = vsel %vm315, %v3830, 0.0
  %v3833 = vrot.slane %v3832, 4
  %v3834 = vadd.f32 %v3832, %v3833
  %v3835 = vrot.slane %v3834, 2
  %v3836 = vadd.f32 %v3834, %v3835
  %v3837 = vrot.slane %v3836, 1
  %v3838 = vadd.f32 %v3836, %v3837
  %v3839 = vsel %vm315, %v3831, 0.0
  %v3840 = vrot.slane %v3839, 4
  %v3841 = vadd.f32 %v3839, %v3840
  %v3842 = vrot.slane %v3841, 2
  %v3843 = vadd.f32 %v3841, %v3842
  %v3844 = vrot.slane %v3843, 1
  %v3845 = vadd.f32 %v3843, %v3844
  %v3847 = vrot.slane %v3827, 1
  %v3850 = vadd.f32 %v3838, %v3827
  %v3851 = vadd.f32 %v3845, %v3847
  %v3852 = vxor.u32 %v3850, 2147483648
  %v3853 = vxor.u32 %v3851, 2147483648
  %v3854 = vmul.f32 %v3852, 1.442695
  %v3855 = vpow.pop %v3854
  %v3856 = vmul.f32 %v3853, 1.442695
  %v3857 = vpow.pop %v3856
  %v3858 = vadd.f32 %v3855, 1.0
  %v3859 = vadd.f32 %v3857, 1.0
  %v3860 = vrcp.pop %v3858
  %v3861 = vmul.f32 1.0, %v3860
  %v3862 = vrcp.pop %v3859
  %v3863 = vmul.f32 1.0, %v3862
  %3864 = vrot.lane.b32.xlu0 %v3827, 64
  %v3865 = vpop.permute.xlu0 %3864
  %3866 = vrot.lane.b32.xlu0 %v3847, 64
  %v3867 = vpop.permute.xlu0 %3866
  %v3870 = vmul.f32 %v3861, %v3865
  %v3871 = vmul.f32 %v3863, %v3867
  %3874 = vrot.lane.b32.xlu0 %v3870, 64
  %v3875 = vpop.permute.xlu0 %3874
  %3876 = vrot.lane.b32.xlu0 %v3871, 64
  %v3877 = vpop.permute.xlu0 %3876
  %v3880 = vadd.f32 %v3838, %v3875
  %v3881 = vadd.f32 %v3845, %v3877
  %v3882 = vtanh.pop %v3880
  %v3883 = vtanh.pop %v3881
  %v3884 = vsub.f32 1.0, %v3861
  %v3885 = vsub.f32 1.0, %v3863
  %3888 = vrot.lane.b32.xlu0 %v3882, 96
  %v3889 = vpop.permute.xlu0 %3888
  %3890 = vrot.lane.b32.xlu0 %v3883, 96
  %v3891 = vpop.permute.xlu0 %3890
  %v3894 = vmul.f32 %v3884, %v3889
  %v3895 = vmul.f32 %v3885, %v3891
  %v3896 = vmul.f32 %v3861, %v3745
  %v3897 = vmul.f32 %v3863, %v3752
  %v3898 = vadd.f32 %v3894, %v3896
  %v3899 = vadd.f32 %v3895, %v3897
  %v3900 = vlaneseq
  %v3901 = vshrl.u32 %v3900, 7
  %v3902 = vsub.s32 0, %v3901
  %v3903 = vrot.slane %v3898, %v3902
  %v3904 = vlaneseq
  %v3905 = vshrl.u32 %v3904, 7
  %v3906 = vsub.s32 0, %v3905
  %v3907 = vrot.slane %v3899, %v3906
  %v3908 = vsel %vm1824, %v3903, %v3676
  %v3909 = vsel %vm1824, %v3907, %v3677
  %v3910 = vld [vmem:[%s15] sm:$0x1]
  %v3911 = vld [vmem:[%s11] sm:$0xff]
  %v3912 = vld [vmem:[%s11 + $0x8] sm:$0xff]
  %v3913 = vld [vmem:[%s11 + $0x10] sm:$0xff]
  %v3914 = vld [vmem:[%s11 + $0x18] sm:$0xff]
  %3915 = vmatprep.subr.mxu0 0.0
  %3916 = vmatpush1.msra.mxu0 %v3911
  %3917 = vmatprep.subr.mxu0 0.0
  %3918 = vmatpush1.msra.mxu0 %v3912
  %3919 = vmatprep.subr.mxu0 0.0
  %3920 = vmatpush1.msra.mxu0 %v3913
  %3921 = vmatprep.subr.mxu0 0.0
  %3922 = vmatpush1.msra.mxu0 %v3914
  %3923 = vmatprep.subr.mxu0 0.0
  %3924 = vmatpush1.msra.mxu0 0.0
  %3925 = vmatprep.subr.mxu0 0.0
  %3926 = vmatpush1.msra.mxu0 0.0
  %3927 = vmatprep.subr.mxu0 0.0
  %3928 = vmatpush1.msra.mxu0 0.0
  %3929 = vmatprep.subr.mxu0 0.0
  %3930 = vmatpush1.msra.mxu0 0.0
  %3931 = vmatprep.subr.mxu0 0.0
  %3932 = vmatpush1.msra.mxu0 0.0
  %3933 = vmatprep.subr.mxu0 0.0
  %3934 = vmatpush1.msra.mxu0 0.0
  %3935 = vmatprep.subr.mxu0 0.0
  %3936 = vmatpush1.msra.mxu0 0.0
  %3937 = vmatprep.subr.mxu0 0.0
  %3938 = vmatpush1.msra.mxu0 0.0
  %3939 = vmatprep.subr.mxu0 0.0
  %3940 = vmatpush1.msra.mxu0 0.0
  %3941 = vmatprep.subr.mxu0 0.0
  %3942 = vmatpush1.msra.mxu0 0.0
  %3943 = vmatprep.subr.mxu0 0.0
  %3944 = vmatpush1.msra.mxu0 0.0
  %3945 = vmatprep.subr.mxu0 0.0
  %3946 = vmatpush1.msra.mxu0 0.0
  %3947 = vmatprep.subr.mxu0 0.0
  %3948 = vmatpush1.msra.mxu0 0.0
  %3949 = vmatprep.subr.mxu0 0.0
  %3950 = vmatpush1.msra.mxu0 0.0
  %3951 = vmatprep.subr.mxu0 0.0
  %3952 = vmatpush1.msra.mxu0 0.0
  %3953 = vmatprep.subr.mxu0 0.0
  %3954 = vmatpush1.msra.mxu0 0.0
  %3955 = vmatprep.subr.mxu0 0.0
  %3956 = vmatpush1.msra.mxu0 0.0
  %3957 = vmatprep.subr.mxu0 0.0
  %3958 = vmatpush1.msra.mxu0 0.0
  %3959 = vmatprep.subr.mxu0 0.0
  %3960 = vmatpush1.msra.mxu0 0.0
  %3961 = vmatprep.subr.mxu0 0.0
  %3962 = vmatpush1.msra.mxu0 0.0
  %3963 = vmatprep.subr.mxu0 0.0
  %3964 = vmatpush1.msra.mxu0 0.0
  %3965 = vmatprep.subr.mxu0 0.0
  %3966 = vmatpush1.msra.mxu0 0.0
  %3967 = vmatprep.subr.mxu0 0.0
  %3968 = vmatpush1.msra.mxu0 0.0
  %3969 = vmatprep.subr.mxu0 0.0
  %3970 = vmatpush1.msra.mxu0 0.0
  %3971 = vmatprep.subr.mxu0 0.0
  %3972 = vmatpush1.msra.mxu0 0.0
  %3973 = vmatprep.subr.mxu0 0.0
  %3974 = vmatpush1.msra.mxu0 0.0
  %3975 = vmatprep.subr.mxu0 0.0
  %3976 = vmatpush1.msra.mxu0 0.0
  %3977 = vmatprep.subr.mxu0 0.0
  %3978 = vmatpush1.msra.mxu0 0.0
  %3979 = vmatprep.mubr.f32.mxu0 0.0
  %3980 = vmatmul.mubr.f32.gmra.mrb[0].mxu0 %v198
  %v3981 = vpop.f32.mrb[0].mxu0
  %v3982 = vadd.f32 0.0, %v3981
  %v3983 = vpop.f32.mrb[0].mxu0
  %3984 = vmatprep.mubr.f32.mxu0 0.0
  %3985 = vmatmul.mubr.f32.gmra.mrb[0].mxu0 %v201
  %v3986 = vpop.f32.mrb[0].mxu0
  %v3987 = vadd.f32 0.0, %v3986
  %v3988 = vpop.f32.mrb[0].mxu0
  %3989 = vdwg.mxu0
  %v3991 = vlaneseq
  %v3992 = vshrl.u32 %v3991, 7
  %v3993 = vsub.s32 0, %v3992
  %v3994 = vrot.slane %v3910, %v3993
  %v3996 = vadd.f32 %v3994, %v3982
  %v3997 = vadd.f32 %v3994, %v3987
  %v3998 = vld [vmem:[%s12] sm:$0xff]
  %v3999 = vld [vmem:[%s12 + $0x8] sm:$0xff]
  %v4000 = vld [vmem:[%s12 + $0x10] sm:$0xff]
  %v4001 = vld [vmem:[%s12 + $0x18] sm:$0xff]
  %4002 = vmatprep.subr.mxu0 0.0
  %4003 = vmatpush1.msra.mxu0 %v3998
  %4004 = vmatprep.subr.mxu0 0.0
  %4005 = vmatpush1.msra.mxu0 %v3999
  %4006 = vmatprep.subr.mxu0 0.0
  %4007 = vmatpush1.msra.mxu0 %v4000
  %4008 = vmatprep.subr.mxu0 0.0
  %4009 = vmatpush1.msra.mxu0 %v4001
  %4010 = vmatprep.subr.mxu0 0.0
  %4011 = vmatpush1.msra.mxu0 0.0
  %4012 = vmatprep.subr.mxu0 0.0
  %4013 = vmatpush1.msra.mxu0 0.0
  %4014 = vmatprep.subr.mxu0 0.0
  %4015 = vmatpush1.msra.mxu0 0.0
  %4016 = vmatprep.subr.mxu0 0.0
  %4017 = vmatpush1.msra.mxu0 0.0
  %4018 = vmatprep.subr.mxu0 0.0
  %4019 = vmatpush1.msra.mxu0 0.0
  %4020 = vmatprep.subr.mxu0 0.0
  %4021 = vmatpush1.msra.mxu0 0.0
  %4022 = vmatprep.subr.mxu0 0.0
  %4023 = vmatpush1.msra.mxu0 0.0
  %4024 = vmatprep.subr.mxu0 0.0
  %4025 = vmatpush1.msra.mxu0 0.0
  %4026 = vmatprep.subr.mxu0 0.0
  %4027 = vmatpush1.msra.mxu0 0.0
  %4028 = vmatprep.subr.mxu0 0.0
  %4029 = vmatpush1.msra.mxu0 0.0
  %4030 = vmatprep.subr.mxu0 0.0
  %4031 = vmatpush1.msra.mxu0 0.0
  %4032 = vmatprep.subr.mxu0 0.0
  %4033 = vmatpush1.msra.mxu0 0.0
  %4034 = vmatprep.subr.mxu0 0.0
  %4035 = vmatpush1.msra.mxu0 0.0
  %4036 = vmatprep.subr.mxu0 0.0
  %4037 = vmatpush1.msra.mxu0 0.0
  %4038 = vmatprep.subr.mxu0 0.0
  %4039 = vmatpush1.msra.mxu0 0.0
  %4040 = vmatprep.subr.mxu0 0.0
  %4041 = vmatpush1.msra.mxu0 0.0
  %4042 = vmatprep.subr.mxu0 0.0
  %4043 = vmatpush1.msra.mxu0 0.0
  %4044 = vmatprep.subr.mxu0 0.0
  %4045 = vmatpush1.msra.mxu0 0.0
  %4046 = vmatprep.subr.mxu0 0.0
  %4047 = vmatpush1.msra.mxu0 0.0
  %4048 = vmatprep.subr.mxu0 0.0
  %4049 = vmatpush1.msra.mxu0 0.0
  %4050 = vmatprep.subr.mxu0 0.0
  %4051 = vmatpush1.msra.mxu0 0.0
  %4052 = vmatprep.subr.mxu0 0.0
  %4053 = vmatpush1.msra.mxu0 0.0
  %4054 = vmatprep.subr.mxu0 0.0
  %4055 = vmatpush1.msra.mxu0 0.0
  %4056 = vmatprep.subr.mxu0 0.0
  %4057 = vmatpush1.msra.mxu0 0.0
  %4058 = vmatprep.subr.mxu0 0.0
  %4059 = vmatpush1.msra.mxu0 0.0
  %4060 = vmatprep.subr.mxu0 0.0
  %4061 = vmatpush1.msra.mxu0 0.0
  %4062 = vmatprep.subr.mxu0 0.0
  %4063 = vmatpush1.msra.mxu0 0.0
  %4064 = vmatprep.subr.mxu0 0.0
  %4065 = vmatpush1.msra.mxu0 0.0
  %4066 = vmatprep.mubr.f32.mxu0 0.0
  %4067 = vmatmul.mubr.f32.gmra.mrb[0].mxu0 %v2076
  %v4068 = vpop.f32.mrb[0].mxu0
  %v4069 = vadd.f32 0.0, %v4068
  %v4070 = vpop.f32.mrb[0].mxu0
  %4071 = vmatprep.mubr.f32.mxu0 0.0
  %4072 = vmatmul.mubr.f32.gmra.mrb[0].mxu0 %v2078
  %v4073 = vpop.f32.mrb[0].mxu0
  %v4074 = vadd.f32 0.0, %v4073
  %v4075 = vpop.f32.mrb[0].mxu0
  %4076 = vdwg.mxu0
  %v4077 = vadd.f32 %v3996, %v4069
  %v4078 = vadd.f32 %v3997, %v4074
  %v4079 = vld [vmem:[%s13] sm:$0xff]
  %v4080 = vld [vmem:[%s13 + $0x8] sm:$0xff]
  %v4081 = vld [vmem:[%s13 + $0x10] sm:$0xff]
  %v4082 = vld [vmem:[%s13 + $0x18] sm:$0xff]
  %4085 = vrot.lane.b32.xlu0 %v3908, 96
  %v4086 = vpop.permute.xlu0 %4085
  %4087 = vrot.lane.b32.xlu0 %v3909, 96
  %v4088 = vpop.permute.xlu0 %4087
  %v4089 = vsel %vm196, %v4086, 0
  %v4091 = vsel %vm196, %v4088, 0
  %4093 = vmatprep.subr.mxu0 0.0
  %4094 = vmatpush1.msra.mxu0 %v4079
  %4095 = vmatprep.subr.mxu0 0.0
  %4096 = vmatpush1.msra.mxu0 %v4080
  %4097 = vmatprep.subr.mxu0 0.0
  %4098 = vmatpush1.msra.mxu0 %v4081
  %4099 = vmatprep.subr.mxu0 0.0
  %4100 = vmatpush1.msra.mxu0 %v4082
  %4101 = vmatprep.subr.mxu0 0.0
  %4102 = vmatpush1.msra.mxu0 0.0
  %4103 = vmatprep.subr.mxu0 0.0
  %4104 = vmatpush1.msra.mxu0 0.0
  %4105 = vmatprep.subr.mxu0 0.0
  %4106 = vmatpush1.msra.mxu0 0.0
  %4107 = vmatprep.subr.mxu0 0.0
  %4108 = vmatpush1.msra.mxu0 0.0
  %4109 = vmatprep.subr.mxu0 0.0
  %4110 = vmatpush1.msra.mxu0 0.0
  %4111 = vmatprep.subr.mxu0 0.0
  %4112 = vmatpush1.msra.mxu0 0.0
  %4113 = vmatprep.subr.mxu0 0.0
  %4114 = vmatpush1.msra.mxu0 0.0
  %4115 = vmatprep.subr.mxu0 0.0
  %4116 = vmatpush1.msra.mxu0 0.0
  %4117 = vmatprep.subr.mxu0 0.0
  %4118 = vmatpush1.msra.mxu0 0.0
  %4119 = vmatprep.subr.mxu0 0.0
  %4120 = vmatpush1.msra.mxu0 0.0
  %4121 = vmatprep.subr.mxu0 0.0
  %4122 = vmatpush1.msra.mxu0 0.0
  %4123 = vmatprep.subr.mxu0 0.0
  %4124 = vmatpush1.msra.mxu0 0.0
  %4125 = vmatprep.subr.mxu0 0.0
  %4126 = vmatpush1.msra.mxu0 0.0
  %4127 = vmatprep.subr.mxu0 0.0
  %4128 = vmatpush1.msra.mxu0 0.0
  %4129 = vmatprep.subr.mxu0 0.0
  %4130 = vmatpush1.msra.mxu0 0.0
  %4131 = vmatprep.subr.mxu0 0.0
  %4132 = vmatpush1.msra.mxu0 0.0
  %4133 = vmatprep.subr.mxu0 0.0
  %4134 = vmatpush1.msra.mxu0 0.0
  %4135 = vmatprep.subr.mxu0 0.0
  %4136 = vmatpush1.msra.mxu0 0.0
  %4137 = vmatprep.subr.mxu0 0.0
  %4138 = vmatpush1.msra.mxu0 0.0
  %4139 = vmatprep.subr.mxu0 0.0
  %4140 = vmatpush1.msra.mxu0 0.0
  %4141 = vmatprep.subr.mxu0 0.0
  %4142 = vmatpush1.msra.mxu0 0.0
  %4143 = vmatprep.subr.mxu0 0.0
  %4144 = vmatpush1.msra.mxu0 0.0
  %4145 = vmatprep.subr.mxu0 0.0
  %4146 = vmatpush1.msra.mxu0 0.0
  %4147 = vmatprep.subr.mxu0 0.0
  %4148 = vmatpush1.msra.mxu0 0.0
  %4149 = vmatprep.subr.mxu0 0.0
  %4150 = vmatpush1.msra.mxu0 0.0
  %4151 = vmatprep.subr.mxu0 0.0
  %4152 = vmatpush1.msra.mxu0 0.0
  %4153 = vmatprep.subr.mxu0 0.0
  %4154 = vmatpush1.msra.mxu0 0.0
  %4155 = vmatprep.subr.mxu0 0.0
  %4156 = vmatpush1.msra.mxu0 0.0
  %4157 = vmatprep.mubr.f32.mxu0 0.0
  %4158 = vmatmul.mubr.f32.gmra.mrb[0].mxu0 %v4089
  %v4159 = vpop.f32.mrb[0].mxu0
  %v4160 = vadd.f32 0.0, %v4159
  %v4161 = vpop.f32.mrb[0].mxu0
  %4162 = vmatprep.mubr.f32.mxu0 0.0
  %4163 = vmatmul.mubr.f32.gmra.mrb[0].mxu0 %v4091
  %v4164 = vpop.f32.mrb[0].mxu0
  %v4165 = vadd.f32 0.0, %v4164
  %v4166 = vpop.f32.mrb[0].mxu0
  %4167 = vdwg.mxu0
  %v4168 = vadd.f32 %v4077, %v4160
  %v4169 = vadd.f32 %v4078, %v4165
  %v4170 = vld [vmem:[%s14] sm:$0xff]
  %v4171 = vld [vmem:[%s14 + $0x8] sm:$0xff]
  %v4172 = vld [vmem:[%s14 + $0x10] sm:$0xff]
  %v4173 = vld [vmem:[%s14 + $0x18] sm:$0xff]
  %v4174 = vld [vmem:[%s14 + $0x20] sm:$0xff]
  %v4175 = vld [vmem:[%s14 + $0x28] sm:$0xff]
  %4176 = vmatprep.subr.mxu0 0.0
  %4177 = vmatpush1.msra.mxu0 %v4170
  %4178 = vmatprep.subr.mxu0 0.0
  %4179 = vmatpush1.msra.mxu0 %v4171
  %4180 = vmatprep.subr.mxu0 0.0
  %4181 = vmatpush1.msra.mxu0 %v4172
  %4182 = vmatprep.subr.mxu0 0.0
  %4183 = vmatpush1.msra.mxu0 %v4173
  %4184 = vmatprep.subr.mxu0 0.0
  %4185 = vmatpush1.msra.mxu0 %v4174
  %4186 = vmatprep.subr.mxu0 0.0
  %4187 = vmatpush1.msra.mxu0 %v4175
  %4188 = vmatprep.subr.mxu0 0.0
  %4189 = vmatpush1.msra.mxu0 0.0
  %4190 = vmatprep.subr.mxu0 0.0
  %4191 = vmatpush1.msra.mxu0 0.0
  %4192 = vmatprep.subr.mxu0 0.0
  %4193 = vmatpush1.msra.mxu0 0.0
  %4194 = vmatprep.subr.mxu0 0.0
  %4195 = vmatpush1.msra.mxu0 0.0
  %4196 = vmatprep.subr.mxu0 0.0
  %4197 = vmatpush1.msra.mxu0 0.0
  %4198 = vmatprep.subr.mxu0 0.0
  %4199 = vmatpush1.msra.mxu0 0.0
  %4200 = vmatprep.subr.mxu0 0.0
  %4201 = vmatpush1.msra.mxu0 0.0
  %4202 = vmatprep.subr.mxu0 0.0
  %4203 = vmatpush1.msra.mxu0 0.0
  %4204 = vmatprep.subr.mxu0 0.0
  %4205 = vmatpush1.msra.mxu0 0.0
  %4206 = vmatprep.subr.mxu0 0.0
  %4207 = vmatpush1.msra.mxu0 0.0
  %4208 = vmatprep.subr.mxu0 0.0
  %4209 = vmatpush1.msra.mxu0 0.0
  %4210 = vmatprep.subr.mxu0 0.0
  %4211 = vmatpush1.msra.mxu0 0.0
  %4212 = vmatprep.subr.mxu0 0.0
  %4213 = vmatpush1.msra.mxu0 0.0
  %4214 = vmatprep.subr.mxu0 0.0
  %4215 = vmatpush1.msra.mxu0 0.0
  %4216 = vmatprep.subr.mxu0 0.0
  %4217 = vmatpush1.msra.mxu0 0.0
  %4218 = vmatprep.subr.mxu0 0.0
  %4219 = vmatpush1.msra.mxu0 0.0
  %4220 = vmatprep.subr.mxu0 0.0
  %4221 = vmatpush1.msra.mxu0 0.0
  %4222 = vmatprep.subr.mxu0 0.0
  %4223 = vmatpush1.msra.mxu0 0.0
  %4224 = vmatprep.subr.mxu0 0.0
  %4225 = vmatpush1.msra.mxu0 0.0
  %4226 = vmatprep.subr.mxu0 0.0
  %4227 = vmatpush1.msra.mxu0 0.0
  %4228 = vmatprep.subr.mxu0 0.0
  %4229 = vmatpush1.msra.mxu0 0.0
  %4230 = vmatprep.subr.mxu0 0.0
  %4231 = vmatpush1.msra.mxu0 0.0
  %4232 = vmatprep.subr.mxu0 0.0
  %4233 = vmatpush1.msra.mxu0 0.0
  %4234 = vmatprep.subr.mxu0 0.0
  %4235 = vmatpush1.msra.mxu0 0.0
  %4236 = vmatprep.subr.mxu0 0.0
  %4237 = vmatpush1.msra.mxu0 0.0
  %4238 = vmatprep.subr.mxu0 0.0
  %4239 = vmatpush1.msra.mxu0 0.0
  %4240 = vmatprep.mubr.f32.mxu0 0.0
  %4241 = vmatmul.mubr.f32.gmra.mrb[0].mxu0 %v84
  %v4242 = vpop.f32.mrb[0].mxu0
  %v4243 = vadd.f32 0.0, %v4242
  %v4244 = vpop.f32.mrb[0].mxu0
  %4245 = vmatprep.mubr.f32.mxu0 0.0
  %4246 = vmatmul.mubr.f32.gmra.mrb[0].mxu0 %v87
  %v4247 = vpop.f32.mrb[0].mxu0
  %v4248 = vadd.f32 0.0, %v4247
  %v4249 = vpop.f32.mrb[0].mxu0
  %4250 = vdwg.mxu0
  %v4251 = vadd.f32 %v4168, %v4243
  %v4252 = vadd.f32 %v4169, %v4248
  %v4253 = vmax.f32 %v4251, 0.0
  %v4254 = vmax.f32 %v4252, 0.0
  %v4255 = vld [vmem:[%s16] sm:$0xff]
  %v4256 = vld [vmem:[%s16 + $0x8] sm:$0xff]
  %v4257 = vld [vmem:[%s16 + $0x10] sm:$0xff]
  %v4258 = vld [vmem:[%s16 + $0x18] sm:$0xff]
  %v4259 = vld [vmem:[%s17] sm:$0x1]
  %v4261 = vlaneseq
  %v4262 = vshrl.u32 %v4261, 7
  %v4263 = vsub.s32 0, %v4262
  %v4264 = vrot.slane %v4259, %v4263
  %v4267 = vsel %vm196, %v4253, 0
  %v4270 = vsel %vm196, %v4254, 0
  %4272 = vmatprep.subr.mxu0 0.0
  %4273 = vmatpush1.msra.mxu0 %v4255
  %4274 = vmatprep.subr.mxu0 0.0
  %4275 = vmatpush1.msra.mxu0 %v4256
  %4276 = vmatprep.subr.mxu0 0.0
  %4277 = vmatpush1.msra.mxu0 %v4257
  %4278 = vmatprep.subr.mxu0 0.0
  %4279 = vmatpush1.msra.mxu0 %v4258
  %4280 = vmatprep.subr.mxu0 0.0
  %4281 = vmatpush1.msra.mxu0 0.0
  %4282 = vmatprep.subr.mxu0 0.0
  %4283 = vmatpush1.msra.mxu0 0.0
  %4284 = vmatprep.subr.mxu0 0.0
  %4285 = vmatpush1.msra.mxu0 0.0
  %4286 = vmatprep.subr.mxu0 0.0
  %4287 = vmatpush1.msra.mxu0 0.0
  %4288 = vmatprep.subr.mxu0 0.0
  %4289 = vmatpush1.msra.mxu0 0.0
  %4290 = vmatprep.subr.mxu0 0.0
  %4291 = vmatpush1.msra.mxu0 0.0
  %4292 = vmatprep.subr.mxu0 0.0
  %4293 = vmatpush1.msra.mxu0 0.0
  %4294 = vmatprep.subr.mxu0 0.0
  %4295 = vmatpush1.msra.mxu0 0.0
  %4296 = vmatprep.subr.mxu0 0.0
  %4297 = vmatpush1.msra.mxu0 0.0
  %4298 = vmatprep.subr.mxu0 0.0
  %4299 = vmatpush1.msra.mxu0 0.0
  %4300 = vmatprep.subr.mxu0 0.0
  %4301 = vmatpush1.msra.mxu0 0.0
  %4302 = vmatprep.subr.mxu0 0.0
  %4303 = vmatpush1.msra.mxu0 0.0
  %4304 = vmatprep.subr.mxu0 0.0
  %4305 = vmatpush1.msra.mxu0 0.0
  %4306 = vmatprep.subr.mxu0 0.0
  %4307 = vmatpush1.msra.mxu0 0.0
  %4308 = vmatprep.subr.mxu0 0.0
  %4309 = vmatpush1.msra.mxu0 0.0
  %4310 = vmatprep.subr.mxu0 0.0
  %4311 = vmatpush1.msra.mxu0 0.0
  %4312 = vmatprep.subr.mxu0 0.0
  %4313 = vmatpush1.msra.mxu0 0.0
  %4314 = vmatprep.subr.mxu0 0.0
  %4315 = vmatpush1.msra.mxu0 0.0
  %4316 = vmatprep.subr.mxu0 0.0
  %4317 = vmatpush1.msra.mxu0 0.0
  %4318 = vmatprep.subr.mxu0 0.0
  %4319 = vmatpush1.msra.mxu0 0.0
  %4320 = vmatprep.subr.mxu0 0.0
  %4321 = vmatpush1.msra.mxu0 0.0
  %4322 = vmatprep.subr.mxu0 0.0
  %4323 = vmatpush1.msra.mxu0 0.0
  %4324 = vmatprep.subr.mxu0 0.0
  %4325 = vmatpush1.msra.mxu0 0.0
  %4326 = vmatprep.subr.mxu0 0.0
  %4327 = vmatpush1.msra.mxu0 0.0
  %4328 = vmatprep.subr.mxu0 0.0
  %4329 = vmatpush1.msra.mxu0 0.0
  %4330 = vmatprep.subr.mxu0 0.0
  %4331 = vmatpush1.msra.mxu0 0.0
  %4332 = vmatprep.subr.mxu0 0.0
  %4333 = vmatpush1.msra.mxu0 0.0
  %4334 = vmatprep.subr.mxu0 0.0
  %4335 = vmatpush1.msra.mxu0 0.0
  %4336 = vmatprep.mubr.f32.mxu0 0.0
  %4337 = vmatmul.mubr.f32.gmra.mrb[0].mxu0 %v4267
  %v4338 = vpop.f32.mrb[0].mxu0
  %v4339 = vadd.f32 %v4264, %v4338
  %v4340 = vpop.f32.mrb[0].mxu0
  %4341 = vmatprep.mubr.f32.mxu0 0.0
  %4342 = vmatmul.mubr.f32.gmra.mrb[0].mxu0 %v4270
  %v4343 = vpop.f32.mrb[0].mxu0
  %v4344 = vadd.f32 %v4264, %v4343
  %v4345 = vpop.f32.mrb[0].mxu0
  %4346 = vdwg.mxu0
  %v4347 = vmax.f32 %v4339, 0.0
  %v4348 = vmax.f32 %v4344, 0.0
  %v4349 = vld [vmem:[%s18] sm:$0xff]
  %v4350 = vld [vmem:[%s18 + $0x8] sm:$0xff]
  %v4351 = vld [vmem:[%s18 + $0x10] sm:$0xff]
  %v4352 = vld [vmem:[%s18 + $0x18] sm:$0xff]
  %v4353 = vld [vmem:[%s19] sm:$0x1]
  %v4355 = vlaneseq
  %v4356 = vshrl.u32 %v4355, 7
  %v4357 = vsub.s32 0, %v4356
  %v4358 = vrot.slane %v4353, %v4357
  %v4361 = vsel %vm196, %v4347, 0
  %v4364 = vsel %vm196, %v4348, 0
  %4366 = vmatprep.subr.mxu0 0.0
  %4367 = vmatpush1.msra.mxu0 %v4349
  %4368 = vmatprep.subr.mxu0 0.0
  %4369 = vmatpush1.msra.mxu0 %v4350
  %4370 = vmatprep.subr.mxu0 0.0
  %4371 = vmatpush1.msra.mxu0 %v4351
  %4372 = vmatprep.subr.mxu0 0.0
  %4373 = vmatpush1.msra.mxu0 %v4352
  %4374 = vmatprep.subr.mxu0 0.0
  %4375 = vmatpush1.msra.mxu0 0.0
  %4376 = vmatprep.subr.mxu0 0.0
  %4377 = vmatpush1.msra.mxu0 0.0
  %4378 = vmatprep.subr.mxu0 0.0
  %4379 = vmatpush1.msra.mxu0 0.0
  %4380 = vmatprep.subr.mxu0 0.0
  %4381 = vmatpush1.msra.mxu0 0.0
  %4382 = vmatprep.subr.mxu0 0.0
  %4383 = vmatpush1.msra.mxu0 0.0
  %4384 = vmatprep.subr.mxu0 0.0
  %4385 = vmatpush1.msra.mxu0 0.0
  %4386 = vmatprep.subr.mxu0 0.0
  %4387 = vmatpush1.msra.mxu0 0.0
  %4388 = vmatprep.subr.mxu0 0.0
  %4389 = vmatpush1.msra.mxu0 0.0
  %4390 = vmatprep.subr.mxu0 0.0
  %4391 = vmatpush1.msra.mxu0 0.0
  %4392 = vmatprep.subr.mxu0 0.0
  %4393 = vmatpush1.msra.mxu0 0.0
  %4394 = vmatprep.subr.mxu0 0.0
  %4395 = vmatpush1.msra.mxu0 0.0
  %4396 = vmatprep.subr.mxu0 0.0
  %4397 = vmatpush1.msra.mxu0 0.0
  %4398 = vmatprep.subr.mxu0 0.0
  %4399 = vmatpush1.msra.mxu0 0.0
  %4400 = vmatprep.subr.mxu0 0.0
  %4401 = vmatpush1.msra.mxu0 0.0
  %4402 = vmatprep.subr.mxu0 0.0
  %4403 = vmatpush1.msra.mxu0 0.0
  %4404 = vmatprep.subr.mxu0 0.0
  %4405 = vmatpush1.msra.mxu0 0.0
  %4406 = vmatprep.subr.mxu0 0.0
  %4407 = vmatpush1.msra.mxu0 0.0
  %4408 = vmatprep.subr.mxu0 0.0
  %4409 = vmatpush1.msra.mxu0 0.0
  %4410 = vmatprep.subr.mxu0 0.0
  %4411 = vmatpush1.msra.mxu0 0.0
  %4412 = vmatprep.subr.mxu0 0.0
  %4413 = vmatpush1.msra.mxu0 0.0
  %4414 = vmatprep.subr.mxu0 0.0
  %4415 = vmatpush1.msra.mxu0 0.0
  %4416 = vmatprep.subr.mxu0 0.0
  %4417 = vmatpush1.msra.mxu0 0.0
  %4418 = vmatprep.subr.mxu0 0.0
  %4419 = vmatpush1.msra.mxu0 0.0
  %4420 = vmatprep.subr.mxu0 0.0
  %4421 = vmatpush1.msra.mxu0 0.0
  %4422 = vmatprep.subr.mxu0 0.0
  %4423 = vmatpush1.msra.mxu0 0.0
  %4424 = vmatprep.subr.mxu0 0.0
  %4425 = vmatpush1.msra.mxu0 0.0
  %4426 = vmatprep.subr.mxu0 0.0
  %4427 = vmatpush1.msra.mxu0 0.0
  %4428 = vmatprep.subr.mxu0 0.0
  %4429 = vmatpush1.msra.mxu0 0.0
  %4430 = vmatprep.mubr.f32.mxu0 0.0
  %4431 = vmatmul.mubr.f32.gmra.mrb[0].mxu0 %v4361
  %v4432 = vpop.f32.mrb[0].mxu0
  %v4433 = vadd.f32 %v4358, %v4432
  %v4434 = vpop.f32.mrb[0].mxu0
  %4435 = vmatprep.mubr.f32.mxu0 0.0
  %4436 = vmatmul.mubr.f32.gmra.mrb[0].mxu0 %v4364
  %v4437 = vpop.f32.mrb[0].mxu0
  %v4438 = vadd.f32 %v4358, %v4437
  %v4439 = vpop.f32.mrb[0].mxu0
  %4440 = vdwg.mxu0
  %vm4441 = vcmask 48128
  %4442 = vst.msk [vmem:[%s20] sm:$0xff] %vm4441, %v4433
  %4443 = vst.msk [vmem:[%s20 + $0x8] sm:$0xff] %vm4441, %v4438
  // Predicated region
  $region82: #{dagerc_forward.1} parent=0 // pred_check
    _
  $region83: #{dagerc_forward.1} parent=0 // pred_check_branch
    %4445 = sbr.rel (0) target = $region85
  $region84: #{dagerc_forward.1} parent=0 // pred_region
    _
  $region85: #{dagerc_forward.1} parent=0 // pred_fallthru
    _
  // Predicated region
  $region86: #{dagerc_forward.1} parent=0 // pred_check
    _
  $region87: #{dagerc_forward.1} parent=0 // pred_check_branch
    %4447 = sbr.rel (0) target = $region89
  $region88: #{dagerc_forward.1} parent=0 // pred_region
    _
  $region89: #{dagerc_forward.1} parent=0 // pred_fallthru
    _

</llo_original>
